<compile_context>
chip_gen: v7x
topology: tpu7x:2x2x1
jax: 0.10.0
libtpu: 0.0.40
codegen_flags: <defaults>
</compile_context>

<pallas_src>
import math
from functools import partial
from types import SimpleNamespace

import jax
import jax.numpy as jnp
from jax.experimental import pallas as pl
from jax.experimental.pallas import tpu as pltpu


# Explicit scoped-VMEM cap: comfortably inside v7x's 64 MiB physical VMEM and
# raises v5e's 16 MiB default.  Actual usage at these tile sizes is far lower.
_VMEM_LIMIT_BYTES = 48 * 1024 * 1024


# ------------------------------- tiling helpers ------------------------------

def _sublane_gran(*dtypes):
    """Sublane granularity: 8 for f32, 16 for bf16 (packed), 32 for int8."""
    return max(8 * (4 // jnp.dtype(d).itemsize) for d in dtypes)


def _row_tile(M, gran=8, pref=512):
    """Largest multiple-of-`gran` divisor of M that is <= pref, preferring
    >= 2 row tiles (so the 'parallel' row axis can shard across both v7x
    TensorCores and software pipelining has something to overlap).  Falls
    back to the full array (always a legal block) when M has no such divisor.
    # TODO(synk): verify "parallel" shards across TCs on v7x; otherwise switch
    # the row axis to pltpu.CORE_PARALLEL."""
    if M <= gran:
        return M
    cap = M if M < 2 * gran else max(gran, (M // 2) // gran * gran)
    cap = min(pref, cap)
    t = (cap // gran) * gran
    while t >= gran:
        if M % t == 0:
            return t
        t -= gran
    return M


# ----------------------------- fused MLP-block stack -----------------------------

def _blocks_kernel(x_ref, w1_ref, b1_ref, w2_ref, b2_ref, *rest, eps, last_k):
    """Grid = (row_tiles, depth).  Residual tile is VMEM-resident across the
    whole layer axis; weights stream per layer.  Optionally accumulates the
    sum of the last-k layer outputs into a second (resident) output."""
    if last_k > 0:
        o_ref, hsum_ref, acc_ref = rest
    else:
        o_ref, acc_ref = rest
        hsum_ref = None

    l = pl.program_id(1)
    depth = pl.num_programs(1)

    @pl.when(l == 0)
    def _():
        acc_ref[...] = x_ref[...].astype(jnp.float32)

    x = acc_ref[...]
    mu = jnp.mean(x, axis=-1, keepdims=True)
    var = jnp.mean((x - mu) ** 2, axis=-1, keepdims=True)
    hn = (x - mu) * jax.lax.rsqrt(var + eps)
    # TODO(synk): PyTorch default GELU is exact erf; tanh approximation (EUP) used here.
    # TODO(synk): LayerNorms here are non-affine (the reference encoder is abstract).
    h1 = jax.nn.gelu(
        jnp.dot(hn.astype(w1_ref.dtype), w1_ref[0],
                preferred_element_type=jnp.float32) + b1_ref[0],
        approximate=True)
    h2 = jnp.dot(h1.astype(w2_ref.dtype), w2_ref[0],
                 preferred_element_type=jnp.float32) + b2_ref[0]
    y = x + h2
    acc_ref[...] = y

    if last_k > 0:
        first = depth - last_k

        @pl.when(l == first)
        def _():
            hsum_ref[...] = y

        @pl.when(l > first)
        def _():
            hsum_ref[...] += y

    @pl.when(l == depth - 1)
    def _():
        o_ref[...] = y.astype(o_ref.dtype)


def blocks_forward(x, w1, b1, w2, b2, *, last_k=0, eps=1e-5, out_dtype=jnp.bfloat16):
    """(Bx, T, D) -> (Bx, T, D) through `depth` fused pre-LN MLP blocks in a
    single pallas_call.  If last_k > 0, also returns the f32 running sum of
    the last-k block outputs (for the 'avg_ln' target norm)."""
    Bx, T, D = x.shape
    depth, _, H = w1.shape
    M = Bx * T
    xf = x.reshape(M, D)
    gran = _sublane_gran(x.dtype, out_dtype)
    tm = _row_tile(M, gran=gran)
    n_tiles = M // tm
    grid = (n_tiles, depth)

    in_specs = [
        pl.BlockSpec((tm, D), lambda i, l: (i, 0)),
        pl.BlockSpec((1, D, H), lambda i, l: (l, 0, 0)),
        pl.BlockSpec((1, 1, H), lambda i, l: (l, 0, 0)),
        pl.BlockSpec((1, H, D), lambda i, l: (l, 0, 0)),
        pl.BlockSpec((1, 1, D), lambda i, l: (l, 0, 0)),
    ]
    if last_k > 0:
        out_shape = (jax.ShapeDtypeStruct((M, D), out_dtype),
                     jax.ShapeDtypeStruct((M, D), jnp.float32))
        out_specs = (pl.BlockSpec((tm, D), lambda i, l: (i, 0)),
                     pl.BlockSpec((tm, D), lambda i, l: (i, 0)))
    else:
        out_shape = jax.ShapeDtypeStruct((M, D), out_dtype)
        out_specs = pl.BlockSpec((tm, D), lambda i, l: (i, 0))

    cost = pl.CostEstimate(
        flops=4 * M * D * H * depth,
        transcendentals=M * H * depth,
        bytes_accessed=(M * D * x.dtype.itemsize
                        + M * D * jnp.dtype(out_dtype).itemsize
                        + (M * D * 4 if last_k > 0 else 0)
                        + n_tiles * depth * (2 * D * H * 2 + (H + D) * 4)))

    out = pl.pallas_call(
        partial(_blocks_kernel, eps=eps, last_k=last_k),
        out_shape=out_shape,
        grid=grid,
        in_specs=in_specs,
        out_specs=out_specs,
        scratch_shapes=[pltpu.VMEM((tm, D), jnp.float32)],
        compiler_params=pltpu.CompilerParams(
            dimension_semantics=("parallel", "arbitrary"),
            vmem_limit_bytes=_VMEM_LIMIT_BYTES),
        cost_estimate=cost,
    )(xf, w1, b1, w2, b2)

    if last_k > 0:
        y, hsum = out
        return y.reshape(Bx, T, D), hsum.reshape(Bx, T, D)
    return out.reshape(Bx, T, D)


# ----------------------------- fused projection -----------------------------

def _proj_kernel(*refs, activation, pre_ln, has_add, eps):
    if has_add:
        x_ref, w_ref, b_ref, add_ref, o_ref = refs
    else:
        x_ref, w_ref, b_ref, o_ref = refs
        add_ref = None
    x = x_ref[...].astype(jnp.float32)
    if pre_ln:   # fused LayerNorm of the input (encoder/predictor final norm)
        mu = jnp.mean(x, axis=-1, keepdims=True)
        var = jnp.mean((x - mu) ** 2, axis=-1, keepdims=True)
        x = (x - mu) * jax.lax.rsqrt(var + eps)
    acc = jnp.dot(x.astype(w_ref.dtype), w_ref[...],
                  preferred_element_type=jnp.float32) + b_ref[...]
    if activation == "gelu":
        acc = jax.nn.gelu(acc, approximate=True)
    if add_ref is not None:       # fused positional-embedding add
        acc = acc + add_ref[...].astype(jnp.float32)
    o_ref[...] = acc.astype(o_ref.dtype)


def matmul_bias(x, w, b, *, add=None, activation=None, pre_ln=False, eps=1e-5,
                out_dtype=jnp.float32):
    """(M,K) @ (K,N) + b (+ optional pre-LN on x, GELU, fused row-wise add)."""
    M, K = x.shape
    _, N = w.shape
    dts = [x.dtype, out_dtype] + ([add.dtype] if add is not None else [])
    tm = _row_tile(M, gran=_sublane_gran(*dts))

    # TODO(synk): weight/bias blocks have constant index_maps; on v7x they could
    # be single-buffered (pl.Buffered(1)) to halve their VMEM at large D.
    in_specs = [pl.BlockSpec((tm, K), lambda i: (i, 0)),
                pl.BlockSpec((K, N), lambda i: (0, 0)),
                pl.BlockSpec((1, N), lambda i: (0, 0))]
    args = [x, w, b.reshape(1, N)]
    if add is not None:
        in_specs.append(pl.BlockSpec((tm, N), lambda i: (i, 0)))
        args.append(add)

    cost = pl.CostEstimate(
        flops=2 * M * K * N,
        transcendentals=(M * N if activation == "gelu" else 0),
        bytes_accessed=(M * K * x.dtype.itemsize + K * N * w.dtype.itemsize + N * 4
                        + M * N * jnp.dtype(out_dtype).itemsize
                        + (M * N * add.dtype.itemsize if add is not None else 0)))

    return pl.pallas_call(
        partial(_proj_kernel, activation=activation, pre_ln=pre_ln,
                has_add=add is not None, eps=eps),
        out_shape=jax.ShapeDtypeStruct((M, N), out_dtype),
        grid=(M // tm,),
        in_specs=in_specs,
        out_specs=pl.BlockSpec((tm, N), lambda i: (i, 0)),
        compiler_params=pltpu.CompilerParams(
            dimension_semantics=("parallel",),
            vmem_limit_bytes=_VMEM_LIMIT_BYTES),
        cost_estimate=cost,
    )(*args)


# ----------------------------- avg_ln target norm ----------------------------

def _avg_ln_kernel(s_ref, o_ref, *, eps_eff):
    s = s_ref[...].astype(jnp.float32)
    mu = jnp.mean(s, axis=-1, keepdims=True)
    var = jnp.mean((s - mu) ** 2, axis=-1, keepdims=True)
    # LN(s/k) == (s - mean(s)) * rsqrt(var(s) + eps*k^2): the 1/k scale is
    # folded into eps, saving a full-slab f32 multiply (helps v5e's VPU).
    o_ref[...] = ((s - mu) * jax.lax.rsqrt(var + eps_eff)).astype(o_ref.dtype)


def avg_layer_norm(h_sum, k, eps=1e-5):
    """h_sum: (M, D) sum of the last-k layer outputs -> LN(mean)  ('avg_ln')."""
    M, D = h_sum.shape
    tm = _row_tile(M, gran=_sublane_gran(h_sum.dtype))
    return pl.pallas_call(
        partial(_avg_ln_kernel, eps_eff=eps * float(k) * float(k)),
        out_shape=jax.ShapeDtypeStruct((M, D), jnp.float32),
        grid=(M // tm,),
        in_specs=[pl.BlockSpec((tm, D), lambda i: (i, 0))],
        out_specs=pl.BlockSpec((tm, D), lambda i: (i, 0)),
        compiler_params=pltpu.CompilerParams(
            dimension_semantics=("parallel",),
            vmem_limit_bytes=_VMEM_LIMIT_BYTES),
    )(h_sum)


# --------------------------------- MSE loss ----------------------------------

def _mse_kernel(z_ref, h_ref, o_ref, acc_ref, *, scale):
    @pl.when(pl.program_id(0) == 0)
    def _():
        acc_ref[...] = jnp.zeros_like(acc_ref)

    d = z_ref[...].astype(jnp.float32) - h_ref[...].astype(jnp.float32)
    acc_ref[...] += jnp.sum(d * d).reshape(1, 1)

    @pl.when(pl.program_id(0) == pl.num_programs(0) - 1)
    def _():
        o_ref[...] = acc_ref[...] * scale


def mse_loss(z, h):
    """F.mse_loss(z, h) (mean reduction); VMEM scratch accumulator, one store."""
    M, D = z.shape
    tm = _row_tile(M, gran=_sublane_gran(z.dtype, h.dtype))
    out = pl.pallas_call(
        partial(_mse_kernel, scale=1.0 / (M * D)),
        out_shape=jax.ShapeDtypeStruct((1, 1), jnp.float32),
        grid=(M // tm,),
        in_specs=[pl.BlockSpec((tm, D), lambda i: (i, 0)),
                  pl.BlockSpec((tm, D), lambda i: (i, 0))],
        out_specs=pl.BlockSpec((1, 1), lambda i: (0, 0)),
        scratch_shapes=[pltpu.VMEM((1, 1), jnp.float32)],
        compiler_params=pltpu.CompilerParams(
            dimension_semantics=("arbitrary",),
            vmem_limit_bytes=_VMEM_LIMIT_BYTES),
    )(z, h)
    return out[0, 0]


# ------------------------------ JAX glue ops --------------------------------

def patchify(imgs, P, pad_to=None):
    """NCHW -> (B, N, C*P*P) in (c, ph, pw) order; optional lane-align pad."""
    B, C, H, W = imgs.shape
    x = imgs.reshape(B, C, H // P, P, W // P, P)
    x = jnp.transpose(x, (0, 2, 4, 1, 3, 5))
    x = x.reshape(B, (H // P) * (W // P), C * P * P)
    if pad_to is not None and pad_to > x.shape[-1]:
        x = jnp.pad(x, ((0, 0), (0, 0), (0, pad_to - x.shape[-1])))
    return x


def apply_masks(x, masks):
    """PyTorch apply_masks: gather tokens at indices, concat over mask list on batch."""
    # TODO(synk): at realistic N move this gather into the Pallas pipeline via
    # PrefetchScalarGridSpec + pl.Element row BlockSpecs instead of XLA gather.
    outs = [jnp.take_along_axis(x, m[:, :, None], axis=1) for m in masks]
    return jnp.concatenate(outs, axis=0)


def encoder_forward(imgs, params, P, masks=None, last_k=0):
    """Context path (masks given): tokens are gathered BEFORE the per-token
    patch projection (order-invariant), so dropped tokens are never projected.
    Target path (last_k > 0): also returns the running sum of the last-k block
    outputs, produced as a second output of the fused block kernel."""
    B = imgs.shape[0]
    Cp_pad, D = params["patch_w"].shape
    patches = patchify(imgs, P, pad_to=Cp_pad)                 # (B, N, Cp_pad)
    N = patches.shape[1]
    pos = jnp.broadcast_to(params["pos"], (B, N, D))
    if masks is not None:
        patches = apply_masks(patches, masks)                  # (nB, K, Cp_pad)
        pos = apply_masks(pos, masks)                          # (nB, K, D)
    Bx, T, _ = patches.shape
    # patch projection with the positional-embedding add fused in-kernel
    x = matmul_bias(patches.reshape(Bx * T, Cp_pad),
                    params["patch_w"], params["patch_b"],
                    add=pos.reshape(Bx * T, D), out_dtype=jnp.bfloat16)
    x = x.reshape(Bx, T, D)
    if last_k > 0:
        y, hsum = blocks_forward(x, params["w1"], params["b1"],
                                 params["w2"], params["b2"], last_k=last_k)
        return y, hsum
    y = blocks_forward(x, params["w1"], params["b1"], params["w2"], params["b2"])
    return y, None


def predictor_forward(z, masks_enc, masks_pred, params, B):
    Bz, K_enc, D = z.shape
    pd = params["p_in_w"].shape[1]
    N = params["p_pos"].shape[1]
    p_pos = jnp.broadcast_to(params["p_pos"], (B, N, pd))
    pos_ctx = apply_masks(p_pos, masks_enc)                    # (Bz, K_enc, pd)
    # fused: context-encoder final LN -> predictor input projection -> +pos
    zp = matmul_bias(z.reshape(Bz * K_enc, D), params["p_in_w"], params["p_in_b"],
                     pre_ln=True, add=pos_ctx.reshape(Bz * K_enc, pd),
                     out_dtype=jnp.bfloat16)
    zp = zp.reshape(Bz, K_enc, pd)
    pos_pred = apply_masks(p_pos, masks_pred)                  # (n_pred*B, K_pred, pd)
    pred_tok = (params["mask_tok"] + pos_pred).astype(zp.dtype)
    x = jnp.concatenate([zp, pred_tok], axis=1)                # (B, K_enc+K_pred, pd)
    x = blocks_forward(x, params["p_w1"], params["p_b1"],
                       params["p_w2"], params["p_b2"])
    x = x[:, K_enc:, :]                                        # keep predicted tokens
    Bx, T, _ = x.shape
    # fused: predictor final LN (per-token, so slice-then-LN == LN-then-slice)
    # -> output projection; f32 out for the loss.
    out = matmul_bias(x.reshape(Bx * T, pd), params["p_out_w"], params["p_out_b"],
                      pre_ln=True, out_dtype=jnp.float32)
    return out.reshape(Bx, T, D)


# ------------------------------- JEPA wrapper --------------------------------

def forward_target(imgs, masks_enc, masks_pred, params_t, args, P):
    # target encoder runs without gradients in the reference (no grad tracing here)
    if args.target_norm_type != "avg_ln":
        # TODO(synk): only the 'avg_ln' target-norm path is implemented (no in_avg_ln).
        raise NotImplementedError(args.target_norm_type)
    _, h_sum = encoder_forward(imgs, params_t, P, masks=None,
                               last_k=args.target_last_k)
    # apply_masks before the (per-token) LN: identical result, less LN work.
    h_sum = apply_masks(h_sum, masks_pred)
    Bm, K, D = h_sum.shape
    h = avg_layer_norm(h_sum.reshape(Bm * K, D), args.target_last_k)
    # is_mmb=True -> no repeat_interleave_batch
    return h.reshape(Bm, K, D)


def forward_context(imgs, masks_enc, masks_pred, params, P):
    B = imgs.shape[0]
    z, _ = encoder_forward(imgs, params, P, masks=masks_enc)
    z = predictor_forward(z, masks_enc, masks_pred, params, B)
    return z


def jepa_forward(data, args, params, params_target, P):
    imgs, masks_enc, masks_pred = data
    h = forward_target(imgs, masks_enc, masks_pred, params_target, args, P)
    z = forward_context(imgs, masks_enc, masks_pred, params, P)
    if args.loss_type == "l2":
        Bz, T, D = z.shape
        loss = mse_loss(z.reshape(Bz * T, D), h.reshape(Bz * T, D))
    else:
        # TODO(synk): smooth_l1 / unigrad loss paths not implemented.
        raise NotImplementedError(args.loss_type)
    # TODO(synk): AllReduce.apply is the identity on a single device.
    return loss


# ------------------------------ parameter init -------------------------------

def init_params(key, *, C, P, D, pd, depth, pred_depth, N):
    Cp = C * P * P
    Cp_pad = ((Cp + 127) // 128) * 128     # lane-align the patch-embed K dim

    def dense(k, fi, fo, fi_pad=None):
        k1, k2 = jax.random.split(k)
        lim = 1.0 / math.sqrt(fi)
        w = jax.random.uniform(k1, (fi, fo), jnp.float32, -lim, lim)
        if fi_pad is not None and fi_pad > fi:
            w = jnp.pad(w, ((0, fi_pad - fi), (0, 0)))
        b = jax.random.uniform(k2, (fo,), jnp.float32, -lim, lim)
        # weights stored bf16 for the MXU / halved weight DMA; biases stay f32
        return w.astype(jnp.bfloat16), b

    ks = iter(jax.random.split(key, 8 + 2 * (depth + pred_depth)))

    def stack_blocks(width, n):
        w1s, b1s, w2s, b2s = [], [], [], []
        for _ in range(n):
            w1, b1 = dense(next(ks), width, 4 * width)
            w2, b2 = dense(next(ks), 4 * width, width)
            w1s.append(w1); b1s.append(b1); w2s.append(w2); b2s.append(b2)
        return (jnp.stack(w1s), jnp.stack(b1s)[:, None, :],
                jnp.stack(w2s), jnp.stack(b2s)[:, None, :])

    patch_w, patch_b = dense(next(ks), Cp, D, fi_pad=Cp_pad)
    pos = 0.02 * jax.random.normal(next(ks), (1, N, D), jnp.float32)
    w1, b1, w2, b2 = stack_blocks(D, depth)
    p_in_w, p_in_b = dense(next(ks), D, pd)
    p_pos = 0.02 * jax.random.normal(next(ks), (1, N, pd), jnp.float32)
    mask_tok = 0.02 * jax.random.normal(next(ks), (1, 1, pd), jnp.float32)
    p_w1, p_b1, p_w2, p_b2 = stack_blocks(pd, pred_depth)
    p_out_w, p_out_b = dense(next(ks), pd, D)
    return dict(patch_w=patch_w, patch_b=patch_b, pos=pos,
                w1=w1, b1=b1, w2=w2, b2=b2,
                p_in_w=p_in_w, p_in_b=p_in_b, p_pos=p_pos, mask_tok=mask_tok,
                p_w1=p_w1, p_b1=p_b1, p_w2=p_w2, p_b2=p_b2,
                p_out_w=p_out_w, p_out_b=p_out_b)


# ----------------------------------- main ------------------------------------

if __name__ == "__main__":
    B, C, H, W = 2, 3, 16, 16
    P = 4
    D, pd = 128, 128                 # lane-dense feature axes (multiples of 128)
    N = (H // P) * (W // P)          # 16 tokens
    depth, pred_depth = 2, 1

    key = jax.random.PRNGKey(0)
    k_param, k_img = jax.random.split(key)
    params = init_params(k_param, C=C, P=P, D=D, pd=pd,
                         depth=depth, pred_depth=pred_depth, N=N)
    # target_encoder = deepcopy(encoder): identical (frozen) weights at init
    params_target = jax.tree_util.tree_map(jnp.array, params)

    imgs = jax.random.normal(k_img, (B, C, H, W), jnp.float32)
    # deterministic masks: per-sample kept-context indices and predicted indices
    masks_enc = [jnp.stack([jnp.arange(8, dtype=jnp.int32),
                            jnp.arange(8, dtype=jnp.int32) + 4])]     # (B, 8)
    masks_pred = [jnp.stack([jnp.arange(12, 16, dtype=jnp.int32),
                             jnp.arange(0, 4, dtype=jnp.int32)])]     # (B, 4)

    args = SimpleNamespace(target_last_k=2, target_norm_type="avg_ln",
                           loss_type="l2")

    fwd = jax.jit(lambda im, me, mp: jepa_forward((im, me, mp), args,
                                                  params, params_target, P))
    loss = fwd(imgs, masks_enc, masks_pred)
    jax.block_until_ready(loss)
    assert loss.shape == () and jnp.isfinite(loss)
    print("KERNEL_OK")
</pallas_src>

<mosaic_0001>
module attributes {stable_mosaic.version = 11 : i64} {
  func.func @_proj_kernel(%arg0: i32, %arg1: memref<16x128xf32, #tpu.memory_space<vmem>>, %arg2: memref<128x128xbf16, #tpu.memory_space<vmem>>, %arg3: memref<1x128xf32, #tpu.memory_space<vmem>>, %arg4: memref<16x128xf32, #tpu.memory_space<vmem>>, %arg5: memref<16x128xbf16, #tpu.memory_space<vmem>>) attributes {dimension_semantics = [#tpu.dimension_semantics<parallel>], iteration_bounds = array<i64: 2>, scalar_prefetch = 0 : i64, scratch_operands = 0 : i64, tpu.core_type = #tpu.core_type<tc>, window_params = [{transform_indices = @transform_0, window_bounds = array<i64: 16, 128>}, {pipeline_mode = #tpu.pipeline_mode<synchronous>, transform_indices = @transform_1, window_bounds = array<i64: 128, 128>}, {pipeline_mode = #tpu.pipeline_mode<synchronous>, transform_indices = @transform_2, window_bounds = array<i64: 1, 128>}, {transform_indices = @transform_3, window_bounds = array<i64: 16, 128>}, {transform_indices = @transform_4, window_bounds = array<i64: 16, 128>}]} {
    %c0 = arith.constant 0 : index
    %c0_0 = arith.constant 0 : index
    %0 = vector.load %arg1[%c0, %c0_0] : memref<16x128xf32, #tpu.memory_space<vmem>>, vector<16x128xf32>
    %1 = arith.truncf %0 : vector<16x128xf32> to vector<16x128xbf16>
    %c0_1 = arith.constant 0 : index
    %c0_2 = arith.constant 0 : index
    %2 = vector.load %arg2[%c0_1, %c0_2] : memref<128x128xbf16, #tpu.memory_space<vmem>>, vector<128x128xbf16>
    %cst = arith.constant dense<0.000000e+00> : vector<16x128xf32>
    %3 = tpu.matmul %1, %2, %cst {dimension_numbers = #tpu.dot_dimension_numbers<[1], [0], [0], [1], [0, 0, 1, 1], [], []>} : vector<16x128xbf16>, vector<128x128xbf16>, vector<16x128xf32> -> vector<16x128xf32>
    %c0_3 = arith.constant 0 : index
    %c0_4 = arith.constant 0 : index
    %4 = vector.load %arg3[%c0_3, %c0_4] : memref<1x128xf32, #tpu.memory_space<vmem>>, vector<1x128xf32>
    %5 = vector.broadcast %4 : vector<1x128xf32> to vector<16x128xf32>
    %6 = arith.addf %3, %5 : vector<16x128xf32>
    %c0_5 = arith.constant 0 : index
    %c0_6 = arith.constant 0 : index
    %7 = vector.load %arg4[%c0_5, %c0_6] : memref<16x128xf32, #tpu.memory_space<vmem>>, vector<16x128xf32>
    %8 = arith.addf %6, %7 : vector<16x128xf32>
    %9 = arith.truncf %8 : vector<16x128xf32> to vector<16x128xbf16>
    %c0_7 = arith.constant 0 : index
    %c0_8 = arith.constant 0 : index
    %10 = vector.load %arg5[%c0_7, %c0_8] : memref<16x128xbf16, #tpu.memory_space<vmem>>, vector<16x128xbf16>
    tpu.vector_store %arg5[%c0_7, %c0_8], %9 {strides = array<i32>} : memref<16x128xbf16, #tpu.memory_space<vmem>>, vector<16x128xbf16>,
    return
  }
  func.func @transform_0(%arg0: i32) -> (i32, i32) {
    %c0_i32 = arith.constant 0 : i32
    %c0_i32_0 = arith.constant 0 : i32
    return %arg0, %c0_i32 : i32, i32
  }
  func.func @transform_1(%arg0: i32) -> (i32, i32) {
    %c0_i32 = arith.constant 0 : i32
    %c0_i32_0 = arith.constant 0 : i32
    %c0_i32_1 = arith.constant 0 : i32
    return %c0_i32, %c0_i32_0 : i32, i32
  }
  func.func @transform_2(%arg0: i32) -> (i32, i32) {
    %c0_i32 = arith.constant 0 : i32
    %c0_i32_0 = arith.constant 0 : i32
    %c0_i32_1 = arith.constant 0 : i32
    return %c0_i32, %c0_i32_0 : i32, i32
  }
  func.func @transform_3(%arg0: i32) -> (i32, i32) {
    %c0_i32 = arith.constant 0 : i32
    %c0_i32_0 = arith.constant 0 : i32
    return %arg0, %c0_i32 : i32, i32
  }
  func.func @transform_4(%arg0: i32) -> (i32, i32) {
    %c0_i32 = arith.constant 0 : i32
    %c0_i32_0 = arith.constant 0 : i32
    return %arg0, %c0_i32 : i32, i32
  }
}

module attributes {stable_mosaic.version = 11 : i64} {
  func.func @_blocks_kernel(%arg0: i32, %arg1: i32, %arg2: memref<16x128xbf16, #tpu.memory_space<vmem>>, %arg3: memref<1x128x512xbf16, #tpu.memory_space<vmem>>, %arg4: memref<1x1x512xf32, #tpu.memory_space<vmem>>, %arg5: memref<1x512x128xbf16, #tpu.memory_space<vmem>>, %arg6: memref<1x1x128xf32, #tpu.memory_space<vmem>>, %arg7: memref<16x128xbf16, #tpu.memory_space<vmem>>, %arg8: memref<16x128xf32, #tpu.memory_space<vmem>>, %arg9: memref<16x128xf32, #tpu.memory_space<vmem>>) attributes {dimension_semantics = [#tpu.dimension_semantics<parallel>, #tpu.dimension_semantics<arbitrary>], iteration_bounds = array<i64: 2, 2>, scalar_prefetch = 0 : i64, scratch_operands = 1 : i64, tpu.core_type = #tpu.core_type<tc>, window_params = [{transform_indices = @transform_0, window_bounds = array<i64: 16, 128>}, {transform_indices = @transform_1, window_bounds = array<i64: 1, 128, 512>}, {transform_indices = @transform_2, window_bounds = array<i64: 1, 1, 512>}, {transform_indices = @transform_3, window_bounds = array<i64: 1, 512, 128>}, {transform_indices = @transform_4, window_bounds = array<i64: 1, 1, 128>}, {transform_indices = @transform_5, window_bounds = array<i64: 16, 128>}, {transform_indices = @transform_6, window_bounds = array<i64: 16, 128>}]} {
    %c0_i32 = arith.constant 0 : i32
    %0 = arith.cmpi eq, %arg1, %c0_i32 : i32
    %1 = arith.extui %0 : i1 to i32
    %c0_i32_0 = arith.constant 0 : i32
    %2 = arith.cmpi ne, %1, %c0_i32_0 : i32
    scf.if %2 {
      %c0_31 = arith.constant 0 : index
      %c0_32 = arith.constant 0 : index
      %62 = vector.load %arg2[%c0_31, %c0_32] : memref<16x128xbf16, #tpu.memory_space<vmem>>, vector<16x128xbf16>
      %63 = arith.extf %62 : vector<16x128xbf16> to vector<16x128xf32>
      %c0_33 = arith.constant 0 : index
      %c0_34 = arith.constant 0 : index
      %64 = vector.load %arg9[%c0_33, %c0_34] : memref<16x128xf32, #tpu.memory_space<vmem>>, vector<16x128xf32>
      tpu.vector_store %arg9[%c0_33, %c0_34], %63 {strides = array<i32>} : memref<16x128xf32, #tpu.memory_space<vmem>>, vector<16x128xf32>,
    } else {
    }
    %c0 = arith.constant 0 : index
    %c0_1 = arith.constant 0 : index
    %3 = vector.load %arg9[%c0, %c0_1] : memref<16x128xf32, #tpu.memory_space<vmem>>, vector<16x128xf32>
    %cst = arith.constant dense<0.000000e+00> : vector<16xf32>
    %4 = vector.multi_reduction <add>, %3, %cst [1] : vector<16x128xf32> to vector<16xf32>
    %5 = vector.shape_cast %4 : vector<16xf32> to vector<16x1xf32>
    %cst_2 = arith.constant 1.280000e+02 : f32
    %6 = vector.broadcast %cst_2 : f32 to vector<16x1xf32>
    %7 = arith.divf %5, %6 : vector<16x1xf32>
    %8 = vector.broadcast %7 : vector<16x1xf32> to vector<16x128xf32>
    %9 = arith.subf %3, %8 : vector<16x128xf32>
    %10 = arith.mulf %9, %9 : vector<16x128xf32>
    %cst_3 = arith.constant dense<0.000000e+00> : vector<16xf32>
    %11 = vector.multi_reduction <add>, %10, %cst_3 [1] : vector<16x128xf32> to vector<16xf32>
    %12 = vector.shape_cast %11 : vector<16xf32> to vector<16x1xf32>
    %cst_4 = arith.constant 1.280000e+02 : f32
    %13 = vector.broadcast %cst_4 : f32 to vector<16x1xf32>
    %14 = arith.divf %12, %13 : vector<16x1xf32>
    %15 = vector.broadcast %7 : vector<16x1xf32> to vector<16x128xf32>
    %16 = arith.subf %3, %15 : vector<16x128xf32>
    %cst_5 = arith.constant 9.99999974E-6 : f32
    %17 = vector.broadcast %cst_5 : f32 to vector<16x1xf32>
    %18 = arith.addf %14, %17 : vector<16x1xf32>
    %19 = math.rsqrt %18 : vector<16x1xf32>
    %20 = vector.broadcast %19 : vector<16x1xf32> to vector<16x128xf32>
    %21 = arith.mulf %16, %20 : vector<16x128xf32>
    %22 = arith.truncf %21 : vector<16x128xf32> to vector<16x128xbf16>
    %c0_6 = arith.constant 0 : index
    %c0_7 = arith.constant 0 : index
    %c0_8 = arith.constant 0 : index
    %23 = vector.load %arg3[%c0_6, %c0_7, %c0_8] : memref<1x128x512xbf16, #tpu.memory_space<vmem>>, vector<1x128x512xbf16>
    %24 = vector.shape_cast %23 : vector<1x128x512xbf16> to vector<128x512xbf16>
    %cst_9 = arith.constant dense<0.000000e+00> : vector<16x512xf32>
    %25 = tpu.matmul %22, %24, %cst_9 {dimension_numbers = #tpu.dot_dimension_numbers<[1], [0], [0], [1], [0, 0, 1, 1], [], []>} : vector<16x128xbf16>, vector<128x512xbf16>, vector<16x512xf32> -> vector<16x512xf32>
    %c0_10 = arith.constant 0 : index
    %c0_11 = arith.constant 0 : index
    %c0_12 = arith.constant 0 : index
    %26 = vector.load %arg4[%c0_10, %c0_11, %c0_12] : memref<1x1x512xf32, #tpu.memory_space<vmem>>, vector<1x1x512xf32>
    %27 = vector.shape_cast %26 : vector<1x1x512xf32> to vector<1x512xf32>
    %28 = vector.broadcast %27 : vector<1x512xf32> to vector<16x512xf32>
    %29 = arith.addf %25, %28 : vector<16x512xf32>
    %30 = arith.mulf %29, %29 : vector<16x512xf32>
    %31 = arith.mulf %29, %30 : vector<16x512xf32>
    %cst_13 = arith.constant 4.471500e-02 : f32
    %32 = vector.broadcast %cst_13 : f32 to vector<16x512xf32>
    %33 = arith.mulf %32, %31 : vector<16x512xf32>
    %34 = arith.addf %29, %33 : vector<16x512xf32>
    %cst_14 = arith.constant 0.797884583 : f32
    %35 = vector.broadcast %cst_14 : f32 to vector<16x512xf32>
    %36 = arith.mulf %35, %34 : vector<16x512xf32>
    %37 = math.tanh %36 : vector<16x512xf32>
    %cst_15 = arith.constant 1.000000e+00 : f32
    %38 = vector.broadcast %cst_15 : f32 to vector<16x512xf32>
    %39 = arith.addf %38, %37 : vector<16x512xf32>
    %cst_16 = arith.constant 5.000000e-01 : f32
    %40 = vector.broadcast %cst_16 : f32 to vector<16x512xf32>
    %41 = arith.mulf %40, %39 : vector<16x512xf32>
    %42 = arith.mulf %29, %41 : vector<16x512xf32>
    %43 = arith.truncf %42 : vector<16x512xf32> to vector<16x512xbf16>
    %c0_17 = arith.constant 0 : index
    %c0_18 = arith.constant 0 : index
    %c0_19 = arith.constant 0 : index
    %44 = vector.load %arg5[%c0_17, %c0_18, %c0_19] : memref<1x512x128xbf16, #tpu.memory_space<vmem>>, vector<1x512x128xbf16>
    %45 = vector.shape_cast %44 : vector<1x512x128xbf16> to vector<512x128xbf16>
    %cst_20 = arith.constant dense<0.000000e+00> : vector<16x128xf32>
    %46 = tpu.matmul %43, %45, %cst_20 {dimension_numbers = #tpu.dot_dimension_numbers<[1], [0], [0], [1], [0, 0, 1, 1], [], []>} : vector<16x512xbf16>, vector<512x128xbf16>, vector<16x128xf32> -> vector<16x128xf32>
    %c0_21 = arith.constant 0 : index
    %c0_22 = arith.constant 0 : index
    %c0_23 = arith.constant 0 : index
    %47 = vector.load %arg6[%c0_21, %c0_22, %c0_23] : memref<1x1x128xf32, #tpu.memory_space<vmem>>, vector<1x1x128xf32>
    %48 = vector.shape_cast %47 : vector<1x1x128xf32> to vector<1x128xf32>
    %49 = vector.broadcast %48 : vector<1x128xf32> to vector<16x128xf32>
    %50 = arith.addf %46, %49 : vector<16x128xf32>
    %51 = arith.addf %3, %50 : vector<16x128xf32>
    %c0_24 = arith.constant 0 : index
    %c0_25 = arith.constant 0 : index
    %52 = vector.load %arg9[%c0_24, %c0_25] : memref<16x128xf32, #tpu.memory_space<vmem>>, vector<16x128xf32>
    tpu.vector_store %arg9[%c0_24, %c0_25], %51 {strides = array<i32>} : memref<16x128xf32, #tpu.memory_space<vmem>>, vector<16x128xf32>,
    %c0_i32_26 = arith.constant 0 : i32
    %53 = arith.cmpi eq, %arg1, %c0_i32_26 : i32
    %54 = arith.extui %53 : i1 to i32
    %c0_i32_27 = arith.constant 0 : i32
    %55 = arith.cmpi ne, %54, %c0_i32_27 : i32
    scf.if %55 {
      %c0_31 = arith.constant 0 : index
      %c0_32 = arith.constant 0 : index
      %62 = vector.load %arg8[%c0_31, %c0_32] : memref<16x128xf32, #tpu.memory_space<vmem>>, vector<16x128xf32>
      tpu.vector_store %arg8[%c0_31, %c0_32], %51 {strides = array<i32>} : memref<16x128xf32, #tpu.memory_space<vmem>>, vector<16x128xf32>,
    } else {
    }
    %c0_i32_28 = arith.constant 0 : i32
    %56 = arith.cmpi sgt, %arg1, %c0_i32_28 : i32
    %57 = arith.extui %56 : i1 to i32
    %c0_i32_29 = arith.constant 0 : i32
    %58 = arith.cmpi ne, %57, %c0_i32_29 : i32
    scf.if %58 {
      %c0_31 = arith.constant 0 : index
      %c0_32 = arith.constant 0 : index
      %62 = vector.load %arg8[%c0_31, %c0_32] : memref<16x128xf32, #tpu.memory_space<vmem>>, vector<16x128xf32>
      %63 = arith.addf %62, %51 : vector<16x128xf32>
      %c0_33 = arith.constant 0 : index
      %c0_34 = arith.constant 0 : index
      %64 = vector.load %arg8[%c0_33, %c0_34] : memref<16x128xf32, #tpu.memory_space<vmem>>, vector<16x128xf32>
      tpu.vector_store %arg8[%c0_33, %c0_34], %63 {strides = array<i32>} : memref<16x128xf32, #tpu.memory_space<vmem>>, vector<16x128xf32>,
    } else {
    }
    %c1_i32 = arith.constant 1 : i32
    %59 = arith.cmpi eq, %arg1, %c1_i32 : i32
    %60 = arith.extui %59 : i1 to i32
    %c0_i32_30 = arith.constant 0 : i32
    %61 = arith.cmpi ne, %60, %c0_i32_30 : i32
    scf.if %61 {
      %62 = arith.truncf %51 : vector<16x128xf32> to vector<16x128xbf16>
      %c0_31 = arith.constant 0 : index
      %c0_32 = arith.constant 0 : index
      %63 = vector.load %arg7[%c0_31, %c0_32] : memref<16x128xbf16, #tpu.memory_space<vmem>>, vector<16x128xbf16>
      tpu.vector_store %arg7[%c0_31, %c0_32], %62 {strides = array<i32>} : memref<16x128xbf16, #tpu.memory_space<vmem>>, vector<16x128xbf16>,
    } else {
    }
    return
  }
  func.func @transform_0(%arg0: i32, %arg1: i32) -> (i32, i32) {
    %c0_i32 = arith.constant 0 : i32
    %c0_i32_0 = arith.constant 0 : i32
    return %arg0, %c0_i32 : i32, i32
  }
  func.func @transform_1(%arg0: i32, %arg1: i32) -> (i32, i32, i32) {
    %c0_i32 = arith.constant 0 : i32
    %c0_i32_0 = arith.constant 0 : i32
    %c0_i32_1 = arith.constant 0 : i32
    return %arg1, %c0_i32, %c0_i32_0 : i32, i32, i32
  }
  func.func @transform_2(%arg0: i32, %arg1: i32) -> (i32, i32, i32) {
    %c0_i32 = arith.constant 0 : i32
    %c0_i32_0 = arith.constant 0 : i32
    %c0_i32_1 = arith.constant 0 : i32
    return %arg1, %c0_i32, %c0_i32_0 : i32, i32, i32
  }
  func.func @transform_3(%arg0: i32, %arg1: i32) -> (i32, i32, i32) {
    %c0_i32 = arith.constant 0 : i32
    %c0_i32_0 = arith.constant 0 : i32
    %c0_i32_1 = arith.constant 0 : i32
    return %arg1, %c0_i32, %c0_i32_0 : i32, i32, i32
  }
  func.func @transform_4(%arg0: i32, %arg1: i32) -> (i32, i32, i32) {
    %c0_i32 = arith.constant 0 : i32
    %c0_i32_0 = arith.constant 0 : i32
    %c0_i32_1 = arith.constant 0 : i32
    return %arg1, %c0_i32, %c0_i32_0 : i32, i32, i32
  }
  func.func @transform_5(%arg0: i32, %arg1: i32) -> (i32, i32) {
    %c0_i32 = arith.constant 0 : i32
    %c0_i32_0 = arith.constant 0 : i32
    return %arg0, %c0_i32 : i32, i32
  }
  func.func @transform_6(%arg0: i32, %arg1: i32) -> (i32, i32) {
    %c0_i32 = arith.constant 0 : i32
    %c0_i32_0 = arith.constant 0 : i32
    return %arg0, %c0_i32 : i32, i32
  }
}

module attributes {stable_mosaic.version = 11 : i64} {
  func.func @_proj_kernel(%arg0: i32, %arg1: memref<16x128xf32, #tpu.memory_space<vmem>>, %arg2: memref<128x128xbf16, #tpu.memory_space<vmem>>, %arg3: memref<1x128xf32, #tpu.memory_space<vmem>>, %arg4: memref<16x128xf32, #tpu.memory_space<vmem>>, %arg5: memref<16x128xbf16, #tpu.memory_space<vmem>>) attributes {dimension_semantics = [#tpu.dimension_semantics<parallel>], iteration_bounds = array<i64: 1>, scalar_prefetch = 0 : i64, scratch_operands = 0 : i64, tpu.core_type = #tpu.core_type<tc>, window_params = [{transform_indices = @transform_0, window_bounds = array<i64: 16, 128>}, {pipeline_mode = #tpu.pipeline_mode<synchronous>, transform_indices = @transform_1, window_bounds = array<i64: 128, 128>}, {pipeline_mode = #tpu.pipeline_mode<synchronous>, transform_indices = @transform_2, window_bounds = array<i64: 1, 128>}, {transform_indices = @transform_3, window_bounds = array<i64: 16, 128>}, {transform_indices = @transform_4, window_bounds = array<i64: 16, 128>}]} {
    %c0 = arith.constant 0 : index
    %c0_0 = arith.constant 0 : index
    %0 = vector.load %arg1[%c0, %c0_0] : memref<16x128xf32, #tpu.memory_space<vmem>>, vector<16x128xf32>
    %1 = arith.truncf %0 : vector<16x128xf32> to vector<16x128xbf16>
    %c0_1 = arith.constant 0 : index
    %c0_2 = arith.constant 0 : index
    %2 = vector.load %arg2[%c0_1, %c0_2] : memref<128x128xbf16, #tpu.memory_space<vmem>>, vector<128x128xbf16>
    %cst = arith.constant dense<0.000000e+00> : vector<16x128xf32>
    %3 = tpu.matmul %1, %2, %cst {dimension_numbers = #tpu.dot_dimension_numbers<[1], [0], [0], [1], [0, 0, 1, 1], [], []>} : vector<16x128xbf16>, vector<128x128xbf16>, vector<16x128xf32> -> vector<16x128xf32>
    %c0_3 = arith.constant 0 : index
    %c0_4 = arith.constant 0 : index
    %4 = vector.load %arg3[%c0_3, %c0_4] : memref<1x128xf32, #tpu.memory_space<vmem>>, vector<1x128xf32>
    %5 = vector.broadcast %4 : vector<1x128xf32> to vector<16x128xf32>
    %6 = arith.addf %3, %5 : vector<16x128xf32>
    %c0_5 = arith.constant 0 : index
    %c0_6 = arith.constant 0 : index
    %7 = vector.load %arg4[%c0_5, %c0_6] : memref<16x128xf32, #tpu.memory_space<vmem>>, vector<16x128xf32>
    %8 = arith.addf %6, %7 : vector<16x128xf32>
    %9 = arith.truncf %8 : vector<16x128xf32> to vector<16x128xbf16>
    %c0_7 = arith.constant 0 : index
    %c0_8 = arith.constant 0 : index
    %10 = vector.load %arg5[%c0_7, %c0_8] : memref<16x128xbf16, #tpu.memory_space<vmem>>, vector<16x128xbf16>
    tpu.vector_store %arg5[%c0_7, %c0_8], %9 {strides = array<i32>} : memref<16x128xbf16, #tpu.memory_space<vmem>>, vector<16x128xbf16>,
    return
  }
  func.func @transform_0(%arg0: i32) -> (i32, i32) {
    %c0_i32 = arith.constant 0 : i32
    %c0_i32_0 = arith.constant 0 : i32
    return %arg0, %c0_i32 : i32, i32
  }
  func.func @transform_1(%arg0: i32) -> (i32, i32) {
    %c0_i32 = arith.constant 0 : i32
    %c0_i32_0 = arith.constant 0 : i32
    %c0_i32_1 = arith.constant 0 : i32
    return %c0_i32, %c0_i32_0 : i32, i32
  }
  func.func @transform_2(%arg0: i32) -> (i32, i32) {
    %c0_i32 = arith.constant 0 : i32
    %c0_i32_0 = arith.constant 0 : i32
    %c0_i32_1 = arith.constant 0 : i32
    return %c0_i32, %c0_i32_0 : i32, i32
  }
  func.func @transform_3(%arg0: i32) -> (i32, i32) {
    %c0_i32 = arith.constant 0 : i32
    %c0_i32_0 = arith.constant 0 : i32
    return %arg0, %c0_i32 : i32, i32
  }
  func.func @transform_4(%arg0: i32) -> (i32, i32) {
    %c0_i32 = arith.constant 0 : i32
    %c0_i32_0 = arith.constant 0 : i32
    return %arg0, %c0_i32 : i32, i32
  }
}

module attributes {stable_mosaic.version = 11 : i64} {
  func.func @_blocks_kernel(%arg0: i32, %arg1: i32, %arg2: memref<16x128xbf16, #tpu.memory_space<vmem>>, %arg3: memref<1x128x512xbf16, #tpu.memory_space<vmem>>, %arg4: memref<1x1x512xf32, #tpu.memory_space<vmem>>, %arg5: memref<1x512x128xbf16, #tpu.memory_space<vmem>>, %arg6: memref<1x1x128xf32, #tpu.memory_space<vmem>>, %arg7: memref<16x128xbf16, #tpu.memory_space<vmem>>, %arg8: memref<16x128xf32, #tpu.memory_space<vmem>>) attributes {dimension_semantics = [#tpu.dimension_semantics<parallel>, #tpu.dimension_semantics<arbitrary>], iteration_bounds = array<i64: 1, 2>, scalar_prefetch = 0 : i64, scratch_operands = 1 : i64, tpu.core_type = #tpu.core_type<tc>, window_params = [{transform_indices = @transform_0, window_bounds = array<i64: 16, 128>}, {transform_indices = @transform_1, window_bounds = array<i64: 1, 128, 512>}, {transform_indices = @transform_2, window_bounds = array<i64: 1, 1, 512>}, {transform_indices = @transform_3, window_bounds = array<i64: 1, 512, 128>}, {transform_indices = @transform_4, window_bounds = array<i64: 1, 1, 128>}, {transform_indices = @transform_5, window_bounds = array<i64: 16, 128>}]} {
    %c0_i32 = arith.constant 0 : i32
    %0 = arith.cmpi eq, %arg1, %c0_i32 : i32
    %1 = arith.extui %0 : i1 to i32
    %c0_i32_0 = arith.constant 0 : i32
    %2 = arith.cmpi ne, %1, %c0_i32_0 : i32
    scf.if %2 {
      %c0_27 = arith.constant 0 : index
      %c0_28 = arith.constant 0 : index
      %56 = vector.load %arg2[%c0_27, %c0_28] : memref<16x128xbf16, #tpu.memory_space<vmem>>, vector<16x128xbf16>
      %57 = arith.extf %56 : vector<16x128xbf16> to vector<16x128xf32>
      %c0_29 = arith.constant 0 : index
      %c0_30 = arith.constant 0 : index
      %58 = vector.load %arg8[%c0_29, %c0_30] : memref<16x128xf32, #tpu.memory_space<vmem>>, vector<16x128xf32>
      tpu.vector_store %arg8[%c0_29, %c0_30], %57 {strides = array<i32>} : memref<16x128xf32, #tpu.memory_space<vmem>>, vector<16x128xf32>,
    } else {
    }
    %c0 = arith.constant 0 : index
    %c0_1 = arith.constant 0 : index
    %3 = vector.load %arg8[%c0, %c0_1] : memref<16x128xf32, #tpu.memory_space<vmem>>, vector<16x128xf32>
    %cst = arith.constant dense<0.000000e+00> : vector<16xf32>
    %4 = vector.multi_reduction <add>, %3, %cst [1] : vector<16x128xf32> to vector<16xf32>
    %5 = vector.shape_cast %4 : vector<16xf32> to vector<16x1xf32>
    %cst_2 = arith.constant 1.280000e+02 : f32
    %6 = vector.broadcast %cst_2 : f32 to vector<16x1xf32>
    %7 = arith.divf %5, %6 : vector<16x1xf32>
    %8 = vector.broadcast %7 : vector<16x1xf32> to vector<16x128xf32>
    %9 = arith.subf %3, %8 : vector<16x128xf32>
    %10 = arith.mulf %9, %9 : vector<16x128xf32>
    %cst_3 = arith.constant dense<0.000000e+00> : vector<16xf32>
    %11 = vector.multi_reduction <add>, %10, %cst_3 [1] : vector<16x128xf32> to vector<16xf32>
    %12 = vector.shape_cast %11 : vector<16xf32> to vector<16x1xf32>
    %cst_4 = arith.constant 1.280000e+02 : f32
    %13 = vector.broadcast %cst_4 : f32 to vector<16x1xf32>
    %14 = arith.divf %12, %13 : vector<16x1xf32>
    %15 = vector.broadcast %7 : vector<16x1xf32> to vector<16x128xf32>
    %16 = arith.subf %3, %15 : vector<16x128xf32>
    %cst_5 = arith.constant 9.99999974E-6 : f32
    %17 = vector.broadcast %cst_5 : f32 to vector<16x1xf32>
    %18 = arith.addf %14, %17 : vector<16x1xf32>
    %19 = math.rsqrt %18 : vector<16x1xf32>
    %20 = vector.broadcast %19 : vector<16x1xf32> to vector<16x128xf32>
    %21 = arith.mulf %16, %20 : vector<16x128xf32>
    %22 = arith.truncf %21 : vector<16x128xf32> to vector<16x128xbf16>
    %c0_6 = arith.constant 0 : index
    %c0_7 = arith.constant 0 : index
    %c0_8 = arith.constant 0 : index
    %23 = vector.load %arg3[%c0_6, %c0_7, %c0_8] : memref<1x128x512xbf16, #tpu.memory_space<vmem>>, vector<1x128x512xbf16>
    %24 = vector.shape_cast %23 : vector<1x128x512xbf16> to vector<128x512xbf16>
    %cst_9 = arith.constant dense<0.000000e+00> : vector<16x512xf32>
    %25 = tpu.matmul %22, %24, %cst_9 {dimension_numbers = #tpu.dot_dimension_numbers<[1], [0], [0], [1], [0, 0, 1, 1], [], []>} : vector<16x128xbf16>, vector<128x512xbf16>, vector<16x512xf32> -> vector<16x512xf32>
    %c0_10 = arith.constant 0 : index
    %c0_11 = arith.constant 0 : index
    %c0_12 = arith.constant 0 : index
    %26 = vector.load %arg4[%c0_10, %c0_11, %c0_12] : memref<1x1x512xf32, #tpu.memory_space<vmem>>, vector<1x1x512xf32>
    %27 = vector.shape_cast %26 : vector<1x1x512xf32> to vector<1x512xf32>
    %28 = vector.broadcast %27 : vector<1x512xf32> to vector<16x512xf32>
    %29 = arith.addf %25, %28 : vector<16x512xf32>
    %30 = arith.mulf %29, %29 : vector<16x512xf32>
    %31 = arith.mulf %29, %30 : vector<16x512xf32>
    %cst_13 = arith.constant 4.471500e-02 : f32
    %32 = vector.broadcast %cst_13 : f32 to vector<16x512xf32>
    %33 = arith.mulf %32, %31 : vector<16x512xf32>
    %34 = arith.addf %29, %33 : vector<16x512xf32>
    %cst_14 = arith.constant 0.797884583 : f32
    %35 = vector.broadcast %cst_14 : f32 to vector<16x512xf32>
    %36 = arith.mulf %35, %34 : vector<16x512xf32>
    %37 = math.tanh %36 : vector<16x512xf32>
    %cst_15 = arith.constant 1.000000e+00 : f32
    %38 = vector.broadcast %cst_15 : f32 to vector<16x512xf32>
    %39 = arith.addf %38, %37 : vector<16x512xf32>
    %cst_16 = arith.constant 5.000000e-01 : f32
    %40 = vector.broadcast %cst_16 : f32 to vector<16x512xf32>
    %41 = arith.mulf %40, %39 : vector<16x512xf32>
    %42 = arith.mulf %29, %41 : vector<16x512xf32>
    %43 = arith.truncf %42 : vector<16x512xf32> to vector<16x512xbf16>
    %c0_17 = arith.constant 0 : index
    %c0_18 = arith.constant 0 : index
    %c0_19 = arith.constant 0 : index
    %44 = vector.load %arg5[%c0_17, %c0_18, %c0_19] : memref<1x512x128xbf16, #tpu.memory_space<vmem>>, vector<1x512x128xbf16>
    %45 = vector.shape_cast %44 : vector<1x512x128xbf16> to vector<512x128xbf16>
    %cst_20 = arith.constant dense<0.000000e+00> : vector<16x128xf32>
    %46 = tpu.matmul %43, %45, %cst_20 {dimension_numbers = #tpu.dot_dimension_numbers<[1], [0], [0], [1], [0, 0, 1, 1], [], []>} : vector<16x512xbf16>, vector<512x128xbf16>, vector<16x128xf32> -> vector<16x128xf32>
    %c0_21 = arith.constant 0 : index
    %c0_22 = arith.constant 0 : index
    %c0_23 = arith.constant 0 : index
    %47 = vector.load %arg6[%c0_21, %c0_22, %c0_23] : memref<1x1x128xf32, #tpu.memory_space<vmem>>, vector<1x1x128xf32>
    %48 = vector.shape_cast %47 : vector<1x1x128xf32> to vector<1x128xf32>
    %49 = vector.broadcast %48 : vector<1x128xf32> to vector<16x128xf32>
    %50 = arith.addf %46, %49 : vector<16x128xf32>
    %51 = arith.addf %3, %50 : vector<16x128xf32>
    %c0_24 = arith.constant 0 : index
    %c0_25 = arith.constant 0 : index
    %52 = vector.load %arg8[%c0_24, %c0_25] : memref<16x128xf32, #tpu.memory_space<vmem>>, vector<16x128xf32>
    tpu.vector_store %arg8[%c0_24, %c0_25], %51 {strides = array<i32>} : memref<16x128xf32, #tpu.memory_space<vmem>>, vector<16x128xf32>,
    %c1_i32 = arith.constant 1 : i32
    %53 = arith.cmpi eq, %arg1, %c1_i32 : i32
    %54 = arith.extui %53 : i1 to i32
    %c0_i32_26 = arith.constant 0 : i32
    %55 = arith.cmpi ne, %54, %c0_i32_26 : i32
    scf.if %55 {
      %56 = arith.truncf %51 : vector<16x128xf32> to vector<16x128xbf16>
      %c0_27 = arith.constant 0 : index
      %c0_28 = arith.constant 0 : index
      %57 = vector.load %arg7[%c0_27, %c0_28] : memref<16x128xbf16, #tpu.memory_space<vmem>>, vector<16x128xbf16>
      tpu.vector_store %arg7[%c0_27, %c0_28], %56 {strides = array<i32>} : memref<16x128xbf16, #tpu.memory_space<vmem>>, vector<16x128xbf16>,
    } else {
    }
    return
  }
  func.func @transform_0(%arg0: i32, %arg1: i32) -> (i32, i32) {
    %c0_i32 = arith.constant 0 : i32
    %c0_i32_0 = arith.constant 0 : i32
    return %arg0, %c0_i32 : i32, i32
  }
  func.func @transform_1(%arg0: i32, %arg1: i32) -> (i32, i32, i32) {
    %c0_i32 = arith.constant 0 : i32
    %c0_i32_0 = arith.constant 0 : i32
    %c0_i32_1 = arith.constant 0 : i32
    return %arg1, %c0_i32, %c0_i32_0 : i32, i32, i32
  }
  func.func @transform_2(%arg0: i32, %arg1: i32) -> (i32, i32, i32) {
    %c0_i32 = arith.constant 0 : i32
    %c0_i32_0 = arith.constant 0 : i32
    %c0_i32_1 = arith.constant 0 : i32
    return %arg1, %c0_i32, %c0_i32_0 : i32, i32, i32
  }
  func.func @transform_3(%arg0: i32, %arg1: i32) -> (i32, i32, i32) {
    %c0_i32 = arith.constant 0 : i32
    %c0_i32_0 = arith.constant 0 : i32
    %c0_i32_1 = arith.constant 0 : i32
    return %arg1, %c0_i32, %c0_i32_0 : i32, i32, i32
  }
  func.func @transform_4(%arg0: i32, %arg1: i32) -> (i32, i32, i32) {
    %c0_i32 = arith.constant 0 : i32
    %c0_i32_0 = arith.constant 0 : i32
    %c0_i32_1 = arith.constant 0 : i32
    return %arg1, %c0_i32, %c0_i32_0 : i32, i32, i32
  }
  func.func @transform_5(%arg0: i32, %arg1: i32) -> (i32, i32) {
    %c0_i32 = arith.constant 0 : i32
    %c0_i32_0 = arith.constant 0 : i32
    return %arg0, %c0_i32 : i32, i32
  }
}

module attributes {stable_mosaic.version = 11 : i64} {
  func.func @_proj_kernel(%arg0: i32, %arg1: memref<16x128xbf16, #tpu.memory_space<vmem>>, %arg2: memref<128x128xbf16, #tpu.memory_space<vmem>>, %arg3: memref<1x128xf32, #tpu.memory_space<vmem>>, %arg4: memref<16x128xf32, #tpu.memory_space<vmem>>, %arg5: memref<16x128xbf16, #tpu.memory_space<vmem>>) attributes {dimension_semantics = [#tpu.dimension_semantics<parallel>], iteration_bounds = array<i64: 1>, scalar_prefetch = 0 : i64, scratch_operands = 0 : i64, tpu.core_type = #tpu.core_type<tc>, window_params = [{transform_indices = @transform_0, window_bounds = array<i64: 16, 128>}, {pipeline_mode = #tpu.pipeline_mode<synchronous>, transform_indices = @transform_1, window_bounds = array<i64: 128, 128>}, {pipeline_mode = #tpu.pipeline_mode<synchronous>, transform_indices = @transform_2, window_bounds = array<i64: 1, 128>}, {transform_indices = @transform_3, window_bounds = array<i64: 16, 128>}, {transform_indices = @transform_4, window_bounds = array<i64: 16, 128>}]} {
    %c0 = arith.constant 0 : index
    %c0_0 = arith.constant 0 : index
    %0 = vector.load %arg1[%c0, %c0_0] : memref<16x128xbf16, #tpu.memory_space<vmem>>, vector<16x128xbf16>
    %1 = arith.extf %0 : vector<16x128xbf16> to vector<16x128xf32>
    %cst = arith.constant dense<0.000000e+00> : vector<16xf32>
    %2 = vector.multi_reduction <add>, %1, %cst [1] : vector<16x128xf32> to vector<16xf32>
    %3 = vector.shape_cast %2 : vector<16xf32> to vector<16x1xf32>
    %cst_1 = arith.constant 1.280000e+02 : f32
    %4 = vector.broadcast %cst_1 : f32 to vector<16x1xf32>
    %5 = arith.divf %3, %4 : vector<16x1xf32>
    %6 = vector.broadcast %5 : vector<16x1xf32> to vector<16x128xf32>
    %7 = arith.subf %1, %6 : vector<16x128xf32>
    %8 = arith.mulf %7, %7 : vector<16x128xf32>
    %cst_2 = arith.constant dense<0.000000e+00> : vector<16xf32>
    %9 = vector.multi_reduction <add>, %8, %cst_2 [1] : vector<16x128xf32> to vector<16xf32>
    %10 = vector.shape_cast %9 : vector<16xf32> to vector<16x1xf32>
    %cst_3 = arith.constant 1.280000e+02 : f32
    %11 = vector.broadcast %cst_3 : f32 to vector<16x1xf32>
    %12 = arith.divf %10, %11 : vector<16x1xf32>
    %13 = vector.broadcast %5 : vector<16x1xf32> to vector<16x128xf32>
    %14 = arith.subf %1, %13 : vector<16x128xf32>
    %cst_4 = arith.constant 9.99999974E-6 : f32
    %15 = vector.broadcast %cst_4 : f32 to vector<16x1xf32>
    %16 = arith.addf %12, %15 : vector<16x1xf32>
    %17 = math.rsqrt %16 : vector<16x1xf32>
    %18 = vector.broadcast %17 : vector<16x1xf32> to vector<16x128xf32>
    %19 = arith.mulf %14, %18 : vector<16x128xf32>
    %20 = arith.truncf %19 : vector<16x128xf32> to vector<16x128xbf16>
    %c0_5 = arith.constant 0 : index
    %c0_6 = arith.constant 0 : index
    %21 = vector.load %arg2[%c0_5, %c0_6] : memref<128x128xbf16, #tpu.memory_space<vmem>>, vector<128x128xbf16>
    %cst_7 = arith.constant dense<0.000000e+00> : vector<16x128xf32>
    %22 = tpu.matmul %20, %21, %cst_7 {dimension_numbers = #tpu.dot_dimension_numbers<[1], [0], [0], [1], [0, 0, 1, 1], [], []>} : vector<16x128xbf16>, vector<128x128xbf16>, vector<16x128xf32> -> vector<16x128xf32>
    %c0_8 = arith.constant 0 : index
    %c0_9 = arith.constant 0 : index
    %23 = vector.load %arg3[%c0_8, %c0_9] : memref<1x128xf32, #tpu.memory_space<vmem>>, vector<1x128xf32>
    %24 = vector.broadcast %23 : vector<1x128xf32> to vector<16x128xf32>
    %25 = arith.addf %22, %24 : vector<16x128xf32>
    %c0_10 = arith.constant 0 : index
    %c0_11 = arith.constant 0 : index
    %26 = vector.load %arg4[%c0_10, %c0_11] : memref<16x128xf32, #tpu.memory_space<vmem>>, vector<16x128xf32>
    %27 = arith.addf %25, %26 : vector<16x128xf32>
    %28 = arith.truncf %27 : vector<16x128xf32> to vector<16x128xbf16>
    %c0_12 = arith.constant 0 : index
    %c0_13 = arith.constant 0 : index
    %29 = vector.load %arg5[%c0_12, %c0_13] : memref<16x128xbf16, #tpu.memory_space<vmem>>, vector<16x128xbf16>
    tpu.vector_store %arg5[%c0_12, %c0_13], %28 {strides = array<i32>} : memref<16x128xbf16, #tpu.memory_space<vmem>>, vector<16x128xbf16>,
    return
  }
  func.func @transform_0(%arg0: i32) -> (i32, i32) {
    %c0_i32 = arith.constant 0 : i32
    %c0_i32_0 = arith.constant 0 : i32
    return %arg0, %c0_i32 : i32, i32
  }
  func.func @transform_1(%arg0: i32) -> (i32, i32) {
    %c0_i32 = arith.constant 0 : i32
    %c0_i32_0 = arith.constant 0 : i32
    %c0_i32_1 = arith.constant 0 : i32
    return %c0_i32, %c0_i32_0 : i32, i32
  }
  func.func @transform_2(%arg0: i32) -> (i32, i32) {
    %c0_i32 = arith.constant 0 : i32
    %c0_i32_0 = arith.constant 0 : i32
    %c0_i32_1 = arith.constant 0 : i32
    return %c0_i32, %c0_i32_0 : i32, i32
  }
  func.func @transform_3(%arg0: i32) -> (i32, i32) {
    %c0_i32 = arith.constant 0 : i32
    %c0_i32_0 = arith.constant 0 : i32
    return %arg0, %c0_i32 : i32, i32
  }
  func.func @transform_4(%arg0: i32) -> (i32, i32) {
    %c0_i32 = arith.constant 0 : i32
    %c0_i32_0 = arith.constant 0 : i32
    return %arg0, %c0_i32 : i32, i32
  }
}

module attributes {stable_mosaic.version = 11 : i64} {
  func.func @_blocks_kernel(%arg0: i32, %arg1: i32, %arg2: memref<24x128xbf16, #tpu.memory_space<vmem>>, %arg3: memref<1x128x512xbf16, #tpu.memory_space<vmem>>, %arg4: memref<1x1x512xf32, #tpu.memory_space<vmem>>, %arg5: memref<1x512x128xbf16, #tpu.memory_space<vmem>>, %arg6: memref<1x1x128xf32, #tpu.memory_space<vmem>>, %arg7: memref<24x128xbf16, #tpu.memory_space<vmem>>, %arg8: memref<24x128xf32, #tpu.memory_space<vmem>>) attributes {dimension_semantics = [#tpu.dimension_semantics<parallel>, #tpu.dimension_semantics<arbitrary>], iteration_bounds = array<i64: 1, 1>, scalar_prefetch = 0 : i64, scratch_operands = 1 : i64, tpu.core_type = #tpu.core_type<tc>, window_params = [{transform_indices = @transform_0, window_bounds = array<i64: 24, 128>}, {transform_indices = @transform_1, window_bounds = array<i64: 1, 128, 512>}, {transform_indices = @transform_2, window_bounds = array<i64: 1, 1, 512>}, {transform_indices = @transform_3, window_bounds = array<i64: 1, 512, 128>}, {transform_indices = @transform_4, window_bounds = array<i64: 1, 1, 128>}, {transform_indices = @transform_5, window_bounds = array<i64: 24, 128>}]} {
    %c0_i32 = arith.constant 0 : i32
    %0 = arith.cmpi eq, %arg1, %c0_i32 : i32
    %1 = arith.extui %0 : i1 to i32
    %c0_i32_0 = arith.constant 0 : i32
    %2 = arith.cmpi ne, %1, %c0_i32_0 : i32
    scf.if %2 {
      %c0_28 = arith.constant 0 : index
      %c0_29 = arith.constant 0 : index
      %56 = vector.load %arg2[%c0_28, %c0_29] : memref<24x128xbf16, #tpu.memory_space<vmem>>, vector<24x128xbf16>
      %57 = arith.extf %56 : vector<24x128xbf16> to vector<24x128xf32>
      %c0_30 = arith.constant 0 : index
      %c0_31 = arith.constant 0 : index
      %58 = vector.load %arg8[%c0_30, %c0_31] : memref<24x128xf32, #tpu.memory_space<vmem>>, vector<24x128xf32>
      tpu.vector_store %arg8[%c0_30, %c0_31], %57 {strides = array<i32>} : memref<24x128xf32, #tpu.memory_space<vmem>>, vector<24x128xf32>,
    } else {
    }
    %c0 = arith.constant 0 : index
    %c0_1 = arith.constant 0 : index
    %3 = vector.load %arg8[%c0, %c0_1] : memref<24x128xf32, #tpu.memory_space<vmem>>, vector<24x128xf32>
    %cst = arith.constant dense<0.000000e+00> : vector<24xf32>
    %4 = vector.multi_reduction <add>, %3, %cst [1] : vector<24x128xf32> to vector<24xf32>
    %5 = vector.shape_cast %4 : vector<24xf32> to vector<24x1xf32>
    %cst_2 = arith.constant 1.280000e+02 : f32
    %6 = vector.broadcast %cst_2 : f32 to vector<24x1xf32>
    %7 = arith.divf %5, %6 : vector<24x1xf32>
    %8 = vector.broadcast %7 : vector<24x1xf32> to vector<24x128xf32>
    %9 = arith.subf %3, %8 : vector<24x128xf32>
    %10 = arith.mulf %9, %9 : vector<24x128xf32>
    %cst_3 = arith.constant dense<0.000000e+00> : vector<24xf32>
    %11 = vector.multi_reduction <add>, %10, %cst_3 [1] : vector<24x128xf32> to vector<24xf32>
    %12 = vector.shape_cast %11 : vector<24xf32> to vector<24x1xf32>
    %cst_4 = arith.constant 1.280000e+02 : f32
    %13 = vector.broadcast %cst_4 : f32 to vector<24x1xf32>
    %14 = arith.divf %12, %13 : vector<24x1xf32>
    %15 = vector.broadcast %7 : vector<24x1xf32> to vector<24x128xf32>
    %16 = arith.subf %3, %15 : vector<24x128xf32>
    %cst_5 = arith.constant 9.99999974E-6 : f32
    %17 = vector.broadcast %cst_5 : f32 to vector<24x1xf32>
    %18 = arith.addf %14, %17 : vector<24x1xf32>
    %19 = math.rsqrt %18 : vector<24x1xf32>
    %20 = vector.broadcast %19 : vector<24x1xf32> to vector<24x128xf32>
    %21 = arith.mulf %16, %20 : vector<24x128xf32>
    %22 = arith.truncf %21 : vector<24x128xf32> to vector<24x128xbf16>
    %c0_6 = arith.constant 0 : index
    %c0_7 = arith.constant 0 : index
    %c0_8 = arith.constant 0 : index
    %23 = vector.load %arg3[%c0_6, %c0_7, %c0_8] : memref<1x128x512xbf16, #tpu.memory_space<vmem>>, vector<1x128x512xbf16>
    %24 = vector.shape_cast %23 : vector<1x128x512xbf16> to vector<128x512xbf16>
    %cst_9 = arith.constant dense<0.000000e+00> : vector<24x512xf32>
    %25 = tpu.matmul %22, %24, %cst_9 {dimension_numbers = #tpu.dot_dimension_numbers<[1], [0], [0], [1], [0, 0, 1, 1], [], []>} : vector<24x128xbf16>, vector<128x512xbf16>, vector<24x512xf32> -> vector<24x512xf32>
    %c0_10 = arith.constant 0 : index
    %c0_11 = arith.constant 0 : index
    %c0_12 = arith.constant 0 : index
    %26 = vector.load %arg4[%c0_10, %c0_11, %c0_12] : memref<1x1x512xf32, #tpu.memory_space<vmem>>, vector<1x1x512xf32>
    %27 = vector.shape_cast %26 : vector<1x1x512xf32> to vector<1x512xf32>
    %28 = vector.broadcast %27 : vector<1x512xf32> to vector<24x512xf32>
    %29 = arith.addf %25, %28 : vector<24x512xf32>
    %30 = arith.mulf %29, %29 : vector<24x512xf32>
    %31 = arith.mulf %29, %30 : vector<24x512xf32>
    %cst_13 = arith.constant 4.471500e-02 : f32
    %32 = vector.broadcast %cst_13 : f32 to vector<24x512xf32>
    %33 = arith.mulf %32, %31 : vector<24x512xf32>
    %34 = arith.addf %29, %33 : vector<24x512xf32>
    %cst_14 = arith.constant 0.797884583 : f32
    %35 = vector.broadcast %cst_14 : f32 to vector<24x512xf32>
    %36 = arith.mulf %35, %34 : vector<24x512xf32>
    %37 = math.tanh %36 : vector<24x512xf32>
    %cst_15 = arith.constant 1.000000e+00 : f32
    %38 = vector.broadcast %cst_15 : f32 to vector<24x512xf32>
    %39 = arith.addf %38, %37 : vector<24x512xf32>
    %cst_16 = arith.constant 5.000000e-01 : f32
    %40 = vector.broadcast %cst_16 : f32 to vector<24x512xf32>
    %41 = arith.mulf %40, %39 : vector<24x512xf32>
    %42 = arith.mulf %29, %41 : vector<24x512xf32>
    %43 = arith.truncf %42 : vector<24x512xf32> to vector<24x512xbf16>
    %c0_17 = arith.constant 0 : index
    %c0_18 = arith.constant 0 : index
    %c0_19 = arith.constant 0 : index
    %44 = vector.load %arg5[%c0_17, %c0_18, %c0_19] : memref<1x512x128xbf16, #tpu.memory_space<vmem>>, vector<1x512x128xbf16>
    %45 = vector.shape_cast %44 : vector<1x512x128xbf16> to vector<512x128xbf16>
    %cst_20 = arith.constant dense<0.000000e+00> : vector<24x128xf32>
    %46 = tpu.matmul %43, %45, %cst_20 {dimension_numbers = #tpu.dot_dimension_numbers<[1], [0], [0], [1], [0, 0, 1, 1], [], []>} : vector<24x512xbf16>, vector<512x128xbf16>, vector<24x128xf32> -> vector<24x128xf32>
    %c0_21 = arith.constant 0 : index
    %c0_22 = arith.constant 0 : index
    %c0_23 = arith.constant 0 : index
    %47 = vector.load %arg6[%c0_21, %c0_22, %c0_23] : memref<1x1x128xf32, #tpu.memory_space<vmem>>, vector<1x1x128xf32>
    %48 = vector.shape_cast %47 : vector<1x1x128xf32> to vector<1x128xf32>
    %49 = vector.broadcast %48 : vector<1x128xf32> to vector<24x128xf32>
    %50 = arith.addf %46, %49 : vector<24x128xf32>
    %51 = arith.addf %3, %50 : vector<24x128xf32>
    %c0_24 = arith.constant 0 : index
    %c0_25 = arith.constant 0 : index
    %52 = vector.load %arg8[%c0_24, %c0_25] : memref<24x128xf32, #tpu.memory_space<vmem>>, vector<24x128xf32>
    tpu.vector_store %arg8[%c0_24, %c0_25], %51 {strides = array<i32>} : memref<24x128xf32, #tpu.memory_space<vmem>>, vector<24x128xf32>,
    %c0_i32_26 = arith.constant 0 : i32
    %53 = arith.cmpi eq, %arg1, %c0_i32_26 : i32
    %54 = arith.extui %53 : i1 to i32
    %c0_i32_27 = arith.constant 0 : i32
    %55 = arith.cmpi ne, %54, %c0_i32_27 : i32
    scf.if %55 {
      %56 = arith.truncf %51 : vector<24x128xf32> to vector<24x128xbf16>
      %c0_28 = arith.constant 0 : index
      %c0_29 = arith.constant 0 : index
      %57 = vector.load %arg7[%c0_28, %c0_29] : memref<24x128xbf16, #tpu.memory_space<vmem>>, vector<24x128xbf16>
      tpu.vector_store %arg7[%c0_28, %c0_29], %56 {strides = array<i32>} : memref<24x128xbf16, #tpu.memory_space<vmem>>, vector<24x128xbf16>,
    } else {
    }
    return
  }
  func.func @transform_0(%arg0: i32, %arg1: i32) -> (i32, i32) {
    %c0_i32 = arith.constant 0 : i32
    %c0_i32_0 = arith.constant 0 : i32
    return %arg0, %c0_i32 : i32, i32
  }
  func.func @transform_1(%arg0: i32, %arg1: i32) -> (i32, i32, i32) {
    %c0_i32 = arith.constant 0 : i32
    %c0_i32_0 = arith.constant 0 : i32
    %c0_i32_1 = arith.constant 0 : i32
    return %arg1, %c0_i32, %c0_i32_0 : i32, i32, i32
  }
  func.func @transform_2(%arg0: i32, %arg1: i32) -> (i32, i32, i32) {
    %c0_i32 = arith.constant 0 : i32
    %c0_i32_0 = arith.constant 0 : i32
    %c0_i32_1 = arith.constant 0 : i32
    return %arg1, %c0_i32, %c0_i32_0 : i32, i32, i32
  }
  func.func @transform_3(%arg0: i32, %arg1: i32) -> (i32, i32, i32) {
    %c0_i32 = arith.constant 0 : i32
    %c0_i32_0 = arith.constant 0 : i32
    %c0_i32_1 = arith.constant 0 : i32
    return %arg1, %c0_i32, %c0_i32_0 : i32, i32, i32
  }
  func.func @transform_4(%arg0: i32, %arg1: i32) -> (i32, i32, i32) {
    %c0_i32 = arith.constant 0 : i32
    %c0_i32_0 = arith.constant 0 : i32
    %c0_i32_1 = arith.constant 0 : i32
    return %arg1, %c0_i32, %c0_i32_0 : i32, i32, i32
  }
  func.func @transform_5(%arg0: i32, %arg1: i32) -> (i32, i32) {
    %c0_i32 = arith.constant 0 : i32
    %c0_i32_0 = arith.constant 0 : i32
    return %arg0, %c0_i32 : i32, i32
  }
}

module attributes {stable_mosaic.version = 11 : i64} {
  func.func @_mse_kernel(%arg0: i32, %arg1: memref<8x128xf32, #tpu.memory_space<vmem>>, %arg2: memref<8x128xf32, #tpu.memory_space<vmem>>, %arg3: memref<1x1xf32, #tpu.memory_space<vmem>>, %arg4: memref<1x1xf32, #tpu.memory_space<vmem>>) attributes {dimension_semantics = [#tpu.dimension_semantics<arbitrary>], iteration_bounds = array<i64: 1>, scalar_prefetch = 0 : i64, scratch_operands = 1 : i64, tpu.core_type = #tpu.core_type<tc>, window_params = [{transform_indices = @transform_0, window_bounds = array<i64: 8, 128>}, {transform_indices = @transform_1, window_bounds = array<i64: 8, 128>}, {pipeline_mode = #tpu.pipeline_mode<synchronous>, transform_indices = @transform_2, window_bounds = array<i64: 1, 1>}]} {
    %c0_i32 = arith.constant 0 : i32
    %0 = arith.cmpi eq, %arg0, %c0_i32 : i32
    %1 = arith.extui %0 : i1 to i32
    %c0_i32_0 = arith.constant 0 : i32
    %2 = arith.cmpi ne, %1, %c0_i32_0 : i32
    scf.if %2 {
      %cst_10 = arith.constant 0.000000e+00 : f32
      %18 = vector.broadcast %cst_10 : f32 to vector<1x1xf32>
      %c0_11 = arith.constant 0 : index
      %c0_12 = arith.constant 0 : index
      %19 = vector.load %arg4[%c0_11, %c0_12] : memref<1x1xf32, #tpu.memory_space<vmem>>, vector<1x1xf32>
      tpu.vector_store %arg4[%c0_11, %c0_12], %18 {strides = array<i32>} : memref<1x1xf32, #tpu.memory_space<vmem>>, vector<1x1xf32>,
    } else {
    }
    %c0 = arith.constant 0 : index
    %c0_1 = arith.constant 0 : index
    %3 = vector.load %arg1[%c0, %c0_1] : memref<8x128xf32, #tpu.memory_space<vmem>>, vector<8x128xf32>
    %c0_2 = arith.constant 0 : index
    %c0_3 = arith.constant 0 : index
    %4 = vector.load %arg2[%c0_2, %c0_3] : memref<8x128xf32, #tpu.memory_space<vmem>>, vector<8x128xf32>
    %5 = arith.subf %3, %4 : vector<8x128xf32>
    %c0_4 = arith.constant 0 : index
    %c0_5 = arith.constant 0 : index
    %6 = vector.load %arg4[%c0_4, %c0_5] : memref<1x1xf32, #tpu.memory_space<vmem>>, vector<1x1xf32>
    %7 = arith.mulf %5, %5 : vector<8x128xf32>
    %8 = vector.shape_cast %7 : vector<8x128xf32> to vector<1x8x128xf32>
    %cst = arith.constant dense<0.000000e+00> : vector<1xf32>
    %9 = vector.multi_reduction <add>, %8, %cst [1, 2] : vector<1x8x128xf32> to vector<1xf32>
    %10 = vector.shape_cast %9 : vector<1xf32> to vector<1x1x1xf32>
    %11 = vector.extract %10[0, 0, 0] : f32 from vector<1x1x1xf32>
    %12 = vector.broadcast %11 : f32 to vector<1x1xf32>
    %13 = arith.addf %6, %12 : vector<1x1xf32>
    %c0_6 = arith.constant 0 : index
    %c0_7 = arith.constant 0 : index
    %14 = vector.load %arg4[%c0_6, %c0_7] : memref<1x1xf32, #tpu.memory_space<vmem>>, vector<1x1xf32>
    tpu.vector_store %arg4[%c0_6, %c0_7], %13 {strides = array<i32>} : memref<1x1xf32, #tpu.memory_space<vmem>>, vector<1x1xf32>,
    %c0_i32_8 = arith.constant 0 : i32
    %15 = arith.cmpi eq, %arg0, %c0_i32_8 : i32
    %16 = arith.extui %15 : i1 to i32
    %c0_i32_9 = arith.constant 0 : i32
    %17 = arith.cmpi ne, %16, %c0_i32_9 : i32
    scf.if %17 {
      %c0_10 = arith.constant 0 : index
      %c0_11 = arith.constant 0 : index
      %18 = vector.load %arg4[%c0_10, %c0_11] : memref<1x1xf32, #tpu.memory_space<vmem>>, vector<1x1xf32>
      %cst_12 = arith.constant 9.765625E-4 : f32
      %19 = vector.broadcast %cst_12 : f32 to vector<1x1xf32>
      %20 = arith.mulf %18, %19 : vector<1x1xf32>
      %c0_13 = arith.constant 0 : index
      %c0_14 = arith.constant 0 : index
      %21 = vector.load %arg3[%c0_13, %c0_14] : memref<1x1xf32, #tpu.memory_space<vmem>>, vector<1x1xf32>
      tpu.vector_store %arg3[%c0_13, %c0_14], %20 {strides = array<i32>} : memref<1x1xf32, #tpu.memory_space<vmem>>, vector<1x1xf32>,
    } else {
    }
    return
  }
  func.func @transform_0(%arg0: i32) -> (i32, i32) {
    %c0_i32 = arith.constant 0 : i32
    %c0_i32_0 = arith.constant 0 : i32
    return %arg0, %c0_i32 : i32, i32
  }
  func.func @transform_1(%arg0: i32) -> (i32, i32) {
    %c0_i32 = arith.constant 0 : i32
    %c0_i32_0 = arith.constant 0 : i32
    return %arg0, %c0_i32 : i32, i32
  }
  func.func @transform_2(%arg0: i32) -> (i32, i32) {
    %c0_i32 = arith.constant 0 : i32
    %c0_i32_0 = arith.constant 0 : i32
    %c0_i32_1 = arith.constant 0 : i32
    return %c0_i32, %c0_i32_0 : i32, i32
  }
}

module attributes {stable_mosaic.version = 11 : i64} {
  func.func @_proj_kernel(%arg0: i32, %arg1: memref<8x128xbf16, #tpu.memory_space<vmem>>, %arg2: memref<128x128xbf16, #tpu.memory_space<vmem>>, %arg3: memref<1x128xf32, #tpu.memory_space<vmem>>, %arg4: memref<8x128xf32, #tpu.memory_space<vmem>>) attributes {dimension_semantics = [#tpu.dimension_semantics<parallel>], iteration_bounds = array<i64: 1>, scalar_prefetch = 0 : i64, scratch_operands = 0 : i64, tpu.core_type = #tpu.core_type<tc>, window_params = [{transform_indices = @transform_0, window_bounds = array<i64: 8, 128>}, {pipeline_mode = #tpu.pipeline_mode<synchronous>, transform_indices = @transform_1, window_bounds = array<i64: 128, 128>}, {pipeline_mode = #tpu.pipeline_mode<synchronous>, transform_indices = @transform_2, window_bounds = array<i64: 1, 128>}, {transform_indices = @transform_3, window_bounds = array<i64: 8, 128>}]} {
    %c0 = arith.constant 0 : index
    %c0_0 = arith.constant 0 : index
    %0 = vector.load %arg1[%c0, %c0_0] : memref<8x128xbf16, #tpu.memory_space<vmem>>, vector<8x128xbf16>
    %1 = arith.extf %0 : vector<8x128xbf16> to vector<8x128xf32>
    %cst = arith.constant dense<0.000000e+00> : vector<8xf32>
    %2 = vector.multi_reduction <add>, %1, %cst [1] : vector<8x128xf32> to vector<8xf32>
    %3 = vector.shape_cast %2 : vector<8xf32> to vector<8x1xf32>
    %cst_1 = arith.constant 1.280000e+02 : f32
    %4 = vector.broadcast %cst_1 : f32 to vector<8x1xf32>
    %5 = arith.divf %3, %4 : vector<8x1xf32>
    %6 = vector.broadcast %5 : vector<8x1xf32> to vector<8x128xf32>
    %7 = arith.subf %1, %6 : vector<8x128xf32>
    %8 = arith.mulf %7, %7 : vector<8x128xf32>
    %cst_2 = arith.constant dense<0.000000e+00> : vector<8xf32>
    %9 = vector.multi_reduction <add>, %8, %cst_2 [1] : vector<8x128xf32> to vector<8xf32>
    %10 = vector.shape_cast %9 : vector<8xf32> to vector<8x1xf32>
    %cst_3 = arith.constant 1.280000e+02 : f32
    %11 = vector.broadcast %cst_3 : f32 to vector<8x1xf32>
    %12 = arith.divf %10, %11 : vector<8x1xf32>
    %13 = vector.broadcast %5 : vector<8x1xf32> to vector<8x128xf32>
    %14 = arith.subf %1, %13 : vector<8x128xf32>
    %cst_4 = arith.constant 9.99999974E-6 : f32
    %15 = vector.broadcast %cst_4 : f32 to vector<8x1xf32>
    %16 = arith.addf %12, %15 : vector<8x1xf32>
    %17 = math.rsqrt %16 : vector<8x1xf32>
    %18 = vector.broadcast %17 : vector<8x1xf32> to vector<8x128xf32>
    %19 = arith.mulf %14, %18 : vector<8x128xf32>
    %20 = arith.truncf %19 : vector<8x128xf32> to vector<8x128xbf16>
    %c0_5 = arith.constant 0 : index
    %c0_6 = arith.constant 0 : index
    %21 = vector.load %arg2[%c0_5, %c0_6] : memref<128x128xbf16, #tpu.memory_space<vmem>>, vector<128x128xbf16>
    %cst_7 = arith.constant dense<0.000000e+00> : vector<8x128xf32>
    %22 = tpu.matmul %20, %21, %cst_7 {dimension_numbers = #tpu.dot_dimension_numbers<[1], [0], [0], [1], [0, 0, 1, 1], [], []>} : vector<8x128xbf16>, vector<128x128xbf16>, vector<8x128xf32> -> vector<8x128xf32>
    %c0_8 = arith.constant 0 : index
    %c0_9 = arith.constant 0 : index
    %23 = vector.load %arg3[%c0_8, %c0_9] : memref<1x128xf32, #tpu.memory_space<vmem>>, vector<1x128xf32>
    %24 = vector.broadcast %23 : vector<1x128xf32> to vector<8x128xf32>
    %25 = arith.addf %22, %24 : vector<8x128xf32>
    %c0_10 = arith.constant 0 : index
    %c0_11 = arith.constant 0 : index
    %26 = vector.load %arg4[%c0_10, %c0_11] : memref<8x128xf32, #tpu.memory_space<vmem>>, vector<8x128xf32>
    tpu.vector_store %arg4[%c0_10, %c0_11], %25 {strides = array<i32>} : memref<8x128xf32, #tpu.memory_space<vmem>>, vector<8x128xf32>,
    return
  }
  func.func @transform_0(%arg0: i32) -> (i32, i32) {
    %c0_i32 = arith.constant 0 : i32
    %c0_i32_0 = arith.constant 0 : i32
    return %arg0, %c0_i32 : i32, i32
  }
  func.func @transform_1(%arg0: i32) -> (i32, i32) {
    %c0_i32 = arith.constant 0 : i32
    %c0_i32_0 = arith.constant 0 : i32
    %c0_i32_1 = arith.constant 0 : i32
    return %c0_i32, %c0_i32_0 : i32, i32
  }
  func.func @transform_2(%arg0: i32) -> (i32, i32) {
    %c0_i32 = arith.constant 0 : i32
    %c0_i32_0 = arith.constant 0 : i32
    %c0_i32_1 = arith.constant 0 : i32
    return %c0_i32, %c0_i32_0 : i32, i32
  }
  func.func @transform_3(%arg0: i32) -> (i32, i32) {
    %c0_i32 = arith.constant 0 : i32
    %c0_i32_0 = arith.constant 0 : i32
    return %arg0, %c0_i32 : i32, i32
  }
}

module attributes {stable_mosaic.version = 11 : i64} {
  func.func @_avg_ln_kernel(%arg0: i32, %arg1: memref<8x128xf32, #tpu.memory_space<vmem>>, %arg2: memref<8x128xf32, #tpu.memory_space<vmem>>) attributes {dimension_semantics = [#tpu.dimension_semantics<parallel>], iteration_bounds = array<i64: 1>, scalar_prefetch = 0 : i64, scratch_operands = 0 : i64, tpu.core_type = #tpu.core_type<tc>, window_params = [{transform_indices = @transform_0, window_bounds = array<i64: 8, 128>}, {transform_indices = @transform_1, window_bounds = array<i64: 8, 128>}]} {
    %c0 = arith.constant 0 : index
    %c0_0 = arith.constant 0 : index
    %0 = vector.load %arg1[%c0, %c0_0] : memref<8x128xf32, #tpu.memory_space<vmem>>, vector<8x128xf32>
    %cst = arith.constant dense<0.000000e+00> : vector<8xf32>
    %1 = vector.multi_reduction <add>, %0, %cst [1] : vector<8x128xf32> to vector<8xf32>
    %2 = vector.shape_cast %1 : vector<8xf32> to vector<8x1xf32>
    %cst_1 = arith.constant 1.280000e+02 : f32
    %3 = vector.broadcast %cst_1 : f32 to vector<8x1xf32>
    %4 = arith.divf %2, %3 : vector<8x1xf32>
    %5 = vector.broadcast %4 : vector<8x1xf32> to vector<8x128xf32>
    %6 = arith.subf %0, %5 : vector<8x128xf32>
    %7 = arith.mulf %6, %6 : vector<8x128xf32>
    %cst_2 = arith.constant dense<0.000000e+00> : vector<8xf32>
    %8 = vector.multi_reduction <add>, %7, %cst_2 [1] : vector<8x128xf32> to vector<8xf32>
    %9 = vector.shape_cast %8 : vector<8xf32> to vector<8x1xf32>
    %cst_3 = arith.constant 1.280000e+02 : f32
    %10 = vector.broadcast %cst_3 : f32 to vector<8x1xf32>
    %11 = arith.divf %9, %10 : vector<8x1xf32>
    %12 = vector.broadcast %4 : vector<8x1xf32> to vector<8x128xf32>
    %13 = arith.subf %0, %12 : vector<8x128xf32>
    %cst_4 = arith.constant 4.000000e-05 : f32
    %14 = vector.broadcast %cst_4 : f32 to vector<8x1xf32>
    %15 = arith.addf %11, %14 : vector<8x1xf32>
    %16 = math.rsqrt %15 : vector<8x1xf32>
    %17 = vector.broadcast %16 : vector<8x1xf32> to vector<8x128xf32>
    %18 = arith.mulf %13, %17 : vector<8x128xf32>
    %c0_5 = arith.constant 0 : index
    %c0_6 = arith.constant 0 : index
    %19 = vector.load %arg2[%c0_5, %c0_6] : memref<8x128xf32, #tpu.memory_space<vmem>>, vector<8x128xf32>
    tpu.vector_store %arg2[%c0_5, %c0_6], %18 {strides = array<i32>} : memref<8x128xf32, #tpu.memory_space<vmem>>, vector<8x128xf32>,
    return
  }
  func.func @transform_0(%arg0: i32) -> (i32, i32) {
    %c0_i32 = arith.constant 0 : i32
    %c0_i32_0 = arith.constant 0 : i32
    return %arg0, %c0_i32 : i32, i32
  }
  func.func @transform_1(%arg0: i32) -> (i32, i32) {
    %c0_i32 = arith.constant 0 : i32
    %c0_i32_0 = arith.constant 0 : i32
    return %arg0, %c0_i32 : i32, i32
  }
}

</mosaic_0001>

<llo_original>
// kernel: _lambda_.9
$region0: #{_lambda_.9}
  #allocation0 [shape = 'u32[]', space=smem, size = 0x4, offset = 0x4, fixed_abs, tag = 'smem constant byte address 0x4 - core index']
  #allocation1 [shape = 'u32[144,128]{1,0:T(1,128)}', space=vmem, size = 0x12000, scoped, tag = 'internal scratch']
  %s0 = inlined_call_operand.vmem [shape: f32[32,128], index: 0, kind: input, shape index: {}]
  %s1 = inlined_call_operand.vmem [shape: bf16[128,128], index: 1, kind: input, shape index: {}]
  %s2 = inlined_call_operand.vmem [shape: f32[1,128], index: 2, kind: input, shape index: {}]
  %s3 = inlined_call_operand.vmem [shape: f32[32,128], index: 3, kind: input, shape index: {}]
  %s4 = inlined_call_operand.vmem [shape: bf16[32,128], index: 4, kind: output, shape index: {}]
  %s5 = sld [smem:[#allocation0]]
  $region49: #{_lambda_.9} parent=0
    _
  %s7 = ssub.s32 1, %s5
  %s8 = scalar_select 0, %s7, %s5
  loop: start=0, step=1, limit=4
  $region2: #{_lambda_.9} parent=0 // loop_pre_header
    _
  $region3: #{_lambda_.9} parent=0 // loop_header
    %s10 = sphi 0, %s14
    %p11 = scmp.ge.s32.totalorder %s10, 4
    %s20 = sphi 0, %s22
    %s23 = sphi 0, %s20
    %s24 = sphi 0, %s23
    %s40 = sphi 0, %s24
    %s44 = sphi 0, %s44
    %s46 = sphi 0, %s44
    %s47 = sphi 0, %s46
    %s61 = sphi 0, %s47
    %s65 = sphi 0, %s65
    %s67 = sphi 0, %s65
    %s68 = sphi 0, %s67
    %s82 = sphi 0, %s68
    %s88 = sphi 0, %s90
    %s91 = sphi 0, %s88
    %s92 = sphi 0, %s91
    %s108 = sphi 0, %s92
    %s114 = sphi 0, %s116
    %s117 = sphi 0, %s114
    %s118 = sphi 0, %s117
    %s134 = sphi 0, %s118
  $region4: #{_lambda_.9} parent=0 // loop_header_branch
    %13 = sbr.rel (%p11) target = $region8
  $region5: #{_lambda_.9} parent=0 // loop_body
    %s15 = ssub.s32 %s10, 1
    %s16 = ssub.s32 %s10, 2
    %s17 = sadd.s32 %s10, 1
    %s18 = ssub.s32 %s10, %s17
    %p19 = scmp.eq.s32.totalorder %s18, 0
    %s21 = sadd.s32 %s20, 1
    %s22 = scalar_select %p19, %s20, %s21
    %p25 = pneg %p19
    %p26 = scmp.eq.s32.totalorder %s10, 1
    %p27 = por %p25, %p26
    %p28 = scmp.ne.s32.totalorder %s20, %s23
    %p29 = scmp.eq.s32.totalorder %s10, 0
    %p30 = por %p28, %p29
    %p31 = scmp.ne.s32.totalorder %s20, %s23
    %p32 = scmp.eq.s32.totalorder %s15, 1
    %p33 = por %p31, %p32
    %p34 = scmp.ne.s32.totalorder %s23, %s24
    %p35 = scmp.eq.s32.totalorder %s15, 0
    %p36 = por %p34, %p35
    %p37 = scmp.ne.s32.totalorder %s23, %s24
    %p38 = scmp.eq.s32.totalorder %s16, 1
    %p39 = por %p37, %p38
    %p41 = scmp.ne.s32.totalorder %s24, %s40
    %p42 = scmp.eq.s32.totalorder %s16, 0
    %p43 = por %p41, %p42
    %s45 = sadd.s32 %s44, 1
    %p48 = scmp.eq.s32.totalorder %s10, 1
    %p49 = scmp.ne.s32.totalorder %s44, %s46
    %p50 = scmp.eq.s32.totalorder %s10, 0
    %p51 = por %p49, %p50
    %p52 = scmp.ne.s32.totalorder %s44, %s46
    %p53 = scmp.eq.s32.totalorder %s15, 1
    %p54 = por %p52, %p53
    %p55 = scmp.ne.s32.totalorder %s46, %s47
    %p56 = scmp.eq.s32.totalorder %s15, 0
    %p57 = por %p55, %p56
    %p58 = scmp.ne.s32.totalorder %s46, %s47
    %p59 = scmp.eq.s32.totalorder %s16, 1
    %p60 = por %p58, %p59
    %p62 = scmp.ne.s32.totalorder %s47, %s61
    %p63 = scmp.eq.s32.totalorder %s16, 0
    %p64 = por %p62, %p63
    %s66 = sadd.s32 %s65, 1
    %p69 = scmp.eq.s32.totalorder %s10, 1
    %p70 = scmp.ne.s32.totalorder %s65, %s67
    %p71 = scmp.eq.s32.totalorder %s10, 0
    %p72 = por %p70, %p71
    %p73 = scmp.ne.s32.totalorder %s65, %s67
    %p74 = scmp.eq.s32.totalorder %s15, 1
    %p75 = por %p73, %p74
    %p76 = scmp.ne.s32.totalorder %s67, %s68
    %p77 = scmp.eq.s32.totalorder %s15, 0
    %p78 = por %p76, %p77
    %p79 = scmp.ne.s32.totalorder %s67, %s68
    %p80 = scmp.eq.s32.totalorder %s16, 1
    %p81 = por %p79, %p80
    %p83 = scmp.ne.s32.totalorder %s68, %s82
    %p84 = scmp.eq.s32.totalorder %s16, 0
    %p85 = por %p83, %p84
    %s86 = ssub.s32 %s10, %s17
    %p87 = scmp.eq.s32.totalorder %s86, 0
    %s89 = sadd.s32 %s88, 1
    %s90 = scalar_select %p87, %s88, %s89
    %p93 = pneg %p87
    %p94 = scmp.eq.s32.totalorder %s10, 1
    %p95 = por %p93, %p94
    %p96 = scmp.ne.s32.totalorder %s88, %s91
    %p97 = scmp.eq.s32.totalorder %s10, 0
    %p98 = por %p96, %p97
    %p99 = scmp.ne.s32.totalorder %s88, %s91
    %p100 = scmp.eq.s32.totalorder %s15, 1
    %p101 = por %p99, %p100
    %p102 = scmp.ne.s32.totalorder %s91, %s92
    %p103 = scmp.eq.s32.totalorder %s15, 0
    %p104 = por %p102, %p103
    %p105 = scmp.ne.s32.totalorder %s91, %s92
    %p106 = scmp.eq.s32.totalorder %s16, 1
    %p107 = por %p105, %p106
    %p109 = scmp.ne.s32.totalorder %s92, %s108
    %p110 = scmp.eq.s32.totalorder %s16, 0
    %p111 = por %p109, %p110
    %s112 = ssub.s32 %s10, %s17
    %p113 = scmp.eq.s32.totalorder %s112, 0
    %s115 = sadd.s32 %s114, 1
    %s116 = scalar_select %p113, %s114, %s115
    %p119 = pneg %p113
    %p120 = scmp.eq.s32.totalorder %s10, 1
    %p121 = por %p119, %p120
    %p122 = scmp.ne.s32.totalorder %s114, %s117
    %p123 = scmp.eq.s32.totalorder %s10, 0
    %p124 = por %p122, %p123
    %p125 = scmp.ne.s32.totalorder %s114, %s117
    %p126 = scmp.eq.s32.totalorder %s15, 1
    %p127 = por %p125, %p126
    %p128 = scmp.ne.s32.totalorder %s117, %s118
    %p129 = scmp.eq.s32.totalorder %s15, 0
    %p130 = por %p128, %p129
    %p131 = scmp.ne.s32.totalorder %s117, %s118
    %p132 = scmp.eq.s32.totalorder %s16, 1
    %p133 = por %p131, %p132
    %p135 = scmp.ne.s32.totalorder %s118, %s134
    %p136 = scmp.eq.s32.totalorder %s16, 0
    %p137 = por %p135, %p136
    %p138 = scmp.le.s32.totalorder 1, %s10
    %p139 = scmp.lt.s32.totalorder %s10, 3
    %p140 = pnand %p138, %p139
    %p141 = pneg %p140
    // Predicated region
    $region9: #{_lambda_.9} parent=5 // pred_check
      _
    $region10: #{_lambda_.9} parent=5 // pred_check_branch
      %143 = sbr.rel (%p140) target = $region12
    $region11: #{_lambda_.9} parent=5 // pred_region
      %s144 = ssub.s32 %s10, 1
      // Predicated region
      $region13: #{_lambda_.9} parent=11 // pred_check
        %p145 = pneg %p57
      $region14: #{_lambda_.9} parent=11 // pred_check_branch
        %147 = sbr.rel (%p145) target = $region16
      $region15: #{_lambda_.9} parent=11 // pred_region
        _
      $region16: #{_lambda_.9} parent=11 // pred_fallthru
        _
      // Predicated region
      $region17: #{_lambda_.9} parent=11 // pred_check
        %p148 = pneg %p78
      $region18: #{_lambda_.9} parent=11 // pred_check_branch
        %150 = sbr.rel (%p148) target = $region20
      $region19: #{_lambda_.9} parent=11 // pred_region
        _
      $region20: #{_lambda_.9} parent=11 // pred_fallthru
        _
    $region12: #{_lambda_.9} parent=5 // pred_fallthru
      _
    %p151 = scmp.lt.s32.totalorder %s10, 2
    // Predicated region
    $region21: #{_lambda_.9} parent=5 // pred_check
      %p152 = pneg %p151
    $region22: #{_lambda_.9} parent=5 // pred_check_branch
      %154 = sbr.rel (%p152) target = $region24
    $region23: #{_lambda_.9} parent=5 // pred_region
      // Predicated region
      $region25: #{_lambda_.9} parent=23 // pred_check
        %p155 = pneg %p30
      $region26: #{_lambda_.9} parent=23 // pred_check_branch
        %157 = sbr.rel (%p155) target = $region28
      $region27: #{_lambda_.9} parent=23 // pred_region
        %s158 = smul.u32 2, %s10
        %p159 = scmp.lt.s32.totalorder %s158, 3
        %s160 = scalar_select %p159, %s158, 3
        %s161 = smul.addr %s160, 8
        %s162 = scalar_lea.vmem %s0, %s161
        %s163 = smul.u32 2, %s10
      $region28: #{_lambda_.9} parent=23 // pred_fallthru
        _
      // Predicated region
      $region29: #{_lambda_.9} parent=23 // pred_check
        %p164 = pneg %p98
      $region30: #{_lambda_.9} parent=23 // pred_check_branch
        %166 = sbr.rel (%p164) target = $region32
      $region31: #{_lambda_.9} parent=23 // pred_region
        %s167 = smul.u32 2, %s10
        %p168 = scmp.lt.s32.totalorder %s167, 3
        %s169 = scalar_select %p168, %s167, 3
        %s170 = smul.addr %s169, 8
        %s171 = scalar_lea.vmem %s3, %s170
        %s172 = smul.u32 2, %s10
      $region32: #{_lambda_.9} parent=23 // pred_fallthru
        _
    $region24: #{_lambda_.9} parent=5 // pred_fallthru
      _
    %p173 = scmp.le.s32.totalorder 1, %s10
    %p174 = scmp.lt.s32.totalorder %s10, 3
    %p175 = pnand %p173, %p174
    %p176 = pneg %p175
    // Predicated region
    $region33: #{_lambda_.9} parent=5 // pred_check
      _
    $region34: #{_lambda_.9} parent=5 // pred_check_branch
      %178 = sbr.rel (%p175) target = $region36
    $region35: #{_lambda_.9} parent=5 // pred_region
      %s179 = ssub.s32 %s10, 1
      %s180 = smul.u32 2, %s15
      %p181 = scmp.lt.s32.totalorder %s180, 3
      %s182 = scalar_select %p181, %s180, 3
      %s183 = smul.addr %s182, 8
      %s184 = scalar_lea.vmem %s0, %s183
      %p185 = pneg %p36
      %p186 = pneg %p33
      %p187 = pneg %p57
      %p188 = pneg %p54
      %p189 = pneg %p78
      %p190 = pneg %p75
      %s191 = smul.u32 2, %s15
      %p192 = scmp.lt.s32.totalorder %s191, 3
      %s193 = scalar_select %p192, %s191, 3
      %s194 = smul.addr %s193, 8
      %s195 = scalar_lea.vmem %s3, %s194
      %p196 = pneg %p104
      %p197 = pneg %p101
      %p198 = pneg %p130
      %p199 = pneg %p127
      %s200 = smul.u32 2, %s15
      %p201 = scmp.lt.s32.totalorder %s200, 3
      %s202 = scalar_select %p201, %s200, 3
      %s203 = smul.addr %s202, 4
      %s204 = scalar_lea.vmem %s4, %s203
      %s205 = smul.u32 2, %s15
      %p206 = scmp.lt.s32.totalorder %s205, 3
      %s207 = scalar_select %p206, %s205, 3
      %s208 = smul.addr %s207, 8
      %s209 = scalar_lea.vmem %s0, %s208
      %s210 = smul.u32 2, %s15
      %s211 = smul.u32 2, %s15
      %p212 = scmp.lt.s32.totalorder %s211, 3
      %s213 = scalar_select %p212, %s211, 3
      %s214 = smul.addr %s213, 8
      %s215 = scalar_lea.vmem %s3, %s214
      %s216 = smul.u32 2, %s15
      %s217 = smul.u32 2, %s15
      %p218 = scmp.lt.s32.totalorder %s217, 3
      %s219 = scalar_select %p218, %s217, 3
      %s220 = smul.addr %s219, 4
      %s221 = scalar_lea.vmem %s4, %s220
      %s222 = smul.u32 2, %s15
      %v224 = vld [vmem:[%s209] sm:$0xff]
      %v225 = vld [vmem:[%s209 + $0x8] sm:$0xff]
      %v226 = vpack.c.bf16 %v225, %v224
      %v227 = vld [vmem:[%s1] sm:$0xf]
      %v228 = vld [vmem:[%s1 + $0x4] sm:$0xf]
      %v229 = vld [vmem:[%s1 + $0x8] sm:$0xf]
      %v230 = vld [vmem:[%s1 + $0xc] sm:$0xf]
      %v231 = vld [vmem:[%s1 + $0x10] sm:$0xf]
      %v232 = vld [vmem:[%s1 + $0x14] sm:$0xf]
      %v233 = vld [vmem:[%s1 + $0x18] sm:$0xf]
      %v234 = vld [vmem:[%s1 + $0x1c] sm:$0xf]
      %v235 = vld [vmem:[%s1 + $0x20] sm:$0xf]
      %v236 = vld [vmem:[%s1 + $0x24] sm:$0xf]
      %v237 = vld [vmem:[%s1 + $0x28] sm:$0xf]
      %v238 = vld [vmem:[%s1 + $0x2c] sm:$0xf]
      %v239 = vld [vmem:[%s1 + $0x30] sm:$0xf]
      %v240 = vld [vmem:[%s1 + $0x34] sm:$0xf]
      %v241 = vld [vmem:[%s1 + $0x38] sm:$0xf]
      %v242 = vld [vmem:[%s1 + $0x3c] sm:$0xf]
      %v243 = vld [vmem:[%s2] sm:$0x1]
      %v245 = vlaneseq
      %v246 = vshrl.u32 %v245, 7
      %v247 = vsub.s32 0, %v246
      %v248 = vrot.slane %v243, %v247
      %v266 = vunpack.c.l.b16 %v227
      %v267 = vunpack.c.l.b16 %v228
      %v268 = vunpack.c.l.b16 %v229
      %v269 = vunpack.c.l.b16 %v230
      %v270 = vunpack.c.l.b16 %v231
      %v271 = vunpack.c.l.b16 %v232
      %v272 = vunpack.c.l.b16 %v233
      %v273 = vunpack.c.l.b16 %v234
      %v274 = vunpack.c.l.b16 %v235
      %v275 = vunpack.c.l.b16 %v236
      %v276 = vunpack.c.l.b16 %v237
      %v277 = vunpack.c.l.b16 %v238
      %v278 = vunpack.c.l.b16 %v239
      %v279 = vunpack.c.l.b16 %v240
      %v280 = vunpack.c.l.b16 %v241
      %v281 = vunpack.c.l.b16 %v242
      %v282 = vpack.c.b16 %v267, %v266
      %v283 = vpack.c.b16 %v269, %v268
      %v284 = vpack.c.b16 %v271, %v270
      %v285 = vpack.c.b16 %v273, %v272
      %v286 = vpack.c.b16 %v275, %v274
      %v287 = vpack.c.b16 %v277, %v276
      %v288 = vpack.c.b16 %v279, %v278
      %v289 = vpack.c.b16 %v281, %v280
      %298 = vmatprep.subr.bf16.mxu0 0
      %299 = vmatpush1.bf16.msra.mxu0 %v282
      %300 = vmatprep.subr.bf16.mxu0 0
      %301 = vmatpush1.bf16.msra.mxu0 %v283
      %302 = vmatprep.subr.bf16.mxu0 0
      %303 = vmatpush1.bf16.msra.mxu0 %v284
      %304 = vmatprep.subr.bf16.mxu0 0
      %305 = vmatpush1.bf16.msra.mxu0 %v285
      %306 = vmatprep.subr.bf16.mxu0 0
      %307 = vmatpush1.bf16.msra.mxu0 %v286
      %308 = vmatprep.subr.bf16.mxu0 0
      %309 = vmatpush1.bf16.msra.mxu0 %v287
      %310 = vmatprep.subr.bf16.mxu0 0
      %311 = vmatpush1.bf16.msra.mxu0 %v288
      %312 = vmatprep.subr.bf16.mxu0 0
      %313 = vmatpush1.bf16.msra.mxu0 %v289
      %314 = vmatprep.subr.bf16.mxu0 0
      %315 = vmatpush1.bf16.msra.mxu0 0
      %316 = vmatprep.subr.bf16.mxu0 0
      %317 = vmatpush1.bf16.msra.mxu0 0
      %318 = vmatprep.subr.bf16.mxu0 0
      %319 = vmatpush1.bf16.msra.mxu0 0
      %320 = vmatprep.subr.bf16.mxu0 0
      %321 = vmatpush1.bf16.msra.mxu0 0
      %322 = vmatprep.subr.bf16.mxu0 0
      %323 = vmatpush1.bf16.msra.mxu0 0
      %324 = vmatprep.subr.bf16.mxu0 0
      %325 = vmatpush1.bf16.msra.mxu0 0
      %326 = vmatprep.subr.bf16.mxu0 0
      %327 = vmatpush1.bf16.msra.mxu0 0
      %328 = vmatprep.subr.bf16.mxu0 0
      %329 = vmatpush1.bf16.msra.mxu0 0
      %330 = vmatprep.mubr.bf16.mxu0 0
      %331 = vmatmul.mubr.bf16.gmra.mrb[0].mxu0 %v226
      %v332 = vpop.f32.mrb[0].mxu0
      %v333 = vadd.f32 %v248, %v332
      %v334 = vpop.f32.mrb[0].mxu0
      %v335 = vpop.f32.mrb[0].mxu0
      %v336 = vadd.f32 %v248, %v335
      %v337 = vpop.f32.mrb[0].mxu0
      %338 = vdwg.mxu0
      %v339 = vld [vmem:[%s215] sm:$0xff]
      %v340 = vld [vmem:[%s215 + $0x8] sm:$0xff]
      %v341 = vadd.f32 %v333, %v339
      %v342 = vadd.f32 %v336, %v340
      %v343 = vpack.c.bf16 %v342, %v341
      %v345 = vunpack.c.l.b16 %v343
      %v346 = vunpack.c.h.b16 %v343
      %v347 = vpack.c.b16 %v345, %v345
      %v348 = vpack.c.b16 %v346, %v346
      %351 = vst [vmem:[%s221] sm:$0xf] %v347
      %352 = vst [vmem:[%s221 + $0x4] sm:$0xf] %v348
      %s353 = smul.u32 2, %s15
      %p354 = scmp.lt.s32.totalorder %s353, 3
      %s355 = scalar_select %p354, %s353, 3
      %s356 = smul.addr %s355, 4
      %s357 = scalar_lea.vmem %s4, %s356
      // Predicated region
      $region37: #{_lambda_.9} parent=35 // pred_check
        %p358 = pneg %p127
      $region38: #{_lambda_.9} parent=35 // pred_check_branch
        %360 = sbr.rel (%p358) target = $region40
      $region39: #{_lambda_.9} parent=35 // pred_region
        %s361 = smul.u32 2, %s15
      $region40: #{_lambda_.9} parent=35 // pred_fallthru
        _
    $region36: #{_lambda_.9} parent=5 // pred_fallthru
      _
    %p362 = scmp.le.s32.totalorder 2, %s10
    // Predicated region
    $region41: #{_lambda_.9} parent=5 // pred_check
      %p363 = pneg %p362
    $region42: #{_lambda_.9} parent=5 // pred_check_branch
      %365 = sbr.rel (%p363) target = $region44
    $region43: #{_lambda_.9} parent=5 // pred_region
      %s366 = ssub.s32 %s10, 2
      // Predicated region
      $region45: #{_lambda_.9} parent=43 // pred_check
        %p367 = pneg %p133
      $region46: #{_lambda_.9} parent=43 // pred_check_branch
        %369 = sbr.rel (%p367) target = $region48
      $region47: #{_lambda_.9} parent=43 // pred_region
        %s370 = smul.u32 2, %s16
        %p371 = scmp.lt.s32.totalorder %s370, 3
        %s372 = scalar_select %p371, %s370, 3
        %s373 = smul.addr %s372, 4
        %s374 = scalar_lea.vmem %s4, %s373
      $region48: #{_lambda_.9} parent=43 // pred_fallthru
        _
    $region44: #{_lambda_.9} parent=5 // pred_fallthru
      _
  $region6: #{_lambda_.9} parent=0 // loop_footer
    %s14 = sadd.s32 1, %s10
  $region7: #{_lambda_.9} parent=0 // loop_footer_branch
    %9 = sbr.rel target = $region3
  $region8: #{_lambda_.9} parent=0 // loop_exit
    _

// kernel: _lambda_.12
$region0: #{_lambda_.12}
  #allocation0 [shape = 'u32[]', space=smem, size = 0x4, offset = 0x4, fixed_abs, tag = 'smem constant byte address 0x4 - core index']
  #allocation1 [shape = 'u32[144,128]{1,0:T(1,128)}', space=vmem, size = 0x12000, scoped, tag = 'internal scratch']
  %s0 = inlined_call_operand.vmem [shape: f32[16,128], index: 0, kind: input, shape index: {}]
  %s1 = inlined_call_operand.vmem [shape: bf16[128,128], index: 1, kind: input, shape index: {}]
  %s2 = inlined_call_operand.vmem [shape: f32[1,128], index: 2, kind: input, shape index: {}]
  %s3 = inlined_call_operand.vmem [shape: f32[16,128], index: 3, kind: input, shape index: {}]
  %s4 = inlined_call_operand.vmem [shape: bf16[16,128], index: 4, kind: output, shape index: {}]
  %s5 = sld [smem:[#allocation0]]
  $region26: #{_lambda_.12} parent=0
    _
  %s7 = ssub.s32 1, %s5
  %s8 = scalar_select 0, %s7, %s5
  // Predicated region
  $region2: #{_lambda_.12} parent=0 // pred_check
    _
  $region3: #{_lambda_.12} parent=0 // pred_check_branch
    %10 = sbr.rel (0) target = $region5
  $region4: #{_lambda_.12} parent=0 // pred_region
    _
  $region5: #{_lambda_.12} parent=0 // pred_fallthru
    _
  // Predicated region
  $region6: #{_lambda_.12} parent=0 // pred_check
    _
  $region7: #{_lambda_.12} parent=0 // pred_check_branch
    %12 = sbr.rel (0) target = $region9
  $region8: #{_lambda_.12} parent=0 // pred_region
    _
  $region9: #{_lambda_.12} parent=0 // pred_fallthru
    _
  // Predicated region
  $region10: #{_lambda_.12} parent=0 // pred_check
    _
  $region11: #{_lambda_.12} parent=0 // pred_check_branch
    %14 = sbr.rel (0) target = $region13
  $region12: #{_lambda_.12} parent=0 // pred_region
    _
  $region13: #{_lambda_.12} parent=0 // pred_fallthru
    _
  // Predicated region
  $region14: #{_lambda_.12} parent=0 // pred_check
    _
  $region15: #{_lambda_.12} parent=0 // pred_check_branch
    %16 = sbr.rel (0) target = $region17
  $region16: #{_lambda_.12} parent=0 // pred_region
    _
  $region17: #{_lambda_.12} parent=0 // pred_fallthru
    _
  %v18 = vld [vmem:[%s0] sm:$0xff]
  %v19 = vld [vmem:[%s0 + $0x8] sm:$0xff]
  %v20 = vpack.c.bf16 %v19, %v18
  %v21 = vld [vmem:[%s1] sm:$0xf]
  %v22 = vld [vmem:[%s1 + $0x4] sm:$0xf]
  %v23 = vld [vmem:[%s1 + $0x8] sm:$0xf]
  %v24 = vld [vmem:[%s1 + $0xc] sm:$0xf]
  %v25 = vld [vmem:[%s1 + $0x10] sm:$0xf]
  %v26 = vld [vmem:[%s1 + $0x14] sm:$0xf]
  %v27 = vld [vmem:[%s1 + $0x18] sm:$0xf]
  %v28 = vld [vmem:[%s1 + $0x1c] sm:$0xf]
  %v29 = vld [vmem:[%s1 + $0x20] sm:$0xf]
  %v30 = vld [vmem:[%s1 + $0x24] sm:$0xf]
  %v31 = vld [vmem:[%s1 + $0x28] sm:$0xf]
  %v32 = vld [vmem:[%s1 + $0x2c] sm:$0xf]
  %v33 = vld [vmem:[%s1 + $0x30] sm:$0xf]
  %v34 = vld [vmem:[%s1 + $0x34] sm:$0xf]
  %v35 = vld [vmem:[%s1 + $0x38] sm:$0xf]
  %v36 = vld [vmem:[%s1 + $0x3c] sm:$0xf]
  %v37 = vld [vmem:[%s2] sm:$0x1]
  %v39 = vlaneseq
  %v40 = vshrl.u32 %v39, 7
  %v41 = vsub.s32 0, %v40
  %v42 = vrot.slane %v37, %v41
  %v60 = vunpack.c.l.b16 %v21
  %v61 = vunpack.c.l.b16 %v22
  %v62 = vunpack.c.l.b16 %v23
  %v63 = vunpack.c.l.b16 %v24
  %v64 = vunpack.c.l.b16 %v25
  %v65 = vunpack.c.l.b16 %v26
  %v66 = vunpack.c.l.b16 %v27
  %v67 = vunpack.c.l.b16 %v28
  %v68 = vunpack.c.l.b16 %v29
  %v69 = vunpack.c.l.b16 %v30
  %v70 = vunpack.c.l.b16 %v31
  %v71 = vunpack.c.l.b16 %v32
  %v72 = vunpack.c.l.b16 %v33
  %v73 = vunpack.c.l.b16 %v34
  %v74 = vunpack.c.l.b16 %v35
  %v75 = vunpack.c.l.b16 %v36
  %v76 = vpack.c.b16 %v61, %v60
  %v77 = vpack.c.b16 %v63, %v62
  %v78 = vpack.c.b16 %v65, %v64
  %v79 = vpack.c.b16 %v67, %v66
  %v80 = vpack.c.b16 %v69, %v68
  %v81 = vpack.c.b16 %v71, %v70
  %v82 = vpack.c.b16 %v73, %v72
  %v83 = vpack.c.b16 %v75, %v74
  %92 = vmatprep.subr.bf16.mxu0 0
  %93 = vmatpush1.bf16.msra.mxu0 %v76
  %94 = vmatprep.subr.bf16.mxu0 0
  %95 = vmatpush1.bf16.msra.mxu0 %v77
  %96 = vmatprep.subr.bf16.mxu0 0
  %97 = vmatpush1.bf16.msra.mxu0 %v78
  %98 = vmatprep.subr.bf16.mxu0 0
  %99 = vmatpush1.bf16.msra.mxu0 %v79
  %100 = vmatprep.subr.bf16.mxu0 0
  %101 = vmatpush1.bf16.msra.mxu0 %v80
  %102 = vmatprep.subr.bf16.mxu0 0
  %103 = vmatpush1.bf16.msra.mxu0 %v81
  %104 = vmatprep.subr.bf16.mxu0 0
  %105 = vmatpush1.bf16.msra.mxu0 %v82
  %106 = vmatprep.subr.bf16.mxu0 0
  %107 = vmatpush1.bf16.msra.mxu0 %v83
  %108 = vmatprep.subr.bf16.mxu0 0
  %109 = vmatpush1.bf16.msra.mxu0 0
  %110 = vmatprep.subr.bf16.mxu0 0
  %111 = vmatpush1.bf16.msra.mxu0 0
  %112 = vmatprep.subr.bf16.mxu0 0
  %113 = vmatpush1.bf16.msra.mxu0 0
  %114 = vmatprep.subr.bf16.mxu0 0
  %115 = vmatpush1.bf16.msra.mxu0 0
  %116 = vmatprep.subr.bf16.mxu0 0
  %117 = vmatpush1.bf16.msra.mxu0 0
  %118 = vmatprep.subr.bf16.mxu0 0
  %119 = vmatpush1.bf16.msra.mxu0 0
  %120 = vmatprep.subr.bf16.mxu0 0
  %121 = vmatpush1.bf16.msra.mxu0 0
  %122 = vmatprep.subr.bf16.mxu0 0
  %123 = vmatpush1.bf16.msra.mxu0 0
  %124 = vmatprep.mubr.bf16.mxu0 0
  %125 = vmatmul.mubr.bf16.gmra.mrb[0].mxu0 %v20
  %v126 = vpop.f32.mrb[0].mxu0
  %v127 = vadd.f32 %v42, %v126
  %v128 = vpop.f32.mrb[0].mxu0
  %v129 = vpop.f32.mrb[0].mxu0
  %v130 = vadd.f32 %v42, %v129
  %v131 = vpop.f32.mrb[0].mxu0
  %132 = vdwg.mxu0
  %v133 = vld [vmem:[%s3] sm:$0xff]
  %v134 = vld [vmem:[%s3 + $0x8] sm:$0xff]
  %v135 = vadd.f32 %v127, %v133
  %v136 = vadd.f32 %v130, %v134
  %v137 = vpack.c.bf16 %v136, %v135
  %v139 = vunpack.c.l.b16 %v137
  %v140 = vunpack.c.h.b16 %v137
  %v141 = vpack.c.b16 %v139, %v139
  %v142 = vpack.c.b16 %v140, %v140
  %145 = vst [vmem:[%s4] sm:$0xf] %v141
  %146 = vst [vmem:[%s4 + $0x4] sm:$0xf] %v142
  // Predicated region
  $region18: #{_lambda_.12} parent=0 // pred_check
    _
  $region19: #{_lambda_.12} parent=0 // pred_check_branch
    %148 = sbr.rel (0) target = $region21
  $region20: #{_lambda_.12} parent=0 // pred_region
    _
  $region21: #{_lambda_.12} parent=0 // pred_fallthru
    _
  // Predicated region
  $region22: #{_lambda_.12} parent=0 // pred_check
    _
  $region23: #{_lambda_.12} parent=0 // pred_check_branch
    %150 = sbr.rel (0) target = $region25
  $region24: #{_lambda_.12} parent=0 // pred_region
    _
  $region25: #{_lambda_.12} parent=0 // pred_fallthru
    _

// kernel: _lambda_.10
$region0: #{_lambda_.10}
  #allocation0 [shape = 'u32[]', space=smem, size = 0x4, offset = 0x4, fixed_abs, tag = 'smem constant byte address 0x4 - core index']
  #allocation1 [shape = 'u32[144,128]{1,0:T(1,128)}', space=vmem, size = 0x12000, scoped, tag = 'internal scratch']
  #allocation2 [shape = 'f32[16,128]{1,0:T(8,128)}', space=vmem, size = 0x2000, scoped, tag = 'scratch operand']
  %s0 = inlined_call_operand.vmem [shape: bf16[32,128], index: 0, kind: input, shape index: {}]
  %s1 = inlined_call_operand.vmem [shape: bf16[2,128,512], index: 1, kind: input, shape index: {}]
  %s2 = inlined_call_operand.vmem [shape: f32[2,1,512], index: 2, kind: input, shape index: {}]
  %s3 = inlined_call_operand.vmem [shape: bf16[2,512,128], index: 3, kind: input, shape index: {}]
  %s4 = inlined_call_operand.vmem [shape: f32[2,1,128], index: 4, kind: input, shape index: {}]
  %s5 = inlined_call_operand.hbm [shape: bf16[32,128], index: 5, kind: output, shape index: {0}]
  %s6 = inlined_call_operand.vmem [shape: f32[32,128], index: 6, kind: output, shape index: {1}]
  %7 = xla_tuple %s5, %s6
  %s8 = sld [smem:[#allocation0]]
  $region77: #{_lambda_.10} parent=0
    _
  %s10 = ssub.s32 1, %s8
  %s11 = scalar_select 0, %s10, %s8
  $region1: #{_lambda_.10} parent=0
    #allocation3 [shape = 'u8[8192]{0}', space=vmem, size = 0x2000, scoped, tag = 'output window, operand 0']
    #allocation4 [shape = 's32[2]{0}', space=sflag, size = 0x8, scoped, tag = 'scoped memory for _lambda_.10']
    %12 = vsyncpa [#allocation4], 0
    %s13 = scalar_lea.sflag [#allocation4], 1
    %14 = vsyncpa %s13, 0
    loop: start=0, step=1, limit=6
    $region2: #{_lambda_.10} parent=1 // loop_pre_header
      _
    $region3: #{_lambda_.10} parent=1 // loop_header
      %s16 = sphi 0, %s20
      %p17 = scmp.ge.s32.totalorder %s16, 6
      %s23 = sphi 0, %s35
      %s24 = sphi 0, %s31
      %s25 = sphi 0, %s23
      %s26 = sphi 0, %s24
      %s27 = sphi 0, %s25
      %s28 = sphi 0, %s26
      %s38 = sphi 0, %s40
      %s41 = sphi 0, %s38
      %s42 = sphi 0, %s41
      %s58 = sphi 0, %s42
      %s64 = sphi 0, %s66
      %s67 = sphi 0, %s64
      %s68 = sphi 0, %s67
      %s84 = sphi 0, %s68
      %s90 = sphi 0, %s92
      %s93 = sphi 0, %s90
      %s94 = sphi 0, %s93
      %s110 = sphi 0, %s94
      %s116 = sphi 0, %s118
      %s119 = sphi 0, %s116
      %s120 = sphi 0, %s119
      %s136 = sphi 0, %s120
      %s142 = sphi 0, %s144
      %s145 = sphi 0, %s142
      %s146 = sphi 0, %s145
      %s162 = sphi 0, %s146
      %s168 = sphi 0, %s170
      %s171 = sphi 0, %s168
      %s172 = sphi 0, %s171
      %s188 = sphi 0, %s172
      %s194 = sphi 0, %s196
      %s197 = sphi 0, %s194
      %s198 = sphi 0, %s197
      %s214 = sphi 0, %s198
    $region4: #{_lambda_.10} parent=1 // loop_header_branch
      %19 = sbr.rel (%p17) target = $region8
    $region5: #{_lambda_.10} parent=1 // loop_body
      %s21 = ssub.s32 %s16, 1
      %s22 = ssub.s32 %s16, 2
      %s29 = sadd.s32 1, %s24
      %p30 = scmp.ge.s32.totalorder %s29, 2
      %s31 = scalar_select %p30, 0, %s29
      %s32 = sadd.s32 1, %s23
      %s33 = scalar_select %p30, %s32, %s23
      %p34 = scmp.ge.s32.totalorder %s33, 2
      %s35 = scalar_select %p34, 0, %s33
      %s36 = ssub.s32 %s23, %s35
      %p37 = scmp.eq.s32.totalorder %s36, 0
      %s39 = sadd.s32 %s38, 1
      %s40 = scalar_select %p37, %s38, %s39
      %p43 = pneg %p37
      %p44 = scmp.eq.s32.totalorder %s16, 3
      %p45 = por %p43, %p44
      %p46 = scmp.ne.s32.totalorder %s38, %s41
      %p47 = scmp.eq.s32.totalorder %s16, 0
      %p48 = por %p46, %p47
      %p49 = scmp.ne.s32.totalorder %s38, %s41
      %p50 = scmp.eq.s32.totalorder %s21, 3
      %p51 = por %p49, %p50
      %p52 = scmp.ne.s32.totalorder %s41, %s42
      %p53 = scmp.eq.s32.totalorder %s21, 0
      %p54 = por %p52, %p53
      %p55 = scmp.ne.s32.totalorder %s41, %s42
      %p56 = scmp.eq.s32.totalorder %s22, 3
      %p57 = por %p55, %p56
      %p59 = scmp.ne.s32.totalorder %s42, %s58
      %p60 = scmp.eq.s32.totalorder %s22, 0
      %p61 = por %p59, %p60
      %s62 = ssub.s32 %s24, %s31
      %p63 = scmp.eq.s32.totalorder %s62, 0
      %s65 = sadd.s32 %s64, 1
      %s66 = scalar_select %p63, %s64, %s65
      %p69 = pneg %p63
      %p70 = scmp.eq.s32.totalorder %s16, 3
      %p71 = por %p69, %p70
      %p72 = scmp.ne.s32.totalorder %s64, %s67
      %p73 = scmp.eq.s32.totalorder %s16, 0
      %p74 = por %p72, %p73
      %p75 = scmp.ne.s32.totalorder %s64, %s67
      %p76 = scmp.eq.s32.totalorder %s21, 3
      %p77 = por %p75, %p76
      %p78 = scmp.ne.s32.totalorder %s67, %s68
      %p79 = scmp.eq.s32.totalorder %s21, 0
      %p80 = por %p78, %p79
      %p81 = scmp.ne.s32.totalorder %s67, %s68
      %p82 = scmp.eq.s32.totalorder %s22, 3
      %p83 = por %p81, %p82
      %p85 = scmp.ne.s32.totalorder %s68, %s84
      %p86 = scmp.eq.s32.totalorder %s22, 0
      %p87 = por %p85, %p86
      %s88 = ssub.s32 %s24, %s31
      %p89 = scmp.eq.s32.totalorder %s88, 0
      %s91 = sadd.s32 %s90, 1
      %s92 = scalar_select %p89, %s90, %s91
      %p95 = pneg %p89
      %p96 = scmp.eq.s32.totalorder %s16, 3
      %p97 = por %p95, %p96
      %p98 = scmp.ne.s32.totalorder %s90, %s93
      %p99 = scmp.eq.s32.totalorder %s16, 0
      %p100 = por %p98, %p99
      %p101 = scmp.ne.s32.totalorder %s90, %s93
      %p102 = scmp.eq.s32.totalorder %s21, 3
      %p103 = por %p101, %p102
      %p104 = scmp.ne.s32.totalorder %s93, %s94
      %p105 = scmp.eq.s32.totalorder %s21, 0
      %p106 = por %p104, %p105
      %p107 = scmp.ne.s32.totalorder %s93, %s94
      %p108 = scmp.eq.s32.totalorder %s22, 3
      %p109 = por %p107, %p108
      %p111 = scmp.ne.s32.totalorder %s94, %s110
      %p112 = scmp.eq.s32.totalorder %s22, 0
      %p113 = por %p111, %p112
      %s114 = ssub.s32 %s24, %s31
      %p115 = scmp.eq.s32.totalorder %s114, 0
      %s117 = sadd.s32 %s116, 1
      %s118 = scalar_select %p115, %s116, %s117
      %p121 = pneg %p115
      %p122 = scmp.eq.s32.totalorder %s16, 3
      %p123 = por %p121, %p122
      %p124 = scmp.ne.s32.totalorder %s116, %s119
      %p125 = scmp.eq.s32.totalorder %s16, 0
      %p126 = por %p124, %p125
      %p127 = scmp.ne.s32.totalorder %s116, %s119
      %p128 = scmp.eq.s32.totalorder %s21, 3
      %p129 = por %p127, %p128
      %p130 = scmp.ne.s32.totalorder %s119, %s120
      %p131 = scmp.eq.s32.totalorder %s21, 0
      %p132 = por %p130, %p131
      %p133 = scmp.ne.s32.totalorder %s119, %s120
      %p134 = scmp.eq.s32.totalorder %s22, 3
      %p135 = por %p133, %p134
      %p137 = scmp.ne.s32.totalorder %s120, %s136
      %p138 = scmp.eq.s32.totalorder %s22, 0
      %p139 = por %p137, %p138
      %s140 = ssub.s32 %s24, %s31
      %p141 = scmp.eq.s32.totalorder %s140, 0
      %s143 = sadd.s32 %s142, 1
      %s144 = scalar_select %p141, %s142, %s143
      %p147 = pneg %p141
      %p148 = scmp.eq.s32.totalorder %s16, 3
      %p149 = por %p147, %p148
      %p150 = scmp.ne.s32.totalorder %s142, %s145
      %p151 = scmp.eq.s32.totalorder %s16, 0
      %p152 = por %p150, %p151
      %p153 = scmp.ne.s32.totalorder %s142, %s145
      %p154 = scmp.eq.s32.totalorder %s21, 3
      %p155 = por %p153, %p154
      %p156 = scmp.ne.s32.totalorder %s145, %s146
      %p157 = scmp.eq.s32.totalorder %s21, 0
      %p158 = por %p156, %p157
      %p159 = scmp.ne.s32.totalorder %s145, %s146
      %p160 = scmp.eq.s32.totalorder %s22, 3
      %p161 = por %p159, %p160
      %p163 = scmp.ne.s32.totalorder %s146, %s162
      %p164 = scmp.eq.s32.totalorder %s22, 0
      %p165 = por %p163, %p164
      %s166 = ssub.s32 %s23, %s35
      %p167 = scmp.eq.s32.totalorder %s166, 0
      %s169 = sadd.s32 %s168, 1
      %s170 = scalar_select %p167, %s168, %s169
      %p173 = pneg %p167
      %p174 = scmp.eq.s32.totalorder %s16, 3
      %p175 = por %p173, %p174
      %p176 = scmp.ne.s32.totalorder %s168, %s171
      %p177 = scmp.eq.s32.totalorder %s16, 0
      %p178 = por %p176, %p177
      %p179 = scmp.ne.s32.totalorder %s168, %s171
      %p180 = scmp.eq.s32.totalorder %s21, 3
      %p181 = por %p179, %p180
      %p182 = scmp.ne.s32.totalorder %s171, %s172
      %p183 = scmp.eq.s32.totalorder %s21, 0
      %p184 = por %p182, %p183
      %p185 = scmp.ne.s32.totalorder %s171, %s172
      %p186 = scmp.eq.s32.totalorder %s22, 3
      %p187 = por %p185, %p186
      %p189 = scmp.ne.s32.totalorder %s172, %s188
      %p190 = scmp.eq.s32.totalorder %s22, 0
      %p191 = por %p189, %p190
      %s192 = ssub.s32 %s23, %s35
      %p193 = scmp.eq.s32.totalorder %s192, 0
      %s195 = sadd.s32 %s194, 1
      %s196 = scalar_select %p193, %s194, %s195
      %p199 = pneg %p193
      %p200 = scmp.eq.s32.totalorder %s16, 3
      %p201 = por %p199, %p200
      %p202 = scmp.ne.s32.totalorder %s194, %s197
      %p203 = scmp.eq.s32.totalorder %s16, 0
      %p204 = por %p202, %p203
      %p205 = scmp.ne.s32.totalorder %s194, %s197
      %p206 = scmp.eq.s32.totalorder %s21, 3
      %p207 = por %p205, %p206
      %p208 = scmp.ne.s32.totalorder %s197, %s198
      %p209 = scmp.eq.s32.totalorder %s21, 0
      %p210 = por %p208, %p209
      %p211 = scmp.ne.s32.totalorder %s197, %s198
      %p212 = scmp.eq.s32.totalorder %s22, 3
      %p213 = por %p211, %p212
      %p215 = scmp.ne.s32.totalorder %s198, %s214
      %p216 = scmp.eq.s32.totalorder %s22, 0
      %p217 = por %p215, %p216
      %p218 = scmp.le.s32.totalorder 1, %s16
      %p219 = scmp.lt.s32.totalorder %s16, 5
      %p220 = pnand %p218, %p219
      %p221 = pneg %p220
      // Predicated region
      $region9: #{_lambda_.10} parent=5 // pred_check
        _
      $region10: #{_lambda_.10} parent=5 // pred_check_branch
        %223 = sbr.rel (%p220) target = $region12
      $region11: #{_lambda_.10} parent=5 // pred_region
        %s224 = ssub.s32 %s16, 1
      $region12: #{_lambda_.10} parent=5 // pred_fallthru
        _
      %p225 = scmp.lt.s32.totalorder %s16, 4
      // Predicated region
      $region13: #{_lambda_.10} parent=5 // pred_check
        %p226 = pneg %p225
      $region14: #{_lambda_.10} parent=5 // pred_check_branch
        %228 = sbr.rel (%p226) target = $region16
      $region15: #{_lambda_.10} parent=5 // pred_region
        // Predicated region
        $region17: #{_lambda_.10} parent=15 // pred_check
          %p229 = pneg %p48
        $region18: #{_lambda_.10} parent=15 // pred_check_branch
          %231 = sbr.rel (%p229) target = $region20
        $region19: #{_lambda_.10} parent=15 // pred_region
          %s232 = smul.u32 2, %s23
          %p233 = scmp.lt.s32.totalorder %s232, 3
          %s234 = scalar_select %p233, %s232, 3
          %s235 = smul.addr %s234, 4
          %s236 = scalar_lea.vmem %s0, %s235
          %s237 = smul.u32 2, %s23
        $region20: #{_lambda_.10} parent=15 // pred_fallthru
          _
        // Predicated region
        $region21: #{_lambda_.10} parent=15 // pred_check
          %p238 = pneg %p74
        $region22: #{_lambda_.10} parent=15 // pred_check_branch
          %240 = sbr.rel (%p238) target = $region24
        $region23: #{_lambda_.10} parent=15 // pred_region
          %p241 = scmp.lt.s32.totalorder %s24, 1
          %s242 = scalar_select %p241, %s24, 1
          %s243 = smul.addr %s242, 64
          %s244 = smul.addr %s243, 4
          %s245 = scalar_lea.vmem %s1, %s244
        $region24: #{_lambda_.10} parent=15 // pred_fallthru
          _
        // Predicated region
        $region25: #{_lambda_.10} parent=15 // pred_check
          %p246 = pneg %p100
        $region26: #{_lambda_.10} parent=15 // pred_check_branch
          %248 = sbr.rel (%p246) target = $region28
        $region27: #{_lambda_.10} parent=15 // pred_region
          %p249 = scmp.lt.s32.totalorder %s24, 1
          %s250 = scalar_select %p249, %s24, 1
          %s251 = smul.addr %s250, 4
          %s252 = scalar_lea.vmem %s2, %s251
        $region28: #{_lambda_.10} parent=15 // pred_fallthru
          _
        // Predicated region
        $region29: #{_lambda_.10} parent=15 // pred_check
          %p253 = pneg %p126
        $region30: #{_lambda_.10} parent=15 // pred_check_branch
          %255 = sbr.rel (%p253) target = $region32
        $region31: #{_lambda_.10} parent=15 // pred_region
          %p256 = scmp.lt.s32.totalorder %s24, 1
          %s257 = scalar_select %p256, %s24, 1
          %s258 = smul.addr %s257, 64
          %s259 = smul.addr %s258, 4
          %s260 = scalar_lea.vmem %s3, %s259
        $region32: #{_lambda_.10} parent=15 // pred_fallthru
          _
        // Predicated region
        $region33: #{_lambda_.10} parent=15 // pred_check
          %p261 = pneg %p152
        $region34: #{_lambda_.10} parent=15 // pred_check_branch
          %263 = sbr.rel (%p261) target = $region36
        $region35: #{_lambda_.10} parent=15 // pred_region
          %p264 = scmp.lt.s32.totalorder %s24, 1
          %s265 = scalar_select %p264, %s24, 1
          %s266 = scalar_lea.vmem %s4, %s265
        $region36: #{_lambda_.10} parent=15 // pred_fallthru
          _
      $region16: #{_lambda_.10} parent=5 // pred_fallthru
        _
      %p267 = scmp.le.s32.totalorder 1, %s16
      %p268 = scmp.lt.s32.totalorder %s16, 5
      %p269 = pnand %p267, %p268
      %p270 = pneg %p269
      // Predicated region
      $region37: #{_lambda_.10} parent=5 // pred_check
        _
      $region38: #{_lambda_.10} parent=5 // pred_check_branch
        %272 = sbr.rel (%p269) target = $region40
      $region39: #{_lambda_.10} parent=5 // pred_region
        %s273 = ssub.s32 %s16, 1
        %s274 = smul.u32 2, %s25
        %p275 = scmp.lt.s32.totalorder %s274, 3
        %s276 = scalar_select %p275, %s274, 3
        %s277 = smul.addr %s276, 4
        %s278 = scalar_lea.vmem %s0, %s277
        %p279 = pneg %p54
        %p280 = pneg %p51
        %p281 = scmp.lt.s32.totalorder %s26, 1
        %s282 = scalar_select %p281, %s26, 1
        %s283 = smul.addr %s282, 64
        %s284 = smul.addr %s283, 4
        %s285 = scalar_lea.vmem %s1, %s284
        %p286 = pneg %p80
        %p287 = pneg %p77
        %p288 = scmp.lt.s32.totalorder %s26, 1
        %s289 = scalar_select %p288, %s26, 1
        %s290 = smul.addr %s289, 4
        %s291 = scalar_lea.vmem %s2, %s290
        %p292 = pneg %p106
        %p293 = pneg %p103
        %p294 = scmp.lt.s32.totalorder %s26, 1
        %s295 = scalar_select %p294, %s26, 1
        %s296 = smul.addr %s295, 64
        %s297 = smul.addr %s296, 4
        %s298 = scalar_lea.vmem %s3, %s297
        %p299 = pneg %p132
        %p300 = pneg %p129
        %p301 = scmp.lt.s32.totalorder %s26, 1
        %s302 = scalar_select %p301, %s26, 1
        %s303 = scalar_lea.vmem %s4, %s302
        %p304 = pneg %p158
        %p305 = pneg %p155
        %p306 = pneg %p184
        %p307 = pneg %p181
        %s308 = sand.u32 %s171, 1
        %s309 = scalar_lea.sflag [#allocation4], %s308
        %s310 = sand.u32 %s171, 1
        %s311 = smul.addr %s310, 8
        %s312 = scalar_lea.vmem [#allocation3], %s311
        %p313 = pneg %p210
        %p314 = pneg %p207
        %s315 = smul.u32 2, %s25
        %p316 = scmp.lt.s32.totalorder %s315, 3
        %s317 = scalar_select %p316, %s315, 3
        %s318 = smul.addr %s317, 8
        %s319 = scalar_lea.vmem %s6, %s318
        %s320 = smul.u32 2, %s25
        %p321 = scmp.lt.s32.totalorder %s320, 3
        %s322 = scalar_select %p321, %s320, 3
        %s323 = smul.addr %s322, 4
        %s324 = scalar_lea.vmem %s0, %s323
        %s325 = smul.u32 2, %s25
        %p326 = scmp.lt.s32.totalorder %s26, 1
        %s327 = scalar_select %p326, %s26, 1
        %s328 = smul.addr %s327, 64
        %s329 = smul.addr %s328, 4
        %s330 = scalar_lea.vmem %s1, %s329
        %p331 = scmp.lt.s32.totalorder %s26, 1
        %s332 = scalar_select %p331, %s26, 1
        %s333 = smul.addr %s332, 4
        %s334 = scalar_lea.vmem %s2, %s333
        %p335 = scmp.lt.s32.totalorder %s26, 1
        %s336 = scalar_select %p335, %s26, 1
        %s337 = smul.addr %s336, 64
        %s338 = smul.addr %s337, 4
        %s339 = scalar_lea.vmem %s3, %s338
        %p340 = scmp.lt.s32.totalorder %s26, 1
        %s341 = scalar_select %p340, %s26, 1
        %s342 = scalar_lea.vmem %s4, %s341
        %s343 = smul.u32 2, %s25
        %s344 = smul.u32 2, %s25
        %p345 = scmp.lt.s32.totalorder %s344, 3
        %s346 = scalar_select %p345, %s344, 3
        %s347 = smul.addr %s346, 8
        %s348 = scalar_lea.vmem %s6, %s347
        %s349 = smul.u32 2, %s25
        %p351 = scmp.eq.s32.totalorder %s26, 0
        // Predicated region
        $region41: #{_lambda_.10} parent=39 // pred_check
          %p352 = pneg %p351
        $region42: #{_lambda_.10} parent=39 // pred_check_branch
          %354 = sbr.rel (%p352) target = $region44
        $region43: #{_lambda_.10} parent=39 // pred_region
          %v355 = vld [vmem:[%s324] sm:$0xf]
          %v356 = vld [vmem:[%s324 + $0x4] sm:$0xf]
          %v357 = vunpack.c.l.bf16 %v355
          %v358 = vunpack.c.l.bf16 %v356
          %359 = vst [vmem:[#allocation2] sm:$0xff] %v357
          %360 = vst [vmem:[#allocation2 + $0x8] sm:$0xff] %v358
        $region44: #{_lambda_.10} parent=39 // pred_fallthru
          _
        %v361 = vld [vmem:[#allocation2] sm:$0xff]
        %v362 = vld [vmem:[#allocation2 + $0x8] sm:$0xff]
        %363 = vadd.xlane.f32.xlu0 %v361
        %v364 = vpop.xlane.xlu0 %363
        %365 = vadd.xlane.f32.xlu0 %v362
        %v366 = vpop.xlane.xlu0 %365
        %v367 = vrcp.pop 128.0
        %v368 = vmul.f32 %v364, %v367
        %v369 = vmul.f32 %v366, %v367
        %v370 = vsub.f32 %v361, %v368
        %v371 = vsub.f32 %v362, %v369
        %v372 = vmul.f32 %v370, %v370
        %v373 = vmul.f32 %v371, %v371
        %374 = vadd.xlane.f32.xlu0 %v372
        %v375 = vpop.xlane.xlu0 %374
        %376 = vadd.xlane.f32.xlu0 %v373
        %v377 = vpop.xlane.xlu0 %376
        %v378 = vmul.f32 %v375, %v367
        %v379 = vmul.f32 %v377, %v367
        %v380 = vadd.f32 %v378, 1e-05
        %v381 = vadd.f32 %v379, 1e-05
        %v382 = vrsqrt.pop %v380
        %v383 = vrsqrt.pop %v381
        %v384 = vmul.f32 %v370, %v382
        %v385 = vmul.f32 %v371, %v383
        %v386 = vpack.c.bf16 %v385, %v384
        %v387 = vld [vmem:[%s330] sm:$0xff]
        %v388 = vld [vmem:[%s330 + $0x8] sm:$0xff]
        %v389 = vld [vmem:[%s330 + $0x10] sm:$0xff]
        %v390 = vld [vmem:[%s330 + $0x18] sm:$0xff]
        %v391 = vld [vmem:[%s330 + $0x20] sm:$0xff]
        %v392 = vld [vmem:[%s330 + $0x28] sm:$0xff]
        %v393 = vld [vmem:[%s330 + $0x30] sm:$0xff]
        %v394 = vld [vmem:[%s330 + $0x38] sm:$0xff]
        %v395 = vld [vmem:[%s330 + $0x40] sm:$0xff]
        %v396 = vld [vmem:[%s330 + $0x48] sm:$0xff]
        %v397 = vld [vmem:[%s330 + $0x50] sm:$0xff]
        %v398 = vld [vmem:[%s330 + $0x58] sm:$0xff]
        %v399 = vld [vmem:[%s330 + $0x60] sm:$0xff]
        %v400 = vld [vmem:[%s330 + $0x68] sm:$0xff]
        %v401 = vld [vmem:[%s330 + $0x70] sm:$0xff]
        %v402 = vld [vmem:[%s330 + $0x78] sm:$0xff]
        %v403 = vld [vmem:[%s330 + $0x80] sm:$0xff]
        %v404 = vld [vmem:[%s330 + $0x88] sm:$0xff]
        %v405 = vld [vmem:[%s330 + $0x90] sm:$0xff]
        %v406 = vld [vmem:[%s330 + $0x98] sm:$0xff]
        %v407 = vld [vmem:[%s330 + $0xa0] sm:$0xff]
        %v408 = vld [vmem:[%s330 + $0xa8] sm:$0xff]
        %v409 = vld [vmem:[%s330 + $0xb0] sm:$0xff]
        %v410 = vld [vmem:[%s330 + $0xb8] sm:$0xff]
        %v411 = vld [vmem:[%s330 + $0xc0] sm:$0xff]
        %v412 = vld [vmem:[%s330 + $0xc8] sm:$0xff]
        %v413 = vld [vmem:[%s330 + $0xd0] sm:$0xff]
        %v414 = vld [vmem:[%s330 + $0xd8] sm:$0xff]
        %v415 = vld [vmem:[%s330 + $0xe0] sm:$0xff]
        %v416 = vld [vmem:[%s330 + $0xe8] sm:$0xff]
        %v417 = vld [vmem:[%s330 + $0xf0] sm:$0xff]
        %v418 = vld [vmem:[%s330 + $0xf8] sm:$0xff]
        %v419 = vld [vmem:[%s334] sm:$0xf]
        %v421 = vlaneseq
        %v422 = vshrl.u32 %v421, 7
        %v423 = vsub.s32 0, %v422
        %v424 = vrot.slane %v419, %v423
        %v425 = vlaneseq
        %v426 = vshrl.u32 %v425, 7
        %v427 = vsub.s32 1, %v426
        %v428 = vrot.slane %v419, %v427
        %v429 = vlaneseq
        %v430 = vshrl.u32 %v429, 7
        %v431 = vsub.s32 2, %v430
        %v432 = vrot.slane %v419, %v431
        %v433 = vlaneseq
        %v434 = vshrl.u32 %v433, 7
        %v435 = vsub.s32 3, %v434
        %v436 = vrot.slane %v419, %v435
        %v473 = vunpack.c.l.b16 %v387
        %v474 = vunpack.c.h.b16 %v387
        %v475 = vunpack.c.l.b16 %v388
        %v476 = vunpack.c.h.b16 %v388
        %v477 = vunpack.c.l.b16 %v389
        %v478 = vunpack.c.h.b16 %v389
        %v479 = vunpack.c.l.b16 %v390
        %v480 = vunpack.c.h.b16 %v390
        %v481 = vunpack.c.l.b16 %v391
        %v482 = vunpack.c.h.b16 %v391
        %v483 = vunpack.c.l.b16 %v392
        %v484 = vunpack.c.h.b16 %v392
        %v485 = vunpack.c.l.b16 %v393
        %v486 = vunpack.c.h.b16 %v393
        %v487 = vunpack.c.l.b16 %v394
        %v488 = vunpack.c.h.b16 %v394
        %v489 = vunpack.c.l.b16 %v395
        %v490 = vunpack.c.h.b16 %v395
        %v491 = vunpack.c.l.b16 %v396
        %v492 = vunpack.c.h.b16 %v396
        %v493 = vunpack.c.l.b16 %v397
        %v494 = vunpack.c.h.b16 %v397
        %v495 = vunpack.c.l.b16 %v398
        %v496 = vunpack.c.h.b16 %v398
        %v497 = vunpack.c.l.b16 %v399
        %v498 = vunpack.c.h.b16 %v399
        %v499 = vunpack.c.l.b16 %v400
        %v500 = vunpack.c.h.b16 %v400
        %v501 = vunpack.c.l.b16 %v401
        %v502 = vunpack.c.h.b16 %v401
        %v503 = vunpack.c.l.b16 %v402
        %v504 = vunpack.c.h.b16 %v402
        %v505 = vunpack.c.l.b16 %v403
        %v506 = vunpack.c.h.b16 %v403
        %v507 = vunpack.c.l.b16 %v404
        %v508 = vunpack.c.h.b16 %v404
        %v509 = vunpack.c.l.b16 %v405
        %v510 = vunpack.c.h.b16 %v405
        %v511 = vunpack.c.l.b16 %v406
        %v512 = vunpack.c.h.b16 %v406
        %v513 = vunpack.c.l.b16 %v407
        %v514 = vunpack.c.h.b16 %v407
        %v515 = vunpack.c.l.b16 %v408
        %v516 = vunpack.c.h.b16 %v408
        %v517 = vunpack.c.l.b16 %v409
        %v518 = vunpack.c.h.b16 %v409
        %v519 = vunpack.c.l.b16 %v410
        %v520 = vunpack.c.h.b16 %v410
        %v521 = vunpack.c.l.b16 %v411
        %v522 = vunpack.c.h.b16 %v411
        %v523 = vunpack.c.l.b16 %v412
        %v524 = vunpack.c.h.b16 %v412
        %v525 = vunpack.c.l.b16 %v413
        %v526 = vunpack.c.h.b16 %v413
        %v527 = vunpack.c.l.b16 %v414
        %v528 = vunpack.c.h.b16 %v414
        %v529 = vunpack.c.l.b16 %v415
        %v530 = vunpack.c.h.b16 %v415
        %v531 = vunpack.c.l.b16 %v416
        %v532 = vunpack.c.h.b16 %v416
        %v533 = vunpack.c.l.b16 %v417
        %v534 = vunpack.c.h.b16 %v417
        %v535 = vunpack.c.l.b16 %v418
        %v536 = vunpack.c.h.b16 %v418
        %v537 = vpack.c.b16 %v477, %v473
        %v538 = vpack.c.b16 %v478, %v474
        %v539 = vpack.c.b16 %v479, %v475
        %v540 = vpack.c.b16 %v480, %v476
        %v541 = vpack.c.b16 %v485, %v481
        %v542 = vpack.c.b16 %v486, %v482
        %v543 = vpack.c.b16 %v487, %v483
        %v544 = vpack.c.b16 %v488, %v484
        %v545 = vpack.c.b16 %v493, %v489
        %v546 = vpack.c.b16 %v494, %v490
        %v547 = vpack.c.b16 %v495, %v491
        %v548 = vpack.c.b16 %v496, %v492
        %v549 = vpack.c.b16 %v501, %v497
        %v550 = vpack.c.b16 %v502, %v498
        %v551 = vpack.c.b16 %v503, %v499
        %v552 = vpack.c.b16 %v504, %v500
        %v553 = vpack.c.b16 %v509, %v505
        %v554 = vpack.c.b16 %v510, %v506
        %v555 = vpack.c.b16 %v511, %v507
        %v556 = vpack.c.b16 %v512, %v508
        %v557 = vpack.c.b16 %v517, %v513
        %v558 = vpack.c.b16 %v518, %v514
        %v559 = vpack.c.b16 %v519, %v515
        %v560 = vpack.c.b16 %v520, %v516
        %v561 = vpack.c.b16 %v525, %v521
        %v562 = vpack.c.b16 %v526, %v522
        %v563 = vpack.c.b16 %v527, %v523
        %v564 = vpack.c.b16 %v528, %v524
        %v565 = vpack.c.b16 %v533, %v529
        %v566 = vpack.c.b16 %v534, %v530
        %v567 = vpack.c.b16 %v535, %v531
        %v568 = vpack.c.b16 %v536, %v532
        %601 = vmatprep.subr.bf16.mxu0 %v538
        %602 = vmatpush1.bf16.msra.mxu0 %v537
        %603 = vmatprep.subr.bf16.mxu0 %v542
        %604 = vmatpush1.bf16.msra.mxu0 %v541
        %605 = vmatprep.subr.bf16.mxu0 %v546
        %606 = vmatpush1.bf16.msra.mxu0 %v545
        %607 = vmatprep.subr.bf16.mxu0 %v550
        %608 = vmatpush1.bf16.msra.mxu0 %v549
        %609 = vmatprep.subr.bf16.mxu0 %v554
        %610 = vmatpush1.bf16.msra.mxu0 %v553
        %611 = vmatprep.subr.bf16.mxu0 %v558
        %612 = vmatpush1.bf16.msra.mxu0 %v557
        %613 = vmatprep.subr.bf16.mxu0 %v562
        %614 = vmatpush1.bf16.msra.mxu0 %v561
        %615 = vmatprep.subr.bf16.mxu0 %v566
        %616 = vmatpush1.bf16.msra.mxu0 %v565
        %617 = vmatprep.subr.bf16.mxu0 0
        %618 = vmatpush1.bf16.msra.mxu0 0
        %619 = vmatprep.subr.bf16.mxu0 0
        %620 = vmatpush1.bf16.msra.mxu0 0
        %621 = vmatprep.subr.bf16.mxu0 0
        %622 = vmatpush1.bf16.msra.mxu0 0
        %623 = vmatprep.subr.bf16.mxu0 0
        %624 = vmatpush1.bf16.msra.mxu0 0
        %625 = vmatprep.subr.bf16.mxu0 0
        %626 = vmatpush1.bf16.msra.mxu0 0
        %627 = vmatprep.subr.bf16.mxu0 0
        %628 = vmatpush1.bf16.msra.mxu0 0
        %629 = vmatprep.subr.bf16.mxu0 0
        %630 = vmatpush1.bf16.msra.mxu0 0
        %631 = vmatprep.subr.bf16.mxu0 0
        %632 = vmatpush1.bf16.msra.mxu0 0
        %633 = vmatprep.mubr.bf16.mxu0 0
        %634 = vmatmul.mubr.bf16.gmra.mrb[0].mxu0 %v386
        %v635 = vpop.f32.mrb[0].mxu0
        %v636 = vadd.f32 %v424, %v635
        %v637 = vpop.f32.mrb[0].mxu0
        %v638 = vadd.f32 %v428, %v637
        %v639 = vpop.f32.mrb[0].mxu0
        %v640 = vadd.f32 %v424, %v639
        %v641 = vpop.f32.mrb[0].mxu0
        %v642 = vadd.f32 %v428, %v641
        %643 = vdwg.mxu0
        %644 = vmatprep.subr.bf16.mxu0 %v540
        %645 = vmatpush1.bf16.msra.mxu0 %v539
        %646 = vmatprep.subr.bf16.mxu0 %v544
        %647 = vmatpush1.bf16.msra.mxu0 %v543
        %648 = vmatprep.subr.bf16.mxu0 %v548
        %649 = vmatpush1.bf16.msra.mxu0 %v547
        %650 = vmatprep.subr.bf16.mxu0 %v552
        %651 = vmatpush1.bf16.msra.mxu0 %v551
        %652 = vmatprep.subr.bf16.mxu0 %v556
        %653 = vmatpush1.bf16.msra.mxu0 %v555
        %654 = vmatprep.subr.bf16.mxu0 %v560
        %655 = vmatpush1.bf16.msra.mxu0 %v559
        %656 = vmatprep.subr.bf16.mxu0 %v564
        %657 = vmatpush1.bf16.msra.mxu0 %v563
        %658 = vmatprep.subr.bf16.mxu0 %v568
        %659 = vmatpush1.bf16.msra.mxu0 %v567
        %660 = vmatprep.subr.bf16.mxu0 0
        %661 = vmatpush1.bf16.msra.mxu0 0
        %662 = vmatprep.subr.bf16.mxu0 0
        %663 = vmatpush1.bf16.msra.mxu0 0
        %664 = vmatprep.subr.bf16.mxu0 0
        %665 = vmatpush1.bf16.msra.mxu0 0
        %666 = vmatprep.subr.bf16.mxu0 0
        %667 = vmatpush1.bf16.msra.mxu0 0
        %668 = vmatprep.subr.bf16.mxu0 0
        %669 = vmatpush1.bf16.msra.mxu0 0
        %670 = vmatprep.subr.bf16.mxu0 0
        %671 = vmatpush1.bf16.msra.mxu0 0
        %672 = vmatprep.subr.bf16.mxu0 0
        %673 = vmatpush1.bf16.msra.mxu0 0
        %674 = vmatprep.subr.bf16.mxu0 0
        %675 = vmatpush1.bf16.msra.mxu0 0
        %676 = vmatprep.mubr.bf16.mxu0 0
        %677 = vmatmul.mubr.bf16.gmra.mrb[0].mxu0 %v386
        %v678 = vpop.f32.mrb[0].mxu0
        %v679 = vadd.f32 %v432, %v678
        %v680 = vpop.f32.mrb[0].mxu0
        %v681 = vadd.f32 %v436, %v680
        %v682 = vpop.f32.mrb[0].mxu0
        %v683 = vadd.f32 %v432, %v682
        %v684 = vpop.f32.mrb[0].mxu0
        %v685 = vadd.f32 %v436, %v684
        %686 = vdwg.mxu0
        %v687 = vmul.f32 %v636, %v636
        %v688 = vmul.f32 %v638, %v638
        %v689 = vmul.f32 %v679, %v679
        %v690 = vmul.f32 %v681, %v681
        %v691 = vmul.f32 %v640, %v640
        %v692 = vmul.f32 %v642, %v642
        %v693 = vmul.f32 %v683, %v683
        %v694 = vmul.f32 %v685, %v685
        %v695 = vmul.f32 %v636, %v687
        %v696 = vmul.f32 %v638, %v688
        %v697 = vmul.f32 %v679, %v689
        %v698 = vmul.f32 %v681, %v690
        %v699 = vmul.f32 %v640, %v691
        %v700 = vmul.f32 %v642, %v692
        %v701 = vmul.f32 %v683, %v693
        %v702 = vmul.f32 %v685, %v694
        %v703 = vmul.f32 %v695, 0.044715
        %v704 = vmul.f32 %v696, 0.044715
        %v705 = vmul.f32 %v697, 0.044715
        %v706 = vmul.f32 %v698, 0.044715
        %v707 = vmul.f32 %v699, 0.044715
        %v708 = vmul.f32 %v700, 0.044715
        %v709 = vmul.f32 %v701, 0.044715
        %v710 = vmul.f32 %v702, 0.044715
        %v711 = vadd.f32 %v636, %v703
        %v712 = vadd.f32 %v638, %v704
        %v713 = vadd.f32 %v679, %v705
        %v714 = vadd.f32 %v681, %v706
        %v715 = vadd.f32 %v640, %v707
        %v716 = vadd.f32 %v642, %v708
        %v717 = vadd.f32 %v683, %v709
        %v718 = vadd.f32 %v685, %v710
        %v719 = vmul.f32 %v711, 0.7978846
        %v720 = vmul.f32 %v712, 0.7978846
        %v721 = vmul.f32 %v713, 0.7978846
        %v722 = vmul.f32 %v714, 0.7978846
        %v723 = vmul.f32 %v715, 0.7978846
        %v724 = vmul.f32 %v716, 0.7978846
        %v725 = vmul.f32 %v717, 0.7978846
        %v726 = vmul.f32 %v718, 0.7978846
        %v727 = vtanh.pop %v719
        %v728 = vtanh.pop %v720
        %v729 = vtanh.pop %v721
        %v730 = vtanh.pop %v722
        %v731 = vtanh.pop %v723
        %v732 = vtanh.pop %v724
        %v733 = vtanh.pop %v725
        %v734 = vtanh.pop %v726
        %v735 = vadd.f32 %v727, 1.0
        %v736 = vadd.f32 %v728, 1.0
        %v737 = vadd.f32 %v729, 1.0
        %v738 = vadd.f32 %v730, 1.0
        %v739 = vadd.f32 %v731, 1.0
        %v740 = vadd.f32 %v732, 1.0
        %v741 = vadd.f32 %v733, 1.0
        %v742 = vadd.f32 %v734, 1.0
        %v743 = vmul.f32 %v735, 0.5
        %v744 = vmul.f32 %v736, 0.5
        %v745 = vmul.f32 %v737, 0.5
        %v746 = vmul.f32 %v738, 0.5
        %v747 = vmul.f32 %v739, 0.5
        %v748 = vmul.f32 %v740, 0.5
        %v749 = vmul.f32 %v741, 0.5
        %v750 = vmul.f32 %v742, 0.5
        %v751 = vmul.f32 %v636, %v743
        %v752 = vmul.f32 %v638, %v744
        %v753 = vmul.f32 %v679, %v745
        %v754 = vmul.f32 %v681, %v746
        %v755 = vmul.f32 %v640, %v747
        %v756 = vmul.f32 %v642, %v748
        %v757 = vmul.f32 %v683, %v749
        %v758 = vmul.f32 %v685, %v750
        %v759 = vpack.c.bf16 %v755, %v751
        %v760 = vpack.c.bf16 %v756, %v752
        %v761 = vpack.c.bf16 %v757, %v753
        %v762 = vpack.c.bf16 %v758, %v754
        %v763 = vld [vmem:[%s339] sm:$0xf]
        %v764 = vld [vmem:[%s339 + $0x4] sm:$0xf]
        %v765 = vld [vmem:[%s339 + $0x8] sm:$0xf]
        %v766 = vld [vmem:[%s339 + $0xc] sm:$0xf]
        %v767 = vld [vmem:[%s339 + $0x10] sm:$0xf]
        %v768 = vld [vmem:[%s339 + $0x14] sm:$0xf]
        %v769 = vld [vmem:[%s339 + $0x18] sm:$0xf]
        %v770 = vld [vmem:[%s339 + $0x1c] sm:$0xf]
        %v771 = vld [vmem:[%s339 + $0x20] sm:$0xf]
        %v772 = vld [vmem:[%s339 + $0x24] sm:$0xf]
        %v773 = vld [vmem:[%s339 + $0x28] sm:$0xf]
        %v774 = vld [vmem:[%s339 + $0x2c] sm:$0xf]
        %v775 = vld [vmem:[%s339 + $0x30] sm:$0xf]
        %v776 = vld [vmem:[%s339 + $0x34] sm:$0xf]
        %v777 = vld [vmem:[%s339 + $0x38] sm:$0xf]
        %v778 = vld [vmem:[%s339 + $0x3c] sm:$0xf]
        %v779 = vld [vmem:[%s339 + $0x40] sm:$0xf]
        %v780 = vld [vmem:[%s339 + $0x44] sm:$0xf]
        %v781 = vld [vmem:[%s339 + $0x48] sm:$0xf]
        %v782 = vld [vmem:[%s339 + $0x4c] sm:$0xf]
        %v783 = vld [vmem:[%s339 + $0x50] sm:$0xf]
        %v784 = vld [vmem:[%s339 + $0x54] sm:$0xf]
        %v785 = vld [vmem:[%s339 + $0x58] sm:$0xf]
        %v786 = vld [vmem:[%s339 + $0x5c] sm:$0xf]
        %v787 = vld [vmem:[%s339 + $0x60] sm:$0xf]
        %v788 = vld [vmem:[%s339 + $0x64] sm:$0xf]
        %v789 = vld [vmem:[%s339 + $0x68] sm:$0xf]
        %v790 = vld [vmem:[%s339 + $0x6c] sm:$0xf]
        %v791 = vld [vmem:[%s339 + $0x70] sm:$0xf]
        %v792 = vld [vmem:[%s339 + $0x74] sm:$0xf]
        %v793 = vld [vmem:[%s339 + $0x78] sm:$0xf]
        %v794 = vld [vmem:[%s339 + $0x7c] sm:$0xf]
        %v795 = vld [vmem:[%s339 + $0x80] sm:$0xf]
        %v796 = vld [vmem:[%s339 + $0x84] sm:$0xf]
        %v797 = vld [vmem:[%s339 + $0x88] sm:$0xf]
        %v798 = vld [vmem:[%s339 + $0x8c] sm:$0xf]
        %v799 = vld [vmem:[%s339 + $0x90] sm:$0xf]
        %v800 = vld [vmem:[%s339 + $0x94] sm:$0xf]
        %v801 = vld [vmem:[%s339 + $0x98] sm:$0xf]
        %v802 = vld [vmem:[%s339 + $0x9c] sm:$0xf]
        %v803 = vld [vmem:[%s339 + $0xa0] sm:$0xf]
        %v804 = vld [vmem:[%s339 + $0xa4] sm:$0xf]
        %v805 = vld [vmem:[%s339 + $0xa8] sm:$0xf]
        %v806 = vld [vmem:[%s339 + $0xac] sm:$0xf]
        %v807 = vld [vmem:[%s339 + $0xb0] sm:$0xf]
        %v808 = vld [vmem:[%s339 + $0xb4] sm:$0xf]
        %v809 = vld [vmem:[%s339 + $0xb8] sm:$0xf]
        %v810 = vld [vmem:[%s339 + $0xbc] sm:$0xf]
        %v811 = vld [vmem:[%s339 + $0xc0] sm:$0xf]
        %v812 = vld [vmem:[%s339 + $0xc4] sm:$0xf]
        %v813 = vld [vmem:[%s339 + $0xc8] sm:$0xf]
        %v814 = vld [vmem:[%s339 + $0xcc] sm:$0xf]
        %v815 = vld [vmem:[%s339 + $0xd0] sm:$0xf]
        %v816 = vld [vmem:[%s339 + $0xd4] sm:$0xf]
        %v817 = vld [vmem:[%s339 + $0xd8] sm:$0xf]
        %v818 = vld [vmem:[%s339 + $0xdc] sm:$0xf]
        %v819 = vld [vmem:[%s339 + $0xe0] sm:$0xf]
        %v820 = vld [vmem:[%s339 + $0xe4] sm:$0xf]
        %v821 = vld [vmem:[%s339 + $0xe8] sm:$0xf]
        %v822 = vld [vmem:[%s339 + $0xec] sm:$0xf]
        %v823 = vld [vmem:[%s339 + $0xf0] sm:$0xf]
        %v824 = vld [vmem:[%s339 + $0xf4] sm:$0xf]
        %v825 = vld [vmem:[%s339 + $0xf8] sm:$0xf]
        %v826 = vld [vmem:[%s339 + $0xfc] sm:$0xf]
        %v827 = vld [vmem:[%s342] sm:$0x1]
        %v829 = vlaneseq
        %v830 = vshrl.u32 %v829, 7
        %v831 = vsub.s32 0, %v830
        %v832 = vrot.slane %v827, %v831
        %v898 = vunpack.c.l.b16 %v763
        %v899 = vunpack.c.l.b16 %v764
        %v900 = vunpack.c.l.b16 %v765
        %v901 = vunpack.c.l.b16 %v766
        %v902 = vunpack.c.l.b16 %v767
        %v903 = vunpack.c.l.b16 %v768
        %v904 = vunpack.c.l.b16 %v769
        %v905 = vunpack.c.l.b16 %v770
        %v906 = vunpack.c.l.b16 %v771
        %v907 = vunpack.c.l.b16 %v772
        %v908 = vunpack.c.l.b16 %v773
        %v909 = vunpack.c.l.b16 %v774
        %v910 = vunpack.c.l.b16 %v775
        %v911 = vunpack.c.l.b16 %v776
        %v912 = vunpack.c.l.b16 %v777
        %v913 = vunpack.c.l.b16 %v778
        %v914 = vunpack.c.l.b16 %v779
        %v915 = vunpack.c.l.b16 %v780
        %v916 = vunpack.c.l.b16 %v781
        %v917 = vunpack.c.l.b16 %v782
        %v918 = vunpack.c.l.b16 %v783
        %v919 = vunpack.c.l.b16 %v784
        %v920 = vunpack.c.l.b16 %v785
        %v921 = vunpack.c.l.b16 %v786
        %v922 = vunpack.c.l.b16 %v787
        %v923 = vunpack.c.l.b16 %v788
        %v924 = vunpack.c.l.b16 %v789
        %v925 = vunpack.c.l.b16 %v790
        %v926 = vunpack.c.l.b16 %v791
        %v927 = vunpack.c.l.b16 %v792
        %v928 = vunpack.c.l.b16 %v793
        %v929 = vunpack.c.l.b16 %v794
        %v930 = vunpack.c.l.b16 %v795
        %v931 = vunpack.c.l.b16 %v796
        %v932 = vunpack.c.l.b16 %v797
        %v933 = vunpack.c.l.b16 %v798
        %v934 = vunpack.c.l.b16 %v799
        %v935 = vunpack.c.l.b16 %v800
        %v936 = vunpack.c.l.b16 %v801
        %v937 = vunpack.c.l.b16 %v802
        %v938 = vunpack.c.l.b16 %v803
        %v939 = vunpack.c.l.b16 %v804
        %v940 = vunpack.c.l.b16 %v805
        %v941 = vunpack.c.l.b16 %v806
        %v942 = vunpack.c.l.b16 %v807
        %v943 = vunpack.c.l.b16 %v808
        %v944 = vunpack.c.l.b16 %v809
        %v945 = vunpack.c.l.b16 %v810
        %v946 = vunpack.c.l.b16 %v811
        %v947 = vunpack.c.l.b16 %v812
        %v948 = vunpack.c.l.b16 %v813
        %v949 = vunpack.c.l.b16 %v814
        %v950 = vunpack.c.l.b16 %v815
        %v951 = vunpack.c.l.b16 %v816
        %v952 = vunpack.c.l.b16 %v817
        %v953 = vunpack.c.l.b16 %v818
        %v954 = vunpack.c.l.b16 %v819
        %v955 = vunpack.c.l.b16 %v820
        %v956 = vunpack.c.l.b16 %v821
        %v957 = vunpack.c.l.b16 %v822
        %v958 = vunpack.c.l.b16 %v823
        %v959 = vunpack.c.l.b16 %v824
        %v960 = vunpack.c.l.b16 %v825
        %v961 = vunpack.c.l.b16 %v826
        %v962 = vpack.c.b16 %v899, %v898
        %v963 = vpack.c.b16 %v901, %v900
        %v964 = vpack.c.b16 %v903, %v902
        %v965 = vpack.c.b16 %v905, %v904
        %v966 = vpack.c.b16 %v907, %v906
        %v967 = vpack.c.b16 %v909, %v908
        %v968 = vpack.c.b16 %v911, %v910
        %v969 = vpack.c.b16 %v913, %v912
        %v970 = vpack.c.b16 %v915, %v914
        %v971 = vpack.c.b16 %v917, %v916
        %v972 = vpack.c.b16 %v919, %v918
        %v973 = vpack.c.b16 %v921, %v920
        %v974 = vpack.c.b16 %v923, %v922
        %v975 = vpack.c.b16 %v925, %v924
        %v976 = vpack.c.b16 %v927, %v926
        %v977 = vpack.c.b16 %v929, %v928
        %v978 = vpack.c.b16 %v931, %v930
        %v979 = vpack.c.b16 %v933, %v932
        %v980 = vpack.c.b16 %v935, %v934
        %v981 = vpack.c.b16 %v937, %v936
        %v982 = vpack.c.b16 %v939, %v938
        %v983 = vpack.c.b16 %v941, %v940
        %v984 = vpack.c.b16 %v943, %v942
        %v985 = vpack.c.b16 %v945, %v944
        %v986 = vpack.c.b16 %v947, %v946
        %v987 = vpack.c.b16 %v949, %v948
        %v988 = vpack.c.b16 %v951, %v950
        %v989 = vpack.c.b16 %v953, %v952
        %v990 = vpack.c.b16 %v955, %v954
        %v991 = vpack.c.b16 %v957, %v956
        %v992 = vpack.c.b16 %v959, %v958
        %v993 = vpack.c.b16 %v961, %v960
        %1026 = vmatprep.subr.bf16.mxu0 0
        %1027 = vmatpush1.bf16.msra.mxu0 %v962
        %1028 = vmatprep.subr.bf16.mxu0 0
        %1029 = vmatpush1.bf16.msra.mxu0 %v963
        %1030 = vmatprep.subr.bf16.mxu0 0
        %1031 = vmatpush1.bf16.msra.mxu0 %v964
        %1032 = vmatprep.subr.bf16.mxu0 0
        %1033 = vmatpush1.bf16.msra.mxu0 %v965
        %1034 = vmatprep.subr.bf16.mxu0 0
        %1035 = vmatpush1.bf16.msra.mxu0 %v966
        %1036 = vmatprep.subr.bf16.mxu0 0
        %1037 = vmatpush1.bf16.msra.mxu0 %v967
        %1038 = vmatprep.subr.bf16.mxu0 0
        %1039 = vmatpush1.bf16.msra.mxu0 %v968
        %1040 = vmatprep.subr.bf16.mxu0 0
        %1041 = vmatpush1.bf16.msra.mxu0 %v969
        %1042 = vmatprep.subr.bf16.mxu0 0
        %1043 = vmatpush1.bf16.msra.mxu0 %v970
        %1044 = vmatprep.subr.bf16.mxu0 0
        %1045 = vmatpush1.bf16.msra.mxu0 %v971
        %1046 = vmatprep.subr.bf16.mxu0 0
        %1047 = vmatpush1.bf16.msra.mxu0 %v972
        %1048 = vmatprep.subr.bf16.mxu0 0
        %1049 = vmatpush1.bf16.msra.mxu0 %v973
        %1050 = vmatprep.subr.bf16.mxu0 0
        %1051 = vmatpush1.bf16.msra.mxu0 %v974
        %1052 = vmatprep.subr.bf16.mxu0 0
        %1053 = vmatpush1.bf16.msra.mxu0 %v975
        %1054 = vmatprep.subr.bf16.mxu0 0
        %1055 = vmatpush1.bf16.msra.mxu0 %v976
        %1056 = vmatprep.subr.bf16.mxu0 0
        %1057 = vmatpush1.bf16.msra.mxu0 %v977
        %1058 = vmatprep.mubr.bf16.mxu0 %v760
        %1059 = vmatmul.mubr.bf16.gmra.mrb[0].mxu0 %v759
        %v1060 = vpop.f32.mrb[0].mxu0
        %v1061 = vadd.f32 %v832, %v1060
        %v1062 = vpop.f32.mrb[0].mxu0
        %v1063 = vpop.f32.mrb[0].mxu0
        %v1064 = vadd.f32 %v832, %v1063
        %v1065 = vpop.f32.mrb[0].mxu0
        %1066 = vdwg.mxu0
        %1067 = vmatprep.subr.bf16.mxu0 0
        %1068 = vmatpush1.bf16.msra.mxu0 %v978
        %1069 = vmatprep.subr.bf16.mxu0 0
        %1070 = vmatpush1.bf16.msra.mxu0 %v979
        %1071 = vmatprep.subr.bf16.mxu0 0
        %1072 = vmatpush1.bf16.msra.mxu0 %v980
        %1073 = vmatprep.subr.bf16.mxu0 0
        %1074 = vmatpush1.bf16.msra.mxu0 %v981
        %1075 = vmatprep.subr.bf16.mxu0 0
        %1076 = vmatpush1.bf16.msra.mxu0 %v982
        %1077 = vmatprep.subr.bf16.mxu0 0
        %1078 = vmatpush1.bf16.msra.mxu0 %v983
        %1079 = vmatprep.subr.bf16.mxu0 0
        %1080 = vmatpush1.bf16.msra.mxu0 %v984
        %1081 = vmatprep.subr.bf16.mxu0 0
        %1082 = vmatpush1.bf16.msra.mxu0 %v985
        %1083 = vmatprep.subr.bf16.mxu0 0
        %1084 = vmatpush1.bf16.msra.mxu0 %v986
        %1085 = vmatprep.subr.bf16.mxu0 0
        %1086 = vmatpush1.bf16.msra.mxu0 %v987
        %1087 = vmatprep.subr.bf16.mxu0 0
        %1088 = vmatpush1.bf16.msra.mxu0 %v988
        %1089 = vmatprep.subr.bf16.mxu0 0
        %1090 = vmatpush1.bf16.msra.mxu0 %v989
        %1091 = vmatprep.subr.bf16.mxu0 0
        %1092 = vmatpush1.bf16.msra.mxu0 %v990
        %1093 = vmatprep.subr.bf16.mxu0 0
        %1094 = vmatpush1.bf16.msra.mxu0 %v991
        %1095 = vmatprep.subr.bf16.mxu0 0
        %1096 = vmatpush1.bf16.msra.mxu0 %v992
        %1097 = vmatprep.subr.bf16.mxu0 0
        %1098 = vmatpush1.bf16.msra.mxu0 %v993
        %1099 = vmatprep.mubr.bf16.mxu0 %v762
        %1100 = vmatmul.mubr.bf16.gmra.mrb[0].mxu0 %v761
        %v1101 = vpop.f32.mrb[0].mxu0
        %v1102 = vadd.f32 %v1061, %v1101
        %v1103 = vpop.f32.mrb[0].mxu0
        %v1104 = vpop.f32.mrb[0].mxu0
        %v1105 = vadd.f32 %v1064, %v1104
        %v1106 = vpop.f32.mrb[0].mxu0
        %1107 = vdwg.mxu0
        %v1108 = vadd.f32 %v361, %v1102
        %v1109 = vadd.f32 %v362, %v1105
        %1110 = vst [vmem:[#allocation2] sm:$0xff] %v1108
        %1111 = vst [vmem:[#allocation2 + $0x8] sm:$0xff] %v1109
        // Predicated region
        $region45: #{_lambda_.10} parent=39 // pred_check
          %p1112 = pneg %p351
        $region46: #{_lambda_.10} parent=39 // pred_check_branch
          %1114 = sbr.rel (%p1112) target = $region48
        $region47: #{_lambda_.10} parent=39 // pred_region
          %1115 = vst [vmem:[%s348] sm:$0xff] %v1108
          %1116 = vst [vmem:[%s348 + $0x8] sm:$0xff] %v1109
        $region48: #{_lambda_.10} parent=39 // pred_fallthru
          _
        %p1117 = scmp.gt.s32.totalorder %s26, 0
        // Predicated region
        $region49: #{_lambda_.10} parent=39 // pred_check
          %p1118 = pneg %p1117
        $region50: #{_lambda_.10} parent=39 // pred_check_branch
          %1120 = sbr.rel (%p1118) target = $region52
        $region51: #{_lambda_.10} parent=39 // pred_region
          %v1121 = vld [vmem:[%s348] sm:$0xff]
          %v1122 = vld [vmem:[%s348 + $0x8] sm:$0xff]
          %v1123 = vadd.f32 %v1121, %v1108
          %v1124 = vadd.f32 %v1122, %v1109
          %1125 = vst [vmem:[%s348] sm:$0xff] %v1123
          %1126 = vst [vmem:[%s348 + $0x8] sm:$0xff] %v1124
        $region52: #{_lambda_.10} parent=39 // pred_fallthru
          _
        %p1127 = scmp.eq.s32.totalorder %s26, 1
        // Predicated region
        $region53: #{_lambda_.10} parent=39 // pred_check
          %p1128 = pneg %p1127
        $region54: #{_lambda_.10} parent=39 // pred_check_branch
          %1130 = sbr.rel (%p1128) target = $region56
        $region55: #{_lambda_.10} parent=39 // pred_region
          %v1131 = vpack.c.bf16 %v1109, %v1108
          %v1133 = vunpack.c.l.b16 %v1131
          %v1134 = vunpack.c.h.b16 %v1131
          %v1135 = vpack.c.b16 %v1133, %v1133
          %v1136 = vpack.c.b16 %v1134, %v1134
          %1139 = vst [vmem:[%s312] sm:$0xf] %v1135
          %1140 = vst [vmem:[%s312 + $0x4] sm:$0xf] %v1136
        $region56: #{_lambda_.10} parent=39 // pred_fallthru
          _
        %s1141 = sand.u32 %s171, 1
        %s1142 = scalar_lea.sflag [#allocation4], %s1141
        %s1143 = sand.u32 %s171, 1
        %s1144 = smul.addr %s1143, 8
        %s1145 = scalar_lea.vmem [#allocation3], %s1144
        %s1146 = smul.u32 2, %s25
        %p1147 = scmp.lt.s32.totalorder %s1146, 3
        %s1148 = scalar_select %p1147, %s1146, 3
        %s1149 = smul.addr %s1148, 8
        %s1150 = scalar_lea.vmem %s6, %s1149
        // Predicated region
        $region57: #{_lambda_.10} parent=39 // pred_check
          %p1151 = pneg %p181
        $region58: #{_lambda_.10} parent=39 // pred_check_branch
          %1153 = sbr.rel (%p1151) target = $region60
        $region59: #{_lambda_.10} parent=39 // pred_region
          %s1154 = smul.u32 2, %s25
          %s1156 = ssub.s32 128, 128
          %1157 = vsyncadd %s1142, %s1156
          %s1158 = smul.addr %s1154, 64
          %s1159 = scalar_lea.hbm %s5, %s1158
          %s1160 = sshll.u32 %s1145, 4
          %s1161 = int_to_ptr.vmem [resolvable:$true] %s1160
          %1166 = dma.vmem_to_hbm [thread:$0]  %s1161, 128, %s1159, %s1142, 64, 64, 4
        $region60: #{_lambda_.10} parent=39 // pred_fallthru
          _
        // Predicated region
        $region61: #{_lambda_.10} parent=39 // pred_check
          %p1167 = pneg %p207
        $region62: #{_lambda_.10} parent=39 // pred_check_branch
          %1169 = sbr.rel (%p1167) target = $region64
        $region63: #{_lambda_.10} parent=39 // pred_region
          %s1170 = smul.u32 2, %s25
        $region64: #{_lambda_.10} parent=39 // pred_fallthru
          _
      $region40: #{_lambda_.10} parent=5 // pred_fallthru
        _
      %p1171 = scmp.le.s32.totalorder 2, %s16
      // Predicated region
      $region65: #{_lambda_.10} parent=5 // pred_check
        %p1172 = pneg %p1171
      $region66: #{_lambda_.10} parent=5 // pred_check_branch
        %1174 = sbr.rel (%p1172) target = $region68
      $region67: #{_lambda_.10} parent=5 // pred_region
        %s1175 = ssub.s32 %s16, 2
        // Predicated region
        $region69: #{_lambda_.10} parent=67 // pred_check
          %p1176 = pneg %p187
        $region70: #{_lambda_.10} parent=67 // pred_check_branch
          %1178 = sbr.rel (%p1176) target = $region72
        $region71: #{_lambda_.10} parent=67 // pred_region
          %s1179 = sand.u32 %s172, 1
          %s1180 = scalar_lea.sflag [#allocation4], %s1179
          %s1181 = sand.u32 %s172, 1
          %s1182 = smul.addr %s1181, 8
          %s1183 = scalar_lea.vmem [#allocation3], %s1182
          %1184 = dma.done %s1180, 128
        $region72: #{_lambda_.10} parent=67 // pred_fallthru
          _
        // Predicated region
        $region73: #{_lambda_.10} parent=67 // pred_check
          %p1185 = pneg %p213
        $region74: #{_lambda_.10} parent=67 // pred_check_branch
          %1187 = sbr.rel (%p1185) target = $region76
        $region75: #{_lambda_.10} parent=67 // pred_region
          %s1188 = smul.u32 2, %s27
          %p1189 = scmp.lt.s32.totalorder %s1188, 3
          %s1190 = scalar_select %p1189, %s1188, 3
          %s1191 = smul.addr %s1190, 8
          %s1192 = scalar_lea.vmem %s6, %s1191
        $region76: #{_lambda_.10} parent=67 // pred_fallthru
          _
      $region68: #{_lambda_.10} parent=5 // pred_fallthru
        _
    $region6: #{_lambda_.10} parent=1 // loop_footer
      %s20 = sadd.s32 1, %s16
    $region7: #{_lambda_.10} parent=1 // loop_footer_branch
      %15 = sbr.rel target = $region3
    $region8: #{_lambda_.10} parent=1 // loop_exit
      _
    %1193 = vsyncpa [#allocation4], 1
    %s1194 = scalar_lea.sflag [#allocation4], 1
    %1195 = vsyncpa %s1194, 1

// kernel: _lambda_.13
$region0: #{_lambda_.13}
  #allocation0 [shape = 'u32[]', space=smem, size = 0x4, offset = 0x4, fixed_abs, tag = 'smem constant byte address 0x4 - core index']
  #allocation1 [shape = 'u32[144,128]{1,0:T(1,128)}', space=vmem, size = 0x12000, scoped, tag = 'internal scratch']
  #allocation2 [shape = 'f32[16,128]{1,0:T(8,128)}', space=vmem, size = 0x2000, scoped, tag = 'scratch operand']
  %s0 = inlined_call_operand.vmem [shape: bf16[16,128], index: 0, kind: input, shape index: {}]
  %s1 = inlined_call_operand.vmem [shape: bf16[2,128,512], index: 1, kind: input, shape index: {}]
  %s2 = inlined_call_operand.vmem [shape: f32[2,1,512], index: 2, kind: input, shape index: {}]
  %s3 = inlined_call_operand.vmem [shape: bf16[2,512,128], index: 3, kind: input, shape index: {}]
  %s4 = inlined_call_operand.vmem [shape: f32[2,1,128], index: 4, kind: input, shape index: {}]
  %s5 = inlined_call_operand.vmem [shape: bf16[16,128], index: 5, kind: output, shape index: {}]
  %s6 = sld [smem:[#allocation0]]
  $region61: #{_lambda_.13} parent=0
    _
  %s8 = ssub.s32 1, %s6
  %s9 = scalar_select 0, %s8, %s6
  loop: start=0, step=1, limit=4
  $region2: #{_lambda_.13} parent=0 // loop_pre_header
    _
  $region3: #{_lambda_.13} parent=0 // loop_header
    %s11 = sphi 0, %s15
    %p12 = scmp.ge.s32.totalorder %s11, 4
    %s18 = sphi 0, %s30
    %s19 = sphi 0, %s26
    %s20 = sphi 0, %s18
    %s21 = sphi 0, %s19
    %s22 = sphi 0, %s20
    %s23 = sphi 0, %s21
    %s33 = sphi 0, %s35
    %s36 = sphi 0, %s33
    %s37 = sphi 0, %s36
    %s53 = sphi 0, %s37
    %s59 = sphi 0, %s61
    %s62 = sphi 0, %s59
    %s63 = sphi 0, %s62
    %s79 = sphi 0, %s63
    %s85 = sphi 0, %s87
    %s88 = sphi 0, %s85
    %s89 = sphi 0, %s88
    %s105 = sphi 0, %s89
    %s111 = sphi 0, %s113
    %s114 = sphi 0, %s111
    %s115 = sphi 0, %s114
    %s131 = sphi 0, %s115
    %s137 = sphi 0, %s139
    %s140 = sphi 0, %s137
    %s141 = sphi 0, %s140
    %s157 = sphi 0, %s141
    %s163 = sphi 0, %s165
    %s166 = sphi 0, %s163
    %s167 = sphi 0, %s166
    %s183 = sphi 0, %s167
  $region4: #{_lambda_.13} parent=0 // loop_header_branch
    %14 = sbr.rel (%p12) target = $region8
  $region5: #{_lambda_.13} parent=0 // loop_body
    %s16 = ssub.s32 %s11, 1
    %s17 = ssub.s32 %s11, 2
    %s24 = sadd.s32 1, %s19
    %p25 = scmp.ge.s32.totalorder %s24, 2
    %s26 = scalar_select %p25, 0, %s24
    %s27 = sadd.s32 1, %s18
    %s28 = scalar_select %p25, %s27, %s18
    %p29 = scmp.ge.s32.totalorder %s28, 1
    %s30 = scalar_select %p29, 0, %s28
    %s31 = ssub.s32 %s18, %s30
    %p32 = scmp.eq.s32.totalorder %s31, 0
    %s34 = sadd.s32 %s33, 1
    %s35 = scalar_select %p32, %s33, %s34
    %p38 = pneg %p32
    %p39 = scmp.eq.s32.totalorder %s11, 1
    %p40 = por %p38, %p39
    %p41 = scmp.ne.s32.totalorder %s33, %s36
    %p42 = scmp.eq.s32.totalorder %s11, 0
    %p43 = por %p41, %p42
    %p44 = scmp.ne.s32.totalorder %s33, %s36
    %p45 = scmp.eq.s32.totalorder %s16, 1
    %p46 = por %p44, %p45
    %p47 = scmp.ne.s32.totalorder %s36, %s37
    %p48 = scmp.eq.s32.totalorder %s16, 0
    %p49 = por %p47, %p48
    %p50 = scmp.ne.s32.totalorder %s36, %s37
    %p51 = scmp.eq.s32.totalorder %s17, 1
    %p52 = por %p50, %p51
    %p54 = scmp.ne.s32.totalorder %s37, %s53
    %p55 = scmp.eq.s32.totalorder %s17, 0
    %p56 = por %p54, %p55
    %s57 = ssub.s32 %s19, %s26
    %p58 = scmp.eq.s32.totalorder %s57, 0
    %s60 = sadd.s32 %s59, 1
    %s61 = scalar_select %p58, %s59, %s60
    %p64 = pneg %p58
    %p65 = scmp.eq.s32.totalorder %s11, 1
    %p66 = por %p64, %p65
    %p67 = scmp.ne.s32.totalorder %s59, %s62
    %p68 = scmp.eq.s32.totalorder %s11, 0
    %p69 = por %p67, %p68
    %p70 = scmp.ne.s32.totalorder %s59, %s62
    %p71 = scmp.eq.s32.totalorder %s16, 1
    %p72 = por %p70, %p71
    %p73 = scmp.ne.s32.totalorder %s62, %s63
    %p74 = scmp.eq.s32.totalorder %s16, 0
    %p75 = por %p73, %p74
    %p76 = scmp.ne.s32.totalorder %s62, %s63
    %p77 = scmp.eq.s32.totalorder %s17, 1
    %p78 = por %p76, %p77
    %p80 = scmp.ne.s32.totalorder %s63, %s79
    %p81 = scmp.eq.s32.totalorder %s17, 0
    %p82 = por %p80, %p81
    %s83 = ssub.s32 %s19, %s26
    %p84 = scmp.eq.s32.totalorder %s83, 0
    %s86 = sadd.s32 %s85, 1
    %s87 = scalar_select %p84, %s85, %s86
    %p90 = pneg %p84
    %p91 = scmp.eq.s32.totalorder %s11, 1
    %p92 = por %p90, %p91
    %p93 = scmp.ne.s32.totalorder %s85, %s88
    %p94 = scmp.eq.s32.totalorder %s11, 0
    %p95 = por %p93, %p94
    %p96 = scmp.ne.s32.totalorder %s85, %s88
    %p97 = scmp.eq.s32.totalorder %s16, 1
    %p98 = por %p96, %p97
    %p99 = scmp.ne.s32.totalorder %s88, %s89
    %p100 = scmp.eq.s32.totalorder %s16, 0
    %p101 = por %p99, %p100
    %p102 = scmp.ne.s32.totalorder %s88, %s89
    %p103 = scmp.eq.s32.totalorder %s17, 1
    %p104 = por %p102, %p103
    %p106 = scmp.ne.s32.totalorder %s89, %s105
    %p107 = scmp.eq.s32.totalorder %s17, 0
    %p108 = por %p106, %p107
    %s109 = ssub.s32 %s19, %s26
    %p110 = scmp.eq.s32.totalorder %s109, 0
    %s112 = sadd.s32 %s111, 1
    %s113 = scalar_select %p110, %s111, %s112
    %p116 = pneg %p110
    %p117 = scmp.eq.s32.totalorder %s11, 1
    %p118 = por %p116, %p117
    %p119 = scmp.ne.s32.totalorder %s111, %s114
    %p120 = scmp.eq.s32.totalorder %s11, 0
    %p121 = por %p119, %p120
    %p122 = scmp.ne.s32.totalorder %s111, %s114
    %p123 = scmp.eq.s32.totalorder %s16, 1
    %p124 = por %p122, %p123
    %p125 = scmp.ne.s32.totalorder %s114, %s115
    %p126 = scmp.eq.s32.totalorder %s16, 0
    %p127 = por %p125, %p126
    %p128 = scmp.ne.s32.totalorder %s114, %s115
    %p129 = scmp.eq.s32.totalorder %s17, 1
    %p130 = por %p128, %p129
    %p132 = scmp.ne.s32.totalorder %s115, %s131
    %p133 = scmp.eq.s32.totalorder %s17, 0
    %p134 = por %p132, %p133
    %s135 = ssub.s32 %s19, %s26
    %p136 = scmp.eq.s32.totalorder %s135, 0
    %s138 = sadd.s32 %s137, 1
    %s139 = scalar_select %p136, %s137, %s138
    %p142 = pneg %p136
    %p143 = scmp.eq.s32.totalorder %s11, 1
    %p144 = por %p142, %p143
    %p145 = scmp.ne.s32.totalorder %s137, %s140
    %p146 = scmp.eq.s32.totalorder %s11, 0
    %p147 = por %p145, %p146
    %p148 = scmp.ne.s32.totalorder %s137, %s140
    %p149 = scmp.eq.s32.totalorder %s16, 1
    %p150 = por %p148, %p149
    %p151 = scmp.ne.s32.totalorder %s140, %s141
    %p152 = scmp.eq.s32.totalorder %s16, 0
    %p153 = por %p151, %p152
    %p154 = scmp.ne.s32.totalorder %s140, %s141
    %p155 = scmp.eq.s32.totalorder %s17, 1
    %p156 = por %p154, %p155
    %p158 = scmp.ne.s32.totalorder %s141, %s157
    %p159 = scmp.eq.s32.totalorder %s17, 0
    %p160 = por %p158, %p159
    %s161 = ssub.s32 %s18, %s30
    %p162 = scmp.eq.s32.totalorder %s161, 0
    %s164 = sadd.s32 %s163, 1
    %s165 = scalar_select %p162, %s163, %s164
    %p168 = pneg %p162
    %p169 = scmp.eq.s32.totalorder %s11, 1
    %p170 = por %p168, %p169
    %p171 = scmp.ne.s32.totalorder %s163, %s166
    %p172 = scmp.eq.s32.totalorder %s11, 0
    %p173 = por %p171, %p172
    %p174 = scmp.ne.s32.totalorder %s163, %s166
    %p175 = scmp.eq.s32.totalorder %s16, 1
    %p176 = por %p174, %p175
    %p177 = scmp.ne.s32.totalorder %s166, %s167
    %p178 = scmp.eq.s32.totalorder %s16, 0
    %p179 = por %p177, %p178
    %p180 = scmp.ne.s32.totalorder %s166, %s167
    %p181 = scmp.eq.s32.totalorder %s17, 1
    %p182 = por %p180, %p181
    %p184 = scmp.ne.s32.totalorder %s167, %s183
    %p185 = scmp.eq.s32.totalorder %s17, 0
    %p186 = por %p184, %p185
    %p187 = scmp.le.s32.totalorder 1, %s11
    %p188 = scmp.lt.s32.totalorder %s11, 3
    %p189 = pnand %p187, %p188
    %p190 = pneg %p189
    // Predicated region
    $region9: #{_lambda_.13} parent=5 // pred_check
      _
    $region10: #{_lambda_.13} parent=5 // pred_check_branch
      %192 = sbr.rel (%p189) target = $region12
    $region11: #{_lambda_.13} parent=5 // pred_region
      %s193 = ssub.s32 %s11, 1
      // Predicated region
      $region13: #{_lambda_.13} parent=11 // pred_check
        %p194 = pneg %p49
      $region14: #{_lambda_.13} parent=11 // pred_check_branch
        %196 = sbr.rel (%p194) target = $region16
      $region15: #{_lambda_.13} parent=11 // pred_region
        %s197 = smul.u32 2, %s20
        %p198 = scmp.lt.s32.totalorder %s197, 1
        %s199 = scalar_select %p198, %s197, 1
        %s200 = smul.addr %s199, 4
        %s201 = scalar_lea.vmem %s0, %s200
        %s202 = smul.u32 2, %s20
      $region16: #{_lambda_.13} parent=11 // pred_fallthru
        _
    $region12: #{_lambda_.13} parent=5 // pred_fallthru
      _
    %p203 = scmp.lt.s32.totalorder %s11, 2
    // Predicated region
    $region17: #{_lambda_.13} parent=5 // pred_check
      %p204 = pneg %p203
    $region18: #{_lambda_.13} parent=5 // pred_check_branch
      %206 = sbr.rel (%p204) target = $region20
    $region19: #{_lambda_.13} parent=5 // pred_region
      // Predicated region
      $region21: #{_lambda_.13} parent=19 // pred_check
        %p207 = pneg %p69
      $region22: #{_lambda_.13} parent=19 // pred_check_branch
        %209 = sbr.rel (%p207) target = $region24
      $region23: #{_lambda_.13} parent=19 // pred_region
        %p210 = scmp.lt.s32.totalorder %s19, 1
        %s211 = scalar_select %p210, %s19, 1
        %s212 = smul.addr %s211, 64
        %s213 = smul.addr %s212, 4
        %s214 = scalar_lea.vmem %s1, %s213
      $region24: #{_lambda_.13} parent=19 // pred_fallthru
        _
      // Predicated region
      $region25: #{_lambda_.13} parent=19 // pred_check
        %p215 = pneg %p95
      $region26: #{_lambda_.13} parent=19 // pred_check_branch
        %217 = sbr.rel (%p215) target = $region28
      $region27: #{_lambda_.13} parent=19 // pred_region
        %p218 = scmp.lt.s32.totalorder %s19, 1
        %s219 = scalar_select %p218, %s19, 1
        %s220 = smul.addr %s219, 4
        %s221 = scalar_lea.vmem %s2, %s220
      $region28: #{_lambda_.13} parent=19 // pred_fallthru
        _
      // Predicated region
      $region29: #{_lambda_.13} parent=19 // pred_check
        %p222 = pneg %p121
      $region30: #{_lambda_.13} parent=19 // pred_check_branch
        %224 = sbr.rel (%p222) target = $region32
      $region31: #{_lambda_.13} parent=19 // pred_region
        %p225 = scmp.lt.s32.totalorder %s19, 1
        %s226 = scalar_select %p225, %s19, 1
        %s227 = smul.addr %s226, 64
        %s228 = smul.addr %s227, 4
        %s229 = scalar_lea.vmem %s3, %s228
      $region32: #{_lambda_.13} parent=19 // pred_fallthru
        _
      // Predicated region
      $region33: #{_lambda_.13} parent=19 // pred_check
        %p230 = pneg %p147
      $region34: #{_lambda_.13} parent=19 // pred_check_branch
        %232 = sbr.rel (%p230) target = $region36
      $region35: #{_lambda_.13} parent=19 // pred_region
        %p233 = scmp.lt.s32.totalorder %s19, 1
        %s234 = scalar_select %p233, %s19, 1
        %s235 = scalar_lea.vmem %s4, %s234
      $region36: #{_lambda_.13} parent=19 // pred_fallthru
        _
    $region20: #{_lambda_.13} parent=5 // pred_fallthru
      _
    %p236 = scmp.le.s32.totalorder 1, %s11
    %p237 = scmp.lt.s32.totalorder %s11, 3
    %p238 = pnand %p236, %p237
    %p239 = pneg %p238
    // Predicated region
    $region37: #{_lambda_.13} parent=5 // pred_check
      _
    $region38: #{_lambda_.13} parent=5 // pred_check_branch
      %241 = sbr.rel (%p238) target = $region40
    $region39: #{_lambda_.13} parent=5 // pred_region
      %s242 = ssub.s32 %s11, 1
      %s243 = smul.u32 2, %s20
      %p244 = scmp.lt.s32.totalorder %s243, 1
      %s245 = scalar_select %p244, %s243, 1
      %s246 = smul.addr %s245, 4
      %s247 = scalar_lea.vmem %s0, %s246
      %p248 = pneg %p49
      %p249 = pneg %p46
      %p250 = scmp.lt.s32.totalorder %s21, 1
      %s251 = scalar_select %p250, %s21, 1
      %s252 = smul.addr %s251, 64
      %s253 = smul.addr %s252, 4
      %s254 = scalar_lea.vmem %s1, %s253
      %p255 = pneg %p75
      %p256 = pneg %p72
      %p257 = scmp.lt.s32.totalorder %s21, 1
      %s258 = scalar_select %p257, %s21, 1
      %s259 = smul.addr %s258, 4
      %s260 = scalar_lea.vmem %s2, %s259
      %p261 = pneg %p101
      %p262 = pneg %p98
      %p263 = scmp.lt.s32.totalorder %s21, 1
      %s264 = scalar_select %p263, %s21, 1
      %s265 = smul.addr %s264, 64
      %s266 = smul.addr %s265, 4
      %s267 = scalar_lea.vmem %s3, %s266
      %p268 = pneg %p127
      %p269 = pneg %p124
      %p270 = scmp.lt.s32.totalorder %s21, 1
      %s271 = scalar_select %p270, %s21, 1
      %s272 = scalar_lea.vmem %s4, %s271
      %p273 = pneg %p153
      %p274 = pneg %p150
      %p275 = pneg %p179
      %p276 = pneg %p176
      %s277 = smul.u32 2, %s20
      %p278 = scmp.lt.s32.totalorder %s277, 1
      %s279 = scalar_select %p278, %s277, 1
      %s280 = smul.addr %s279, 4
      %s281 = scalar_lea.vmem %s5, %s280
      %s282 = smul.u32 2, %s20
      %p283 = scmp.lt.s32.totalorder %s282, 1
      %s284 = scalar_select %p283, %s282, 1
      %s285 = smul.addr %s284, 4
      %s286 = scalar_lea.vmem %s0, %s285
      %s287 = smul.u32 2, %s20
      %p288 = scmp.lt.s32.totalorder %s21, 1
      %s289 = scalar_select %p288, %s21, 1
      %s290 = smul.addr %s289, 64
      %s291 = smul.addr %s290, 4
      %s292 = scalar_lea.vmem %s1, %s291
      %p293 = scmp.lt.s32.totalorder %s21, 1
      %s294 = scalar_select %p293, %s21, 1
      %s295 = smul.addr %s294, 4
      %s296 = scalar_lea.vmem %s2, %s295
      %p297 = scmp.lt.s32.totalorder %s21, 1
      %s298 = scalar_select %p297, %s21, 1
      %s299 = smul.addr %s298, 64
      %s300 = smul.addr %s299, 4
      %s301 = scalar_lea.vmem %s3, %s300
      %p302 = scmp.lt.s32.totalorder %s21, 1
      %s303 = scalar_select %p302, %s21, 1
      %s304 = scalar_lea.vmem %s4, %s303
      %s305 = smul.u32 2, %s20
      %p306 = scmp.lt.s32.totalorder %s305, 1
      %s307 = scalar_select %p306, %s305, 1
      %s308 = smul.addr %s307, 4
      %s309 = scalar_lea.vmem %s5, %s308
      %s310 = smul.u32 2, %s20
      %p312 = scmp.eq.s32.totalorder %s21, 0
      // Predicated region
      $region41: #{_lambda_.13} parent=39 // pred_check
        %p313 = pneg %p312
      $region42: #{_lambda_.13} parent=39 // pred_check_branch
        %315 = sbr.rel (%p313) target = $region44
      $region43: #{_lambda_.13} parent=39 // pred_region
        %v316 = vld [vmem:[%s286] sm:$0xf]
        %v317 = vld [vmem:[%s286 + $0x4] sm:$0xf]
        %v318 = vunpack.c.l.bf16 %v316
        %v319 = vunpack.c.l.bf16 %v317
        %320 = vst [vmem:[#allocation2] sm:$0xff] %v318
        %321 = vst [vmem:[#allocation2 + $0x8] sm:$0xff] %v319
      $region44: #{_lambda_.13} parent=39 // pred_fallthru
        _
      %v322 = vld [vmem:[#allocation2] sm:$0xff]
      %v323 = vld [vmem:[#allocation2 + $0x8] sm:$0xff]
      %324 = vadd.xlane.f32.xlu0 %v322
      %v325 = vpop.xlane.xlu0 %324
      %326 = vadd.xlane.f32.xlu0 %v323
      %v327 = vpop.xlane.xlu0 %326
      %v328 = vrcp.pop 128.0
      %v329 = vmul.f32 %v325, %v328
      %v330 = vmul.f32 %v327, %v328
      %v331 = vsub.f32 %v322, %v329
      %v332 = vsub.f32 %v323, %v330
      %v333 = vmul.f32 %v331, %v331
      %v334 = vmul.f32 %v332, %v332
      %335 = vadd.xlane.f32.xlu0 %v333
      %v336 = vpop.xlane.xlu0 %335
      %337 = vadd.xlane.f32.xlu0 %v334
      %v338 = vpop.xlane.xlu0 %337
      %v339 = vmul.f32 %v336, %v328
      %v340 = vmul.f32 %v338, %v328
      %v341 = vadd.f32 %v339, 1e-05
      %v342 = vadd.f32 %v340, 1e-05
      %v343 = vrsqrt.pop %v341
      %v344 = vrsqrt.pop %v342
      %v345 = vmul.f32 %v331, %v343
      %v346 = vmul.f32 %v332, %v344
      %v347 = vpack.c.bf16 %v346, %v345
      %v348 = vld [vmem:[%s292] sm:$0xff]
      %v349 = vld [vmem:[%s292 + $0x8] sm:$0xff]
      %v350 = vld [vmem:[%s292 + $0x10] sm:$0xff]
      %v351 = vld [vmem:[%s292 + $0x18] sm:$0xff]
      %v352 = vld [vmem:[%s292 + $0x20] sm:$0xff]
      %v353 = vld [vmem:[%s292 + $0x28] sm:$0xff]
      %v354 = vld [vmem:[%s292 + $0x30] sm:$0xff]
      %v355 = vld [vmem:[%s292 + $0x38] sm:$0xff]
      %v356 = vld [vmem:[%s292 + $0x40] sm:$0xff]
      %v357 = vld [vmem:[%s292 + $0x48] sm:$0xff]
      %v358 = vld [vmem:[%s292 + $0x50] sm:$0xff]
      %v359 = vld [vmem:[%s292 + $0x58] sm:$0xff]
      %v360 = vld [vmem:[%s292 + $0x60] sm:$0xff]
      %v361 = vld [vmem:[%s292 + $0x68] sm:$0xff]
      %v362 = vld [vmem:[%s292 + $0x70] sm:$0xff]
      %v363 = vld [vmem:[%s292 + $0x78] sm:$0xff]
      %v364 = vld [vmem:[%s292 + $0x80] sm:$0xff]
      %v365 = vld [vmem:[%s292 + $0x88] sm:$0xff]
      %v366 = vld [vmem:[%s292 + $0x90] sm:$0xff]
      %v367 = vld [vmem:[%s292 + $0x98] sm:$0xff]
      %v368 = vld [vmem:[%s292 + $0xa0] sm:$0xff]
      %v369 = vld [vmem:[%s292 + $0xa8] sm:$0xff]
      %v370 = vld [vmem:[%s292 + $0xb0] sm:$0xff]
      %v371 = vld [vmem:[%s292 + $0xb8] sm:$0xff]
      %v372 = vld [vmem:[%s292 + $0xc0] sm:$0xff]
      %v373 = vld [vmem:[%s292 + $0xc8] sm:$0xff]
      %v374 = vld [vmem:[%s292 + $0xd0] sm:$0xff]
      %v375 = vld [vmem:[%s292 + $0xd8] sm:$0xff]
      %v376 = vld [vmem:[%s292 + $0xe0] sm:$0xff]
      %v377 = vld [vmem:[%s292 + $0xe8] sm:$0xff]
      %v378 = vld [vmem:[%s292 + $0xf0] sm:$0xff]
      %v379 = vld [vmem:[%s292 + $0xf8] sm:$0xff]
      %v380 = vld [vmem:[%s296] sm:$0xf]
      %v382 = vlaneseq
      %v383 = vshrl.u32 %v382, 7
      %v384 = vsub.s32 0, %v383
      %v385 = vrot.slane %v380, %v384
      %v386 = vlaneseq
      %v387 = vshrl.u32 %v386, 7
      %v388 = vsub.s32 1, %v387
      %v389 = vrot.slane %v380, %v388
      %v390 = vlaneseq
      %v391 = vshrl.u32 %v390, 7
      %v392 = vsub.s32 2, %v391
      %v393 = vrot.slane %v380, %v392
      %v394 = vlaneseq
      %v395 = vshrl.u32 %v394, 7
      %v396 = vsub.s32 3, %v395
      %v397 = vrot.slane %v380, %v396
      %v434 = vunpack.c.l.b16 %v348
      %v435 = vunpack.c.h.b16 %v348
      %v436 = vunpack.c.l.b16 %v349
      %v437 = vunpack.c.h.b16 %v349
      %v438 = vunpack.c.l.b16 %v350
      %v439 = vunpack.c.h.b16 %v350
      %v440 = vunpack.c.l.b16 %v351
      %v441 = vunpack.c.h.b16 %v351
      %v442 = vunpack.c.l.b16 %v352
      %v443 = vunpack.c.h.b16 %v352
      %v444 = vunpack.c.l.b16 %v353
      %v445 = vunpack.c.h.b16 %v353
      %v446 = vunpack.c.l.b16 %v354
      %v447 = vunpack.c.h.b16 %v354
      %v448 = vunpack.c.l.b16 %v355
      %v449 = vunpack.c.h.b16 %v355
      %v450 = vunpack.c.l.b16 %v356
      %v451 = vunpack.c.h.b16 %v356
      %v452 = vunpack.c.l.b16 %v357
      %v453 = vunpack.c.h.b16 %v357
      %v454 = vunpack.c.l.b16 %v358
      %v455 = vunpack.c.h.b16 %v358
      %v456 = vunpack.c.l.b16 %v359
      %v457 = vunpack.c.h.b16 %v359
      %v458 = vunpack.c.l.b16 %v360
      %v459 = vunpack.c.h.b16 %v360
      %v460 = vunpack.c.l.b16 %v361
      %v461 = vunpack.c.h.b16 %v361
      %v462 = vunpack.c.l.b16 %v362
      %v463 = vunpack.c.h.b16 %v362
      %v464 = vunpack.c.l.b16 %v363
      %v465 = vunpack.c.h.b16 %v363
      %v466 = vunpack.c.l.b16 %v364
      %v467 = vunpack.c.h.b16 %v364
      %v468 = vunpack.c.l.b16 %v365
      %v469 = vunpack.c.h.b16 %v365
      %v470 = vunpack.c.l.b16 %v366
      %v471 = vunpack.c.h.b16 %v366
      %v472 = vunpack.c.l.b16 %v367
      %v473 = vunpack.c.h.b16 %v367
      %v474 = vunpack.c.l.b16 %v368
      %v475 = vunpack.c.h.b16 %v368
      %v476 = vunpack.c.l.b16 %v369
      %v477 = vunpack.c.h.b16 %v369
      %v478 = vunpack.c.l.b16 %v370
      %v479 = vunpack.c.h.b16 %v370
      %v480 = vunpack.c.l.b16 %v371
      %v481 = vunpack.c.h.b16 %v371
      %v482 = vunpack.c.l.b16 %v372
      %v483 = vunpack.c.h.b16 %v372
      %v484 = vunpack.c.l.b16 %v373
      %v485 = vunpack.c.h.b16 %v373
      %v486 = vunpack.c.l.b16 %v374
      %v487 = vunpack.c.h.b16 %v374
      %v488 = vunpack.c.l.b16 %v375
      %v489 = vunpack.c.h.b16 %v375
      %v490 = vunpack.c.l.b16 %v376
      %v491 = vunpack.c.h.b16 %v376
      %v492 = vunpack.c.l.b16 %v377
      %v493 = vunpack.c.h.b16 %v377
      %v494 = vunpack.c.l.b16 %v378
      %v495 = vunpack.c.h.b16 %v378
      %v496 = vunpack.c.l.b16 %v379
      %v497 = vunpack.c.h.b16 %v379
      %v498 = vpack.c.b16 %v438, %v434
      %v499 = vpack.c.b16 %v439, %v435
      %v500 = vpack.c.b16 %v440, %v436
      %v501 = vpack.c.b16 %v441, %v437
      %v502 = vpack.c.b16 %v446, %v442
      %v503 = vpack.c.b16 %v447, %v443
      %v504 = vpack.c.b16 %v448, %v444
      %v505 = vpack.c.b16 %v449, %v445
      %v506 = vpack.c.b16 %v454, %v450
      %v507 = vpack.c.b16 %v455, %v451
      %v508 = vpack.c.b16 %v456, %v452
      %v509 = vpack.c.b16 %v457, %v453
      %v510 = vpack.c.b16 %v462, %v458
      %v511 = vpack.c.b16 %v463, %v459
      %v512 = vpack.c.b16 %v464, %v460
      %v513 = vpack.c.b16 %v465, %v461
      %v514 = vpack.c.b16 %v470, %v466
      %v515 = vpack.c.b16 %v471, %v467
      %v516 = vpack.c.b16 %v472, %v468
      %v517 = vpack.c.b16 %v473, %v469
      %v518 = vpack.c.b16 %v478, %v474
      %v519 = vpack.c.b16 %v479, %v475
      %v520 = vpack.c.b16 %v480, %v476
      %v521 = vpack.c.b16 %v481, %v477
      %v522 = vpack.c.b16 %v486, %v482
      %v523 = vpack.c.b16 %v487, %v483
      %v524 = vpack.c.b16 %v488, %v484
      %v525 = vpack.c.b16 %v489, %v485
      %v526 = vpack.c.b16 %v494, %v490
      %v527 = vpack.c.b16 %v495, %v491
      %v528 = vpack.c.b16 %v496, %v492
      %v529 = vpack.c.b16 %v497, %v493
      %562 = vmatprep.subr.bf16.mxu0 %v499
      %563 = vmatpush1.bf16.msra.mxu0 %v498
      %564 = vmatprep.subr.bf16.mxu0 %v503
      %565 = vmatpush1.bf16.msra.mxu0 %v502
      %566 = vmatprep.subr.bf16.mxu0 %v507
      %567 = vmatpush1.bf16.msra.mxu0 %v506
      %568 = vmatprep.subr.bf16.mxu0 %v511
      %569 = vmatpush1.bf16.msra.mxu0 %v510
      %570 = vmatprep.subr.bf16.mxu0 %v515
      %571 = vmatpush1.bf16.msra.mxu0 %v514
      %572 = vmatprep.subr.bf16.mxu0 %v519
      %573 = vmatpush1.bf16.msra.mxu0 %v518
      %574 = vmatprep.subr.bf16.mxu0 %v523
      %575 = vmatpush1.bf16.msra.mxu0 %v522
      %576 = vmatprep.subr.bf16.mxu0 %v527
      %577 = vmatpush1.bf16.msra.mxu0 %v526
      %578 = vmatprep.subr.bf16.mxu0 0
      %579 = vmatpush1.bf16.msra.mxu0 0
      %580 = vmatprep.subr.bf16.mxu0 0
      %581 = vmatpush1.bf16.msra.mxu0 0
      %582 = vmatprep.subr.bf16.mxu0 0
      %583 = vmatpush1.bf16.msra.mxu0 0
      %584 = vmatprep.subr.bf16.mxu0 0
      %585 = vmatpush1.bf16.msra.mxu0 0
      %586 = vmatprep.subr.bf16.mxu0 0
      %587 = vmatpush1.bf16.msra.mxu0 0
      %588 = vmatprep.subr.bf16.mxu0 0
      %589 = vmatpush1.bf16.msra.mxu0 0
      %590 = vmatprep.subr.bf16.mxu0 0
      %591 = vmatpush1.bf16.msra.mxu0 0
      %592 = vmatprep.subr.bf16.mxu0 0
      %593 = vmatpush1.bf16.msra.mxu0 0
      %594 = vmatprep.mubr.bf16.mxu0 0
      %595 = vmatmul.mubr.bf16.gmra.mrb[0].mxu0 %v347
      %v596 = vpop.f32.mrb[0].mxu0
      %v597 = vadd.f32 %v385, %v596
      %v598 = vpop.f32.mrb[0].mxu0
      %v599 = vadd.f32 %v389, %v598
      %v600 = vpop.f32.mrb[0].mxu0
      %v601 = vadd.f32 %v385, %v600
      %v602 = vpop.f32.mrb[0].mxu0
      %v603 = vadd.f32 %v389, %v602
      %604 = vdwg.mxu0
      %605 = vmatprep.subr.bf16.mxu0 %v501
      %606 = vmatpush1.bf16.msra.mxu0 %v500
      %607 = vmatprep.subr.bf16.mxu0 %v505
      %608 = vmatpush1.bf16.msra.mxu0 %v504
      %609 = vmatprep.subr.bf16.mxu0 %v509
      %610 = vmatpush1.bf16.msra.mxu0 %v508
      %611 = vmatprep.subr.bf16.mxu0 %v513
      %612 = vmatpush1.bf16.msra.mxu0 %v512
      %613 = vmatprep.subr.bf16.mxu0 %v517
      %614 = vmatpush1.bf16.msra.mxu0 %v516
      %615 = vmatprep.subr.bf16.mxu0 %v521
      %616 = vmatpush1.bf16.msra.mxu0 %v520
      %617 = vmatprep.subr.bf16.mxu0 %v525
      %618 = vmatpush1.bf16.msra.mxu0 %v524
      %619 = vmatprep.subr.bf16.mxu0 %v529
      %620 = vmatpush1.bf16.msra.mxu0 %v528
      %621 = vmatprep.subr.bf16.mxu0 0
      %622 = vmatpush1.bf16.msra.mxu0 0
      %623 = vmatprep.subr.bf16.mxu0 0
      %624 = vmatpush1.bf16.msra.mxu0 0
      %625 = vmatprep.subr.bf16.mxu0 0
      %626 = vmatpush1.bf16.msra.mxu0 0
      %627 = vmatprep.subr.bf16.mxu0 0
      %628 = vmatpush1.bf16.msra.mxu0 0
      %629 = vmatprep.subr.bf16.mxu0 0
      %630 = vmatpush1.bf16.msra.mxu0 0
      %631 = vmatprep.subr.bf16.mxu0 0
      %632 = vmatpush1.bf16.msra.mxu0 0
      %633 = vmatprep.subr.bf16.mxu0 0
      %634 = vmatpush1.bf16.msra.mxu0 0
      %635 = vmatprep.subr.bf16.mxu0 0
      %636 = vmatpush1.bf16.msra.mxu0 0
      %637 = vmatprep.mubr.bf16.mxu0 0
      %638 = vmatmul.mubr.bf16.gmra.mrb[0].mxu0 %v347
      %v639 = vpop.f32.mrb[0].mxu0
      %v640 = vadd.f32 %v393, %v639
      %v641 = vpop.f32.mrb[0].mxu0
      %v642 = vadd.f32 %v397, %v641
      %v643 = vpop.f32.mrb[0].mxu0
      %v644 = vadd.f32 %v393, %v643
      %v645 = vpop.f32.mrb[0].mxu0
      %v646 = vadd.f32 %v397, %v645
      %647 = vdwg.mxu0
      %v648 = vmul.f32 %v597, %v597
      %v649 = vmul.f32 %v599, %v599
      %v650 = vmul.f32 %v640, %v640
      %v651 = vmul.f32 %v642, %v642
      %v652 = vmul.f32 %v601, %v601
      %v653 = vmul.f32 %v603, %v603
      %v654 = vmul.f32 %v644, %v644
      %v655 = vmul.f32 %v646, %v646
      %v656 = vmul.f32 %v597, %v648
      %v657 = vmul.f32 %v599, %v649
      %v658 = vmul.f32 %v640, %v650
      %v659 = vmul.f32 %v642, %v651
      %v660 = vmul.f32 %v601, %v652
      %v661 = vmul.f32 %v603, %v653
      %v662 = vmul.f32 %v644, %v654
      %v663 = vmul.f32 %v646, %v655
      %v664 = vmul.f32 %v656, 0.044715
      %v665 = vmul.f32 %v657, 0.044715
      %v666 = vmul.f32 %v658, 0.044715
      %v667 = vmul.f32 %v659, 0.044715
      %v668 = vmul.f32 %v660, 0.044715
      %v669 = vmul.f32 %v661, 0.044715
      %v670 = vmul.f32 %v662, 0.044715
      %v671 = vmul.f32 %v663, 0.044715
      %v672 = vadd.f32 %v597, %v664
      %v673 = vadd.f32 %v599, %v665
      %v674 = vadd.f32 %v640, %v666
      %v675 = vadd.f32 %v642, %v667
      %v676 = vadd.f32 %v601, %v668
      %v677 = vadd.f32 %v603, %v669
      %v678 = vadd.f32 %v644, %v670
      %v679 = vadd.f32 %v646, %v671
      %v680 = vmul.f32 %v672, 0.7978846
      %v681 = vmul.f32 %v673, 0.7978846
      %v682 = vmul.f32 %v674, 0.7978846
      %v683 = vmul.f32 %v675, 0.7978846
      %v684 = vmul.f32 %v676, 0.7978846
      %v685 = vmul.f32 %v677, 0.7978846
      %v686 = vmul.f32 %v678, 0.7978846
      %v687 = vmul.f32 %v679, 0.7978846
      %v688 = vtanh.pop %v680
      %v689 = vtanh.pop %v681
      %v690 = vtanh.pop %v682
      %v691 = vtanh.pop %v683
      %v692 = vtanh.pop %v684
      %v693 = vtanh.pop %v685
      %v694 = vtanh.pop %v686
      %v695 = vtanh.pop %v687
      %v696 = vadd.f32 %v688, 1.0
      %v697 = vadd.f32 %v689, 1.0
      %v698 = vadd.f32 %v690, 1.0
      %v699 = vadd.f32 %v691, 1.0
      %v700 = vadd.f32 %v692, 1.0
      %v701 = vadd.f32 %v693, 1.0
      %v702 = vadd.f32 %v694, 1.0
      %v703 = vadd.f32 %v695, 1.0
      %v704 = vmul.f32 %v696, 0.5
      %v705 = vmul.f32 %v697, 0.5
      %v706 = vmul.f32 %v698, 0.5
      %v707 = vmul.f32 %v699, 0.5
      %v708 = vmul.f32 %v700, 0.5
      %v709 = vmul.f32 %v701, 0.5
      %v710 = vmul.f32 %v702, 0.5
      %v711 = vmul.f32 %v703, 0.5
      %v712 = vmul.f32 %v597, %v704
      %v713 = vmul.f32 %v599, %v705
      %v714 = vmul.f32 %v640, %v706
      %v715 = vmul.f32 %v642, %v707
      %v716 = vmul.f32 %v601, %v708
      %v717 = vmul.f32 %v603, %v709
      %v718 = vmul.f32 %v644, %v710
      %v719 = vmul.f32 %v646, %v711
      %v720 = vpack.c.bf16 %v716, %v712
      %v721 = vpack.c.bf16 %v717, %v713
      %v722 = vpack.c.bf16 %v718, %v714
      %v723 = vpack.c.bf16 %v719, %v715
      %v724 = vld [vmem:[%s301] sm:$0xf]
      %v725 = vld [vmem:[%s301 + $0x4] sm:$0xf]
      %v726 = vld [vmem:[%s301 + $0x8] sm:$0xf]
      %v727 = vld [vmem:[%s301 + $0xc] sm:$0xf]
      %v728 = vld [vmem:[%s301 + $0x10] sm:$0xf]
      %v729 = vld [vmem:[%s301 + $0x14] sm:$0xf]
      %v730 = vld [vmem:[%s301 + $0x18] sm:$0xf]
      %v731 = vld [vmem:[%s301 + $0x1c] sm:$0xf]
      %v732 = vld [vmem:[%s301 + $0x20] sm:$0xf]
      %v733 = vld [vmem:[%s301 + $0x24] sm:$0xf]
      %v734 = vld [vmem:[%s301 + $0x28] sm:$0xf]
      %v735 = vld [vmem:[%s301 + $0x2c] sm:$0xf]
      %v736 = vld [vmem:[%s301 + $0x30] sm:$0xf]
      %v737 = vld [vmem:[%s301 + $0x34] sm:$0xf]
      %v738 = vld [vmem:[%s301 + $0x38] sm:$0xf]
      %v739 = vld [vmem:[%s301 + $0x3c] sm:$0xf]
      %v740 = vld [vmem:[%s301 + $0x40] sm:$0xf]
      %v741 = vld [vmem:[%s301 + $0x44] sm:$0xf]
      %v742 = vld [vmem:[%s301 + $0x48] sm:$0xf]
      %v743 = vld [vmem:[%s301 + $0x4c] sm:$0xf]
      %v744 = vld [vmem:[%s301 + $0x50] sm:$0xf]
      %v745 = vld [vmem:[%s301 + $0x54] sm:$0xf]
      %v746 = vld [vmem:[%s301 + $0x58] sm:$0xf]
      %v747 = vld [vmem:[%s301 + $0x5c] sm:$0xf]
      %v748 = vld [vmem:[%s301 + $0x60] sm:$0xf]
      %v749 = vld [vmem:[%s301 + $0x64] sm:$0xf]
      %v750 = vld [vmem:[%s301 + $0x68] sm:$0xf]
      %v751 = vld [vmem:[%s301 + $0x6c] sm:$0xf]
      %v752 = vld [vmem:[%s301 + $0x70] sm:$0xf]
      %v753 = vld [vmem:[%s301 + $0x74] sm:$0xf]
      %v754 = vld [vmem:[%s301 + $0x78] sm:$0xf]
      %v755 = vld [vmem:[%s301 + $0x7c] sm:$0xf]
      %v756 = vld [vmem:[%s301 + $0x80] sm:$0xf]
      %v757 = vld [vmem:[%s301 + $0x84] sm:$0xf]
      %v758 = vld [vmem:[%s301 + $0x88] sm:$0xf]
      %v759 = vld [vmem:[%s301 + $0x8c] sm:$0xf]
      %v760 = vld [vmem:[%s301 + $0x90] sm:$0xf]
      %v761 = vld [vmem:[%s301 + $0x94] sm:$0xf]
      %v762 = vld [vmem:[%s301 + $0x98] sm:$0xf]
      %v763 = vld [vmem:[%s301 + $0x9c] sm:$0xf]
      %v764 = vld [vmem:[%s301 + $0xa0] sm:$0xf]
      %v765 = vld [vmem:[%s301 + $0xa4] sm:$0xf]
      %v766 = vld [vmem:[%s301 + $0xa8] sm:$0xf]
      %v767 = vld [vmem:[%s301 + $0xac] sm:$0xf]
      %v768 = vld [vmem:[%s301 + $0xb0] sm:$0xf]
      %v769 = vld [vmem:[%s301 + $0xb4] sm:$0xf]
      %v770 = vld [vmem:[%s301 + $0xb8] sm:$0xf]
      %v771 = vld [vmem:[%s301 + $0xbc] sm:$0xf]
      %v772 = vld [vmem:[%s301 + $0xc0] sm:$0xf]
      %v773 = vld [vmem:[%s301 + $0xc4] sm:$0xf]
      %v774 = vld [vmem:[%s301 + $0xc8] sm:$0xf]
      %v775 = vld [vmem:[%s301 + $0xcc] sm:$0xf]
      %v776 = vld [vmem:[%s301 + $0xd0] sm:$0xf]
      %v777 = vld [vmem:[%s301 + $0xd4] sm:$0xf]
      %v778 = vld [vmem:[%s301 + $0xd8] sm:$0xf]
      %v779 = vld [vmem:[%s301 + $0xdc] sm:$0xf]
      %v780 = vld [vmem:[%s301 + $0xe0] sm:$0xf]
      %v781 = vld [vmem:[%s301 + $0xe4] sm:$0xf]
      %v782 = vld [vmem:[%s301 + $0xe8] sm:$0xf]
      %v783 = vld [vmem:[%s301 + $0xec] sm:$0xf]
      %v784 = vld [vmem:[%s301 + $0xf0] sm:$0xf]
      %v785 = vld [vmem:[%s301 + $0xf4] sm:$0xf]
      %v786 = vld [vmem:[%s301 + $0xf8] sm:$0xf]
      %v787 = vld [vmem:[%s301 + $0xfc] sm:$0xf]
      %v788 = vld [vmem:[%s304] sm:$0x1]
      %v790 = vlaneseq
      %v791 = vshrl.u32 %v790, 7
      %v792 = vsub.s32 0, %v791
      %v793 = vrot.slane %v788, %v792
      %v859 = vunpack.c.l.b16 %v724
      %v860 = vunpack.c.l.b16 %v725
      %v861 = vunpack.c.l.b16 %v726
      %v862 = vunpack.c.l.b16 %v727
      %v863 = vunpack.c.l.b16 %v728
      %v864 = vunpack.c.l.b16 %v729
      %v865 = vunpack.c.l.b16 %v730
      %v866 = vunpack.c.l.b16 %v731
      %v867 = vunpack.c.l.b16 %v732
      %v868 = vunpack.c.l.b16 %v733
      %v869 = vunpack.c.l.b16 %v734
      %v870 = vunpack.c.l.b16 %v735
      %v871 = vunpack.c.l.b16 %v736
      %v872 = vunpack.c.l.b16 %v737
      %v873 = vunpack.c.l.b16 %v738
      %v874 = vunpack.c.l.b16 %v739
      %v875 = vunpack.c.l.b16 %v740
      %v876 = vunpack.c.l.b16 %v741
      %v877 = vunpack.c.l.b16 %v742
      %v878 = vunpack.c.l.b16 %v743
      %v879 = vunpack.c.l.b16 %v744
      %v880 = vunpack.c.l.b16 %v745
      %v881 = vunpack.c.l.b16 %v746
      %v882 = vunpack.c.l.b16 %v747
      %v883 = vunpack.c.l.b16 %v748
      %v884 = vunpack.c.l.b16 %v749
      %v885 = vunpack.c.l.b16 %v750
      %v886 = vunpack.c.l.b16 %v751
      %v887 = vunpack.c.l.b16 %v752
      %v888 = vunpack.c.l.b16 %v753
      %v889 = vunpack.c.l.b16 %v754
      %v890 = vunpack.c.l.b16 %v755
      %v891 = vunpack.c.l.b16 %v756
      %v892 = vunpack.c.l.b16 %v757
      %v893 = vunpack.c.l.b16 %v758
      %v894 = vunpack.c.l.b16 %v759
      %v895 = vunpack.c.l.b16 %v760
      %v896 = vunpack.c.l.b16 %v761
      %v897 = vunpack.c.l.b16 %v762
      %v898 = vunpack.c.l.b16 %v763
      %v899 = vunpack.c.l.b16 %v764
      %v900 = vunpack.c.l.b16 %v765
      %v901 = vunpack.c.l.b16 %v766
      %v902 = vunpack.c.l.b16 %v767
      %v903 = vunpack.c.l.b16 %v768
      %v904 = vunpack.c.l.b16 %v769
      %v905 = vunpack.c.l.b16 %v770
      %v906 = vunpack.c.l.b16 %v771
      %v907 = vunpack.c.l.b16 %v772
      %v908 = vunpack.c.l.b16 %v773
      %v909 = vunpack.c.l.b16 %v774
      %v910 = vunpack.c.l.b16 %v775
      %v911 = vunpack.c.l.b16 %v776
      %v912 = vunpack.c.l.b16 %v777
      %v913 = vunpack.c.l.b16 %v778
      %v914 = vunpack.c.l.b16 %v779
      %v915 = vunpack.c.l.b16 %v780
      %v916 = vunpack.c.l.b16 %v781
      %v917 = vunpack.c.l.b16 %v782
      %v918 = vunpack.c.l.b16 %v783
      %v919 = vunpack.c.l.b16 %v784
      %v920 = vunpack.c.l.b16 %v785
      %v921 = vunpack.c.l.b16 %v786
      %v922 = vunpack.c.l.b16 %v787
      %v923 = vpack.c.b16 %v860, %v859
      %v924 = vpack.c.b16 %v862, %v861
      %v925 = vpack.c.b16 %v864, %v863
      %v926 = vpack.c.b16 %v866, %v865
      %v927 = vpack.c.b16 %v868, %v867
      %v928 = vpack.c.b16 %v870, %v869
      %v929 = vpack.c.b16 %v872, %v871
      %v930 = vpack.c.b16 %v874, %v873
      %v931 = vpack.c.b16 %v876, %v875
      %v932 = vpack.c.b16 %v878, %v877
      %v933 = vpack.c.b16 %v880, %v879
      %v934 = vpack.c.b16 %v882, %v881
      %v935 = vpack.c.b16 %v884, %v883
      %v936 = vpack.c.b16 %v886, %v885
      %v937 = vpack.c.b16 %v888, %v887
      %v938 = vpack.c.b16 %v890, %v889
      %v939 = vpack.c.b16 %v892, %v891
      %v940 = vpack.c.b16 %v894, %v893
      %v941 = vpack.c.b16 %v896, %v895
      %v942 = vpack.c.b16 %v898, %v897
      %v943 = vpack.c.b16 %v900, %v899
      %v944 = vpack.c.b16 %v902, %v901
      %v945 = vpack.c.b16 %v904, %v903
      %v946 = vpack.c.b16 %v906, %v905
      %v947 = vpack.c.b16 %v908, %v907
      %v948 = vpack.c.b16 %v910, %v909
      %v949 = vpack.c.b16 %v912, %v911
      %v950 = vpack.c.b16 %v914, %v913
      %v951 = vpack.c.b16 %v916, %v915
      %v952 = vpack.c.b16 %v918, %v917
      %v953 = vpack.c.b16 %v920, %v919
      %v954 = vpack.c.b16 %v922, %v921
      %987 = vmatprep.subr.bf16.mxu0 0
      %988 = vmatpush1.bf16.msra.mxu0 %v923
      %989 = vmatprep.subr.bf16.mxu0 0
      %990 = vmatpush1.bf16.msra.mxu0 %v924
      %991 = vmatprep.subr.bf16.mxu0 0
      %992 = vmatpush1.bf16.msra.mxu0 %v925
      %993 = vmatprep.subr.bf16.mxu0 0
      %994 = vmatpush1.bf16.msra.mxu0 %v926
      %995 = vmatprep.subr.bf16.mxu0 0
      %996 = vmatpush1.bf16.msra.mxu0 %v927
      %997 = vmatprep.subr.bf16.mxu0 0
      %998 = vmatpush1.bf16.msra.mxu0 %v928
      %999 = vmatprep.subr.bf16.mxu0 0
      %1000 = vmatpush1.bf16.msra.mxu0 %v929
      %1001 = vmatprep.subr.bf16.mxu0 0
      %1002 = vmatpush1.bf16.msra.mxu0 %v930
      %1003 = vmatprep.subr.bf16.mxu0 0
      %1004 = vmatpush1.bf16.msra.mxu0 %v931
      %1005 = vmatprep.subr.bf16.mxu0 0
      %1006 = vmatpush1.bf16.msra.mxu0 %v932
      %1007 = vmatprep.subr.bf16.mxu0 0
      %1008 = vmatpush1.bf16.msra.mxu0 %v933
      %1009 = vmatprep.subr.bf16.mxu0 0
      %1010 = vmatpush1.bf16.msra.mxu0 %v934
      %1011 = vmatprep.subr.bf16.mxu0 0
      %1012 = vmatpush1.bf16.msra.mxu0 %v935
      %1013 = vmatprep.subr.bf16.mxu0 0
      %1014 = vmatpush1.bf16.msra.mxu0 %v936
      %1015 = vmatprep.subr.bf16.mxu0 0
      %1016 = vmatpush1.bf16.msra.mxu0 %v937
      %1017 = vmatprep.subr.bf16.mxu0 0
      %1018 = vmatpush1.bf16.msra.mxu0 %v938
      %1019 = vmatprep.mubr.bf16.mxu0 %v721
      %1020 = vmatmul.mubr.bf16.gmra.mrb[0].mxu0 %v720
      %v1021 = vpop.f32.mrb[0].mxu0
      %v1022 = vadd.f32 %v793, %v1021
      %v1023 = vpop.f32.mrb[0].mxu0
      %v1024 = vpop.f32.mrb[0].mxu0
      %v1025 = vadd.f32 %v793, %v1024
      %v1026 = vpop.f32.mrb[0].mxu0
      %1027 = vdwg.mxu0
      %1028 = vmatprep.subr.bf16.mxu0 0
      %1029 = vmatpush1.bf16.msra.mxu0 %v939
      %1030 = vmatprep.subr.bf16.mxu0 0
      %1031 = vmatpush1.bf16.msra.mxu0 %v940
      %1032 = vmatprep.subr.bf16.mxu0 0
      %1033 = vmatpush1.bf16.msra.mxu0 %v941
      %1034 = vmatprep.subr.bf16.mxu0 0
      %1035 = vmatpush1.bf16.msra.mxu0 %v942
      %1036 = vmatprep.subr.bf16.mxu0 0
      %1037 = vmatpush1.bf16.msra.mxu0 %v943
      %1038 = vmatprep.subr.bf16.mxu0 0
      %1039 = vmatpush1.bf16.msra.mxu0 %v944
      %1040 = vmatprep.subr.bf16.mxu0 0
      %1041 = vmatpush1.bf16.msra.mxu0 %v945
      %1042 = vmatprep.subr.bf16.mxu0 0
      %1043 = vmatpush1.bf16.msra.mxu0 %v946
      %1044 = vmatprep.subr.bf16.mxu0 0
      %1045 = vmatpush1.bf16.msra.mxu0 %v947
      %1046 = vmatprep.subr.bf16.mxu0 0
      %1047 = vmatpush1.bf16.msra.mxu0 %v948
      %1048 = vmatprep.subr.bf16.mxu0 0
      %1049 = vmatpush1.bf16.msra.mxu0 %v949
      %1050 = vmatprep.subr.bf16.mxu0 0
      %1051 = vmatpush1.bf16.msra.mxu0 %v950
      %1052 = vmatprep.subr.bf16.mxu0 0
      %1053 = vmatpush1.bf16.msra.mxu0 %v951
      %1054 = vmatprep.subr.bf16.mxu0 0
      %1055 = vmatpush1.bf16.msra.mxu0 %v952
      %1056 = vmatprep.subr.bf16.mxu0 0
      %1057 = vmatpush1.bf16.msra.mxu0 %v953
      %1058 = vmatprep.subr.bf16.mxu0 0
      %1059 = vmatpush1.bf16.msra.mxu0 %v954
      %1060 = vmatprep.mubr.bf16.mxu0 %v723
      %1061 = vmatmul.mubr.bf16.gmra.mrb[0].mxu0 %v722
      %v1062 = vpop.f32.mrb[0].mxu0
      %v1063 = vadd.f32 %v1022, %v1062
      %v1064 = vpop.f32.mrb[0].mxu0
      %v1065 = vpop.f32.mrb[0].mxu0
      %v1066 = vadd.f32 %v1025, %v1065
      %v1067 = vpop.f32.mrb[0].mxu0
      %1068 = vdwg.mxu0
      %v1069 = vadd.f32 %v322, %v1063
      %v1070 = vadd.f32 %v323, %v1066
      %1071 = vst [vmem:[#allocation2] sm:$0xff] %v1069
      %1072 = vst [vmem:[#allocation2 + $0x8] sm:$0xff] %v1070
      %p1073 = scmp.eq.s32.totalorder %s21, 1
      // Predicated region
      $region45: #{_lambda_.13} parent=39 // pred_check
        %p1074 = pneg %p1073
      $region46: #{_lambda_.13} parent=39 // pred_check_branch
        %1076 = sbr.rel (%p1074) target = $region48
      $region47: #{_lambda_.13} parent=39 // pred_region
        %v1077 = vpack.c.bf16 %v1070, %v1069
        %v1079 = vunpack.c.l.b16 %v1077
        %v1080 = vunpack.c.h.b16 %v1077
        %v1081 = vpack.c.b16 %v1079, %v1079
        %v1082 = vpack.c.b16 %v1080, %v1080
        %1085 = vst [vmem:[%s309] sm:$0xf] %v1081
        %1086 = vst [vmem:[%s309 + $0x4] sm:$0xf] %v1082
      $region48: #{_lambda_.13} parent=39 // pred_fallthru
        _
      %s1087 = smul.u32 2, %s20
      %p1088 = scmp.lt.s32.totalorder %s1087, 1
      %s1089 = scalar_select %p1088, %s1087, 1
      %s1090 = smul.addr %s1089, 4
      %s1091 = scalar_lea.vmem %s5, %s1090
      // Predicated region
      $region49: #{_lambda_.13} parent=39 // pred_check
        %p1092 = pneg %p176
      $region50: #{_lambda_.13} parent=39 // pred_check_branch
        %1094 = sbr.rel (%p1092) target = $region52
      $region51: #{_lambda_.13} parent=39 // pred_region
        %s1095 = smul.u32 2, %s20
      $region52: #{_lambda_.13} parent=39 // pred_fallthru
        _
      // Predicated region
      $region53: #{_lambda_.13} parent=39 // pred_check
        %p1096 = pneg %p176
      $region54: #{_lambda_.13} parent=39 // pred_check_branch
        %1098 = sbr.rel (%p1096) target = $region56
      $region55: #{_lambda_.13} parent=39 // pred_region
        %s1099 = smul.u32 2, %s20
        %p1100 = scmp.lt.s32.totalorder %s1099, 1
        %s1101 = scalar_select %p1100, %s1099, 1
        %s1102 = smul.addr %s1101, 4
        %s1103 = scalar_lea.vmem %s5, %s1102
      $region56: #{_lambda_.13} parent=39 // pred_fallthru
        _
    $region40: #{_lambda_.13} parent=5 // pred_fallthru
      _
    %p1104 = scmp.le.s32.totalorder 2, %s11
    // Predicated region
    $region57: #{_lambda_.13} parent=5 // pred_check
      %p1105 = pneg %p1104
    $region58: #{_lambda_.13} parent=5 // pred_check_branch
      %1107 = sbr.rel (%p1105) target = $region60
    $region59: #{_lambda_.13} parent=5 // pred_region
      %s1108 = ssub.s32 %s11, 2
    $region60: #{_lambda_.13} parent=5 // pred_fallthru
      _
  $region6: #{_lambda_.13} parent=0 // loop_footer
    %s15 = sadd.s32 1, %s11
  $region7: #{_lambda_.13} parent=0 // loop_footer_branch
    %10 = sbr.rel target = $region3
  $region8: #{_lambda_.13} parent=0 // loop_exit
    _

// kernel: _lambda_.14
$region0: #{_lambda_.14}
  #allocation0 [shape = 'u32[]', space=smem, size = 0x4, offset = 0x4, fixed_abs, tag = 'smem constant byte address 0x4 - core index']
  #allocation1 [shape = 'u32[144,128]{1,0:T(1,128)}', space=vmem, size = 0x12000, scoped, tag = 'internal scratch']
  %s0 = inlined_call_operand.vmem [shape: bf16[16,128], index: 0, kind: input, shape index: {}]
  %s1 = inlined_call_operand.vmem [shape: bf16[128,128], index: 1, kind: input, shape index: {}]
  %s2 = inlined_call_operand.vmem [shape: f32[1,128], index: 2, kind: input, shape index: {}]
  %s3 = inlined_call_operand.vmem [shape: f32[16,128], index: 3, kind: input, shape index: {}]
  %s4 = inlined_call_operand.vmem [shape: bf16[16,128], index: 4, kind: output, shape index: {}]
  %s5 = sld [smem:[#allocation0]]
  $region26: #{_lambda_.14} parent=0
    _
  %s7 = ssub.s32 1, %s5
  %s8 = scalar_select 0, %s7, %s5
  // Predicated region
  $region2: #{_lambda_.14} parent=0 // pred_check
    _
  $region3: #{_lambda_.14} parent=0 // pred_check_branch
    %10 = sbr.rel (0) target = $region5
  $region4: #{_lambda_.14} parent=0 // pred_region
    _
  $region5: #{_lambda_.14} parent=0 // pred_fallthru
    _
  // Predicated region
  $region6: #{_lambda_.14} parent=0 // pred_check
    _
  $region7: #{_lambda_.14} parent=0 // pred_check_branch
    %12 = sbr.rel (0) target = $region9
  $region8: #{_lambda_.14} parent=0 // pred_region
    _
  $region9: #{_lambda_.14} parent=0 // pred_fallthru
    _
  // Predicated region
  $region10: #{_lambda_.14} parent=0 // pred_check
    _
  $region11: #{_lambda_.14} parent=0 // pred_check_branch
    %14 = sbr.rel (0) target = $region13
  $region12: #{_lambda_.14} parent=0 // pred_region
    _
  $region13: #{_lambda_.14} parent=0 // pred_fallthru
    _
  // Predicated region
  $region14: #{_lambda_.14} parent=0 // pred_check
    _
  $region15: #{_lambda_.14} parent=0 // pred_check_branch
    %16 = sbr.rel (0) target = $region17
  $region16: #{_lambda_.14} parent=0 // pred_region
    _
  $region17: #{_lambda_.14} parent=0 // pred_fallthru
    _
  %v18 = vld [vmem:[%s0] sm:$0xf]
  %v19 = vld [vmem:[%s0 + $0x4] sm:$0xf]
  %v20 = vunpack.c.l.bf16 %v18
  %v21 = vunpack.c.l.bf16 %v19
  %22 = vadd.xlane.f32.xlu0 %v20
  %v23 = vpop.xlane.xlu0 %22
  %24 = vadd.xlane.f32.xlu0 %v21
  %v25 = vpop.xlane.xlu0 %24
  %v26 = vrcp.pop 128.0
  %v27 = vmul.f32 %v23, %v26
  %v28 = vmul.f32 %v25, %v26
  %v29 = vsub.f32 %v20, %v27
  %v30 = vsub.f32 %v21, %v28
  %v31 = vmul.f32 %v29, %v29
  %v32 = vmul.f32 %v30, %v30
  %33 = vadd.xlane.f32.xlu0 %v31
  %v34 = vpop.xlane.xlu0 %33
  %35 = vadd.xlane.f32.xlu0 %v32
  %v36 = vpop.xlane.xlu0 %35
  %v37 = vmul.f32 %v34, %v26
  %v38 = vmul.f32 %v36, %v26
  %v39 = vadd.f32 %v37, 1e-05
  %v40 = vadd.f32 %v38, 1e-05
  %v41 = vrsqrt.pop %v39
  %v42 = vrsqrt.pop %v40
  %v43 = vmul.f32 %v29, %v41
  %v44 = vmul.f32 %v30, %v42
  %v45 = vpack.c.bf16 %v44, %v43
  %v46 = vld [vmem:[%s1] sm:$0xf]
  %v47 = vld [vmem:[%s1 + $0x4] sm:$0xf]
  %v48 = vld [vmem:[%s1 + $0x8] sm:$0xf]
  %v49 = vld [vmem:[%s1 + $0xc] sm:$0xf]
  %v50 = vld [vmem:[%s1 + $0x10] sm:$0xf]
  %v51 = vld [vmem:[%s1 + $0x14] sm:$0xf]
  %v52 = vld [vmem:[%s1 + $0x18] sm:$0xf]
  %v53 = vld [vmem:[%s1 + $0x1c] sm:$0xf]
  %v54 = vld [vmem:[%s1 + $0x20] sm:$0xf]
  %v55 = vld [vmem:[%s1 + $0x24] sm:$0xf]
  %v56 = vld [vmem:[%s1 + $0x28] sm:$0xf]
  %v57 = vld [vmem:[%s1 + $0x2c] sm:$0xf]
  %v58 = vld [vmem:[%s1 + $0x30] sm:$0xf]
  %v59 = vld [vmem:[%s1 + $0x34] sm:$0xf]
  %v60 = vld [vmem:[%s1 + $0x38] sm:$0xf]
  %v61 = vld [vmem:[%s1 + $0x3c] sm:$0xf]
  %v62 = vld [vmem:[%s2] sm:$0x1]
  %v64 = vlaneseq
  %v65 = vshrl.u32 %v64, 7
  %v66 = vsub.s32 0, %v65
  %v67 = vrot.slane %v62, %v66
  %v85 = vunpack.c.l.b16 %v46
  %v86 = vunpack.c.l.b16 %v47
  %v87 = vunpack.c.l.b16 %v48
  %v88 = vunpack.c.l.b16 %v49
  %v89 = vunpack.c.l.b16 %v50
  %v90 = vunpack.c.l.b16 %v51
  %v91 = vunpack.c.l.b16 %v52
  %v92 = vunpack.c.l.b16 %v53
  %v93 = vunpack.c.l.b16 %v54
  %v94 = vunpack.c.l.b16 %v55
  %v95 = vunpack.c.l.b16 %v56
  %v96 = vunpack.c.l.b16 %v57
  %v97 = vunpack.c.l.b16 %v58
  %v98 = vunpack.c.l.b16 %v59
  %v99 = vunpack.c.l.b16 %v60
  %v100 = vunpack.c.l.b16 %v61
  %v101 = vpack.c.b16 %v86, %v85
  %v102 = vpack.c.b16 %v88, %v87
  %v103 = vpack.c.b16 %v90, %v89
  %v104 = vpack.c.b16 %v92, %v91
  %v105 = vpack.c.b16 %v94, %v93
  %v106 = vpack.c.b16 %v96, %v95
  %v107 = vpack.c.b16 %v98, %v97
  %v108 = vpack.c.b16 %v100, %v99
  %117 = vmatprep.subr.bf16.mxu0 0
  %118 = vmatpush1.bf16.msra.mxu0 %v101
  %119 = vmatprep.subr.bf16.mxu0 0
  %120 = vmatpush1.bf16.msra.mxu0 %v102
  %121 = vmatprep.subr.bf16.mxu0 0
  %122 = vmatpush1.bf16.msra.mxu0 %v103
  %123 = vmatprep.subr.bf16.mxu0 0
  %124 = vmatpush1.bf16.msra.mxu0 %v104
  %125 = vmatprep.subr.bf16.mxu0 0
  %126 = vmatpush1.bf16.msra.mxu0 %v105
  %127 = vmatprep.subr.bf16.mxu0 0
  %128 = vmatpush1.bf16.msra.mxu0 %v106
  %129 = vmatprep.subr.bf16.mxu0 0
  %130 = vmatpush1.bf16.msra.mxu0 %v107
  %131 = vmatprep.subr.bf16.mxu0 0
  %132 = vmatpush1.bf16.msra.mxu0 %v108
  %133 = vmatprep.subr.bf16.mxu0 0
  %134 = vmatpush1.bf16.msra.mxu0 0
  %135 = vmatprep.subr.bf16.mxu0 0
  %136 = vmatpush1.bf16.msra.mxu0 0
  %137 = vmatprep.subr.bf16.mxu0 0
  %138 = vmatpush1.bf16.msra.mxu0 0
  %139 = vmatprep.subr.bf16.mxu0 0
  %140 = vmatpush1.bf16.msra.mxu0 0
  %141 = vmatprep.subr.bf16.mxu0 0
  %142 = vmatpush1.bf16.msra.mxu0 0
  %143 = vmatprep.subr.bf16.mxu0 0
  %144 = vmatpush1.bf16.msra.mxu0 0
  %145 = vmatprep.subr.bf16.mxu0 0
  %146 = vmatpush1.bf16.msra.mxu0 0
  %147 = vmatprep.subr.bf16.mxu0 0
  %148 = vmatpush1.bf16.msra.mxu0 0
  %149 = vmatprep.mubr.bf16.mxu0 0
  %150 = vmatmul.mubr.bf16.gmra.mrb[0].mxu0 %v45
  %v151 = vpop.f32.mrb[0].mxu0
  %v152 = vadd.f32 %v67, %v151
  %v153 = vpop.f32.mrb[0].mxu0
  %v154 = vpop.f32.mrb[0].mxu0
  %v155 = vadd.f32 %v67, %v154
  %v156 = vpop.f32.mrb[0].mxu0
  %157 = vdwg.mxu0
  %v158 = vld [vmem:[%s3] sm:$0xff]
  %v159 = vld [vmem:[%s3 + $0x8] sm:$0xff]
  %v160 = vadd.f32 %v152, %v158
  %v161 = vadd.f32 %v155, %v159
  %v162 = vpack.c.bf16 %v161, %v160
  %v164 = vunpack.c.l.b16 %v162
  %v165 = vunpack.c.h.b16 %v162
  %v166 = vpack.c.b16 %v164, %v164
  %v167 = vpack.c.b16 %v165, %v165
  %170 = vst [vmem:[%s4] sm:$0xf] %v166
  %171 = vst [vmem:[%s4 + $0x4] sm:$0xf] %v167
  // Predicated region
  $region18: #{_lambda_.14} parent=0 // pred_check
    _
  $region19: #{_lambda_.14} parent=0 // pred_check_branch
    %173 = sbr.rel (0) target = $region21
  $region20: #{_lambda_.14} parent=0 // pred_region
    _
  $region21: #{_lambda_.14} parent=0 // pred_fallthru
    _
  // Predicated region
  $region22: #{_lambda_.14} parent=0 // pred_check
    _
  $region23: #{_lambda_.14} parent=0 // pred_check_branch
    %175 = sbr.rel (0) target = $region25
  $region24: #{_lambda_.14} parent=0 // pred_region
    _
  $region25: #{_lambda_.14} parent=0 // pred_fallthru
    _

// kernel: _lambda_.17
$region0: #{_lambda_.17}
  #allocation0 [shape = 'u32[]', space=smem, size = 0x4, offset = 0x4, fixed_abs, tag = 'smem constant byte address 0x4 - core index']
  #allocation1 [shape = 'u32[144,128]{1,0:T(1,128)}', space=vmem, size = 0x12000, scoped, tag = 'internal scratch']
  #allocation2 [shape = 'f32[1,1]{1,0:T(1,128)}', space=vmem, size = 0x200, scoped, tag = 'scratch operand']
  %s0 = inlined_call_operand.vmem [shape: f32[8,128], index: 0, kind: input, shape index: {}]
  %s1 = inlined_call_operand.vmem [shape: f32[8,128], index: 1, kind: input, shape index: {}]
  %s2 = inlined_call_operand.hbm [shape: f32[1,1], index: 2, kind: output, shape index: {}]
  %s3 = sld [smem:[#allocation0]]
  $region26: #{_lambda_.17} parent=0
    _
  %s5 = ssub.s32 1, %s3
  %s6 = scalar_select 0, %s5, %s3
  $region1: #{_lambda_.17} parent=0
    #allocation3 [shape = 'u8[512]{0}', space=vmem, size = 0x400, scoped, tag = 'output window, operand 0, single buffered']
    #allocation4 [shape = 's32[1]{0}', space=sflag, size = 0x4, scoped, tag = 'scoped memory for _lambda_.17']
    %7 = vsyncpa [#allocation4], 0
    // Predicated region
    $region2: #{_lambda_.17} parent=1 // pred_check
      _
    $region3: #{_lambda_.17} parent=1 // pred_check_branch
      %9 = sbr.rel (0) target = $region5
    $region4: #{_lambda_.17} parent=1 // pred_region
      _
    $region5: #{_lambda_.17} parent=1 // pred_fallthru
      _
    // Predicated region
    $region6: #{_lambda_.17} parent=1 // pred_check
      _
    $region7: #{_lambda_.17} parent=1 // pred_check_branch
      %11 = sbr.rel (0) target = $region9
    $region8: #{_lambda_.17} parent=1 // pred_region
      _
    $region9: #{_lambda_.17} parent=1 // pred_fallthru
      _
    %p12 = scmp.eq.s32.totalorder 0, 0
    // Predicated region
    $region10: #{_lambda_.17} parent=1 // pred_check
      %p13 = pneg %p12
    $region11: #{_lambda_.17} parent=1 // pred_check_branch
      %15 = sbr.rel (%p13) target = $region13
    $region12: #{_lambda_.17} parent=1 // pred_region
      %vm16 = vcmask 0
      %17 = vst.msk [vmem:[#allocation2] sm:$0x1] %vm16, 0.0
    $region13: #{_lambda_.17} parent=1 // pred_fallthru
      _
    %v18 = vld [vmem:[%s0] sm:$0xff]
    %v19 = vld [vmem:[%s1] sm:$0xff]
    %v20 = vsub.f32 %v18, %v19
    %v21 = vld [vmem:[#allocation2] sm:$0x1]
    %v22 = vmul.f32 %v20, %v20
    %23 = vadd.xlane.f32.xlu0 %v22
    %v24 = vpop.xlane.xlu0 %23
    %v25 = vrot.slane %v24, 4
    %v26 = vadd.f32 %v24, %v25
    %v27 = vrot.slane %v26, 2
    %v28 = vadd.f32 %v26, %v27
    %v29 = vrot.slane %v28, 1
    %v30 = vadd.f32 %v28, %v29
    %s31 = vtos %v30
    %v32 = vstv %s31
    %v33 = vadd.f32 %v21, %v32
    %vm34 = vcmask 0
    %35 = vst.msk [vmem:[#allocation2] sm:$0x1] %vm34, %v33
    // Predicated region
    $region14: #{_lambda_.17} parent=1 // pred_check
      %p36 = pneg %p12
    $region15: #{_lambda_.17} parent=1 // pred_check_branch
      %38 = sbr.rel (%p36) target = $region17
    $region16: #{_lambda_.17} parent=1 // pred_region
      %v39 = vld [vmem:[#allocation2] sm:$0x1]
      %v40 = vmul.f32 %v39, 0.0009765625
      %41 = vst.msk [vmem:[#allocation3] sm:$0x1] %vm34, %v40
    $region17: #{_lambda_.17} parent=1 // pred_fallthru
      _
    // Predicated region
    $region18: #{_lambda_.17} parent=1 // pred_check
      _
    $region19: #{_lambda_.17} parent=1 // pred_check_branch
      %43 = sbr.rel (0) target = $region21
    $region20: #{_lambda_.17} parent=1 // pred_region
      %s45 = ssub.s32 16, 16
      %46 = vsyncadd [#allocation4], %s45
      %s48 = sshll.u32 [#allocation3], 4
      %s49 = int_to_ptr.vmem [resolvable:$true] %s48
      %51 = dma.vmem_to_hbm [thread:$0]  %s49, 16, %s2, [#allocation4]
    $region21: #{_lambda_.17} parent=1 // pred_fallthru
      _
    // Predicated region
    $region22: #{_lambda_.17} parent=1 // pred_check
      _
    $region23: #{_lambda_.17} parent=1 // pred_check_branch
      %53 = sbr.rel (0) target = $region25
    $region24: #{_lambda_.17} parent=1 // pred_region
      %54 = dma.done [#allocation4], 16
    $region25: #{_lambda_.17} parent=1 // pred_fallthru
      _
    %55 = vsyncpa [#allocation4], 1

// kernel: _lambda_.11
$region0: #{_lambda_.11}
  #allocation0 [shape = 'u32[]', space=smem, size = 0x4, offset = 0x4, fixed_abs, tag = 'smem constant byte address 0x4 - core index']
  #allocation1 [shape = 'u32[144,128]{1,0:T(1,128)}', space=vmem, size = 0x12000, scoped, tag = 'internal scratch']
  %s0 = inlined_call_operand.vmem [shape: f32[8,128], index: 0, kind: input, shape index: {}]
  %s1 = inlined_call_operand.vmem [shape: f32[8,128], index: 1, kind: output, shape index: {}]
  %s2 = sld [smem:[#allocation0]]
  $region14: #{_lambda_.11} parent=0
    _
  %s4 = ssub.s32 1, %s2
  %s5 = scalar_select 0, %s4, %s2
  // Predicated region
  $region2: #{_lambda_.11} parent=0 // pred_check
    _
  $region3: #{_lambda_.11} parent=0 // pred_check_branch
    %7 = sbr.rel (0) target = $region5
  $region4: #{_lambda_.11} parent=0 // pred_region
    _
  $region5: #{_lambda_.11} parent=0 // pred_fallthru
    _
  %v8 = vld [vmem:[%s0] sm:$0xff]
  %9 = vadd.xlane.f32.xlu0 %v8
  %v10 = vpop.xlane.xlu0 %9
  %v11 = vrcp.pop 128.0
  %v12 = vmul.f32 %v10, %v11
  %v13 = vsub.f32 %v8, %v12
  %v14 = vmul.f32 %v13, %v13
  %15 = vadd.xlane.f32.xlu0 %v14
  %v16 = vpop.xlane.xlu0 %15
  %v17 = vmul.f32 %v16, %v11
  %v18 = vadd.f32 %v17, 4e-05
  %v19 = vrsqrt.pop %v18
  %v20 = vmul.f32 %v13, %v19
  %21 = vst [vmem:[%s1] sm:$0xff] %v20
  // Predicated region
  $region6: #{_lambda_.11} parent=0 // pred_check
    _
  $region7: #{_lambda_.11} parent=0 // pred_check_branch
    %23 = sbr.rel (0) target = $region9
  $region8: #{_lambda_.11} parent=0 // pred_region
    _
  $region9: #{_lambda_.11} parent=0 // pred_fallthru
    _
  // Predicated region
  $region10: #{_lambda_.11} parent=0 // pred_check
    _
  $region11: #{_lambda_.11} parent=0 // pred_check_branch
    %25 = sbr.rel (0) target = $region13
  $region12: #{_lambda_.11} parent=0 // pred_region
    _
  $region13: #{_lambda_.11} parent=0 // pred_fallthru
    _

// kernel: _lambda_.16
$region0: #{_lambda_.16}
  #allocation0 [shape = 'u32[]', space=smem, size = 0x4, offset = 0x4, fixed_abs, tag = 'smem constant byte address 0x4 - core index']
  #allocation1 [shape = 'u32[144,128]{1,0:T(1,128)}', space=vmem, size = 0x12000, scoped, tag = 'internal scratch']
  %s0 = inlined_call_operand.vmem [shape: bf16[8,128], index: 0, kind: input, shape index: {}]
  %s1 = inlined_call_operand.vmem [shape: bf16[128,128], index: 1, kind: input, shape index: {}]
  %s2 = inlined_call_operand.vmem [shape: f32[1,128], index: 2, kind: input, shape index: {}]
  %s3 = inlined_call_operand.vmem [shape: f32[8,128], index: 3, kind: output, shape index: {}]
  %s4 = sld [smem:[#allocation0]]
  $region22: #{_lambda_.16} parent=0
    _
  %s6 = ssub.s32 1, %s4
  %s7 = scalar_select 0, %s6, %s4
  // Predicated region
  $region2: #{_lambda_.16} parent=0 // pred_check
    _
  $region3: #{_lambda_.16} parent=0 // pred_check_branch
    %9 = sbr.rel (0) target = $region5
  $region4: #{_lambda_.16} parent=0 // pred_region
    _
  $region5: #{_lambda_.16} parent=0 // pred_fallthru
    _
  // Predicated region
  $region6: #{_lambda_.16} parent=0 // pred_check
    _
  $region7: #{_lambda_.16} parent=0 // pred_check_branch
    %11 = sbr.rel (0) target = $region9
  $region8: #{_lambda_.16} parent=0 // pred_region
    _
  $region9: #{_lambda_.16} parent=0 // pred_fallthru
    _
  // Predicated region
  $region10: #{_lambda_.16} parent=0 // pred_check
    _
  $region11: #{_lambda_.16} parent=0 // pred_check_branch
    %13 = sbr.rel (0) target = $region13
  $region12: #{_lambda_.16} parent=0 // pred_region
    _
  $region13: #{_lambda_.16} parent=0 // pred_fallthru
    _
  %v15 = vld [vmem:[%s0] sm:$0xf]
  %v16 = vunpack.c.l.bf16 %v15
  %17 = vadd.xlane.f32.xlu0 %v16
  %v18 = vpop.xlane.xlu0 %17
  %v19 = vrcp.pop 128.0
  %v20 = vmul.f32 %v18, %v19
  %v21 = vsub.f32 %v16, %v20
  %v22 = vmul.f32 %v21, %v21
  %23 = vadd.xlane.f32.xlu0 %v22
  %v24 = vpop.xlane.xlu0 %23
  %v25 = vmul.f32 %v24, %v19
  %v26 = vadd.f32 %v25, 1e-05
  %v27 = vrsqrt.pop %v26
  %v28 = vmul.f32 %v21, %v27
  %v29 = vpack.c.bf16 %v28, %v28
  %v30 = vld [vmem:[%s1] sm:$0xf]
  %v31 = vld [vmem:[%s1 + $0x4] sm:$0xf]
  %v32 = vld [vmem:[%s1 + $0x8] sm:$0xf]
  %v33 = vld [vmem:[%s1 + $0xc] sm:$0xf]
  %v34 = vld [vmem:[%s1 + $0x10] sm:$0xf]
  %v35 = vld [vmem:[%s1 + $0x14] sm:$0xf]
  %v36 = vld [vmem:[%s1 + $0x18] sm:$0xf]
  %v37 = vld [vmem:[%s1 + $0x1c] sm:$0xf]
  %v38 = vld [vmem:[%s1 + $0x20] sm:$0xf]
  %v39 = vld [vmem:[%s1 + $0x24] sm:$0xf]
  %v40 = vld [vmem:[%s1 + $0x28] sm:$0xf]
  %v41 = vld [vmem:[%s1 + $0x2c] sm:$0xf]
  %v42 = vld [vmem:[%s1 + $0x30] sm:$0xf]
  %v43 = vld [vmem:[%s1 + $0x34] sm:$0xf]
  %v44 = vld [vmem:[%s1 + $0x38] sm:$0xf]
  %v45 = vld [vmem:[%s1 + $0x3c] sm:$0xf]
  %v46 = vld [vmem:[%s2] sm:$0x1]
  %v48 = vlaneseq
  %v49 = vshrl.u32 %v48, 7
  %v50 = vsub.s32 0, %v49
  %v51 = vrot.slane %v46, %v50
  %v69 = vunpack.c.l.b16 %v30
  %v70 = vunpack.c.l.b16 %v31
  %v71 = vunpack.c.l.b16 %v32
  %v72 = vunpack.c.l.b16 %v33
  %v73 = vunpack.c.l.b16 %v34
  %v74 = vunpack.c.l.b16 %v35
  %v75 = vunpack.c.l.b16 %v36
  %v76 = vunpack.c.l.b16 %v37
  %v77 = vunpack.c.l.b16 %v38
  %v78 = vunpack.c.l.b16 %v39
  %v79 = vunpack.c.l.b16 %v40
  %v80 = vunpack.c.l.b16 %v41
  %v81 = vunpack.c.l.b16 %v42
  %v82 = vunpack.c.l.b16 %v43
  %v83 = vunpack.c.l.b16 %v44
  %v84 = vunpack.c.l.b16 %v45
  %v85 = vpack.c.b16 %v70, %v69
  %v86 = vpack.c.b16 %v72, %v71
  %v87 = vpack.c.b16 %v74, %v73
  %v88 = vpack.c.b16 %v76, %v75
  %v89 = vpack.c.b16 %v78, %v77
  %v90 = vpack.c.b16 %v80, %v79
  %v91 = vpack.c.b16 %v82, %v81
  %v92 = vpack.c.b16 %v84, %v83
  %101 = vmatprep.subr.bf16.mxu0 0
  %102 = vmatpush1.bf16.msra.mxu0 %v85
  %103 = vmatprep.subr.bf16.mxu0 0
  %104 = vmatpush1.bf16.msra.mxu0 %v86
  %105 = vmatprep.subr.bf16.mxu0 0
  %106 = vmatpush1.bf16.msra.mxu0 %v87
  %107 = vmatprep.subr.bf16.mxu0 0
  %108 = vmatpush1.bf16.msra.mxu0 %v88
  %109 = vmatprep.subr.bf16.mxu0 0
  %110 = vmatpush1.bf16.msra.mxu0 %v89
  %111 = vmatprep.subr.bf16.mxu0 0
  %112 = vmatpush1.bf16.msra.mxu0 %v90
  %113 = vmatprep.subr.bf16.mxu0 0
  %114 = vmatpush1.bf16.msra.mxu0 %v91
  %115 = vmatprep.subr.bf16.mxu0 0
  %116 = vmatpush1.bf16.msra.mxu0 %v92
  %117 = vmatprep.subr.bf16.mxu0 0
  %118 = vmatpush1.bf16.msra.mxu0 0
  %119 = vmatprep.subr.bf16.mxu0 0
  %120 = vmatpush1.bf16.msra.mxu0 0
  %121 = vmatprep.subr.bf16.mxu0 0
  %122 = vmatpush1.bf16.msra.mxu0 0
  %123 = vmatprep.subr.bf16.mxu0 0
  %124 = vmatpush1.bf16.msra.mxu0 0
  %125 = vmatprep.subr.bf16.mxu0 0
  %126 = vmatpush1.bf16.msra.mxu0 0
  %127 = vmatprep.subr.bf16.mxu0 0
  %128 = vmatpush1.bf16.msra.mxu0 0
  %129 = vmatprep.subr.bf16.mxu0 0
  %130 = vmatpush1.bf16.msra.mxu0 0
  %131 = vmatprep.subr.bf16.mxu0 0
  %132 = vmatpush1.bf16.msra.mxu0 0
  %133 = vmatprep.mubr.bf16.mxu0 0
  %134 = vmatmul.mubr.bf16.gmra.mrb[0].mxu0 %v29
  %v135 = vpop.f32.mrb[0].mxu0
  %v136 = vadd.f32 %v51, %v135
  %v137 = vpop.f32.mrb[0].mxu0
  %v138 = vpop.f32.mrb[0].mxu0
  %v139 = vpop.f32.mrb[0].mxu0
  %140 = vdwg.mxu0
  %141 = vst [vmem:[%s3] sm:$0xff] %v136
  // Predicated region
  $region14: #{_lambda_.16} parent=0 // pred_check
    _
  $region15: #{_lambda_.16} parent=0 // pred_check_branch
    %143 = sbr.rel (0) target = $region17
  $region16: #{_lambda_.16} parent=0 // pred_region
    _
  $region17: #{_lambda_.16} parent=0 // pred_fallthru
    _
  // Predicated region
  $region18: #{_lambda_.16} parent=0 // pred_check
    _
  $region19: #{_lambda_.16} parent=0 // pred_check_branch
    %145 = sbr.rel (0) target = $region21
  $region20: #{_lambda_.16} parent=0 // pred_region
    _
  $region21: #{_lambda_.16} parent=0 // pred_fallthru
    _

// kernel: _lambda_.15
$region0: #{_lambda_.15}
  #allocation0 [shape = 'u32[]', space=smem, size = 0x4, offset = 0x4, fixed_abs, tag = 'smem constant byte address 0x4 - core index']
  #allocation1 [shape = 'u32[144,128]{1,0:T(1,128)}', space=vmem, size = 0x12000, scoped, tag = 'internal scratch']
  #allocation2 [shape = 'f32[24,128]{1,0:T(8,128)}', space=vmem, size = 0x3000, scoped, tag = 'scratch operand']
  %s0 = inlined_call_operand.vmem [shape: bf16[24,128], index: 0, kind: input, shape index: {}]
  %s1 = inlined_call_operand.vmem [shape: bf16[1,128,512], index: 1, kind: input, shape index: {}]
  %s2 = inlined_call_operand.vmem [shape: f32[1,1,512], index: 2, kind: input, shape index: {}]
  %s3 = inlined_call_operand.vmem [shape: bf16[1,512,128], index: 3, kind: input, shape index: {}]
  %s4 = inlined_call_operand.vmem [shape: f32[1,1,128], index: 4, kind: input, shape index: {}]
  %s5 = inlined_call_operand.vmem [shape: bf16[24,128], index: 5, kind: output, shape index: {}]
  %s6 = sld [smem:[#allocation0]]
  $region38: #{_lambda_.15} parent=0
    _
  %s8 = ssub.s32 1, %s6
  %s9 = scalar_select 0, %s8, %s6
  // Predicated region
  $region2: #{_lambda_.15} parent=0 // pred_check
    _
  $region3: #{_lambda_.15} parent=0 // pred_check_branch
    %11 = sbr.rel (0) target = $region5
  $region4: #{_lambda_.15} parent=0 // pred_region
    _
  $region5: #{_lambda_.15} parent=0 // pred_fallthru
    _
  // Predicated region
  $region6: #{_lambda_.15} parent=0 // pred_check
    _
  $region7: #{_lambda_.15} parent=0 // pred_check_branch
    %13 = sbr.rel (0) target = $region9
  $region8: #{_lambda_.15} parent=0 // pred_region
    _
  $region9: #{_lambda_.15} parent=0 // pred_fallthru
    _
  // Predicated region
  $region10: #{_lambda_.15} parent=0 // pred_check
    _
  $region11: #{_lambda_.15} parent=0 // pred_check_branch
    %15 = sbr.rel (0) target = $region13
  $region12: #{_lambda_.15} parent=0 // pred_region
    _
  $region13: #{_lambda_.15} parent=0 // pred_fallthru
    _
  // Predicated region
  $region14: #{_lambda_.15} parent=0 // pred_check
    _
  $region15: #{_lambda_.15} parent=0 // pred_check_branch
    %17 = sbr.rel (0) target = $region17
  $region16: #{_lambda_.15} parent=0 // pred_region
    _
  $region17: #{_lambda_.15} parent=0 // pred_fallthru
    _
  // Predicated region
  $region18: #{_lambda_.15} parent=0 // pred_check
    _
  $region19: #{_lambda_.15} parent=0 // pred_check_branch
    %19 = sbr.rel (0) target = $region21
  $region20: #{_lambda_.15} parent=0 // pred_region
    _
  $region21: #{_lambda_.15} parent=0 // pred_fallthru
    _
  %p21 = scmp.eq.s32.totalorder 0, 0
  // Predicated region
  $region22: #{_lambda_.15} parent=0 // pred_check
    %p22 = pneg %p21
  $region23: #{_lambda_.15} parent=0 // pred_check_branch
    %24 = sbr.rel (%p22) target = $region25
  $region24: #{_lambda_.15} parent=0 // pred_region
    %v25 = vld [vmem:[%s0] sm:$0xf]
    %v26 = vld [vmem:[%s0 + $0x4] sm:$0xf]
    %v27 = vld [vmem:[%s0 + $0x8] sm:$0xf]
    %v28 = vunpack.c.l.bf16 %v25
    %v29 = vunpack.c.l.bf16 %v26
    %v30 = vunpack.c.l.bf16 %v27
    %31 = vst [vmem:[#allocation2] sm:$0xff] %v28
    %32 = vst [vmem:[#allocation2 + $0x8] sm:$0xff] %v29
    %33 = vst [vmem:[#allocation2 + $0x10] sm:$0xff] %v30
  $region25: #{_lambda_.15} parent=0 // pred_fallthru
    _
  %v34 = vld [vmem:[#allocation2] sm:$0xff]
  %v35 = vld [vmem:[#allocation2 + $0x8] sm:$0xff]
  %v36 = vld [vmem:[#allocation2 + $0x10] sm:$0xff]
  %37 = vadd.xlane.f32.xlu0 %v34
  %v38 = vpop.xlane.xlu0 %37
  %39 = vadd.xlane.f32.xlu0 %v35
  %v40 = vpop.xlane.xlu0 %39
  %41 = vadd.xlane.f32.xlu0 %v36
  %v42 = vpop.xlane.xlu0 %41
  %v43 = vrcp.pop 128.0
  %v44 = vmul.f32 %v38, %v43
  %v45 = vmul.f32 %v40, %v43
  %v46 = vmul.f32 %v42, %v43
  %v47 = vsub.f32 %v34, %v44
  %v48 = vsub.f32 %v35, %v45
  %v49 = vsub.f32 %v36, %v46
  %v50 = vmul.f32 %v47, %v47
  %v51 = vmul.f32 %v48, %v48
  %v52 = vmul.f32 %v49, %v49
  %53 = vadd.xlane.f32.xlu0 %v50
  %v54 = vpop.xlane.xlu0 %53
  %55 = vadd.xlane.f32.xlu0 %v51
  %v56 = vpop.xlane.xlu0 %55
  %57 = vadd.xlane.f32.xlu0 %v52
  %v58 = vpop.xlane.xlu0 %57
  %v59 = vmul.f32 %v54, %v43
  %v60 = vmul.f32 %v56, %v43
  %v61 = vmul.f32 %v58, %v43
  %v62 = vadd.f32 %v59, 1e-05
  %v63 = vadd.f32 %v60, 1e-05
  %v64 = vadd.f32 %v61, 1e-05
  %v65 = vrsqrt.pop %v62
  %v66 = vrsqrt.pop %v63
  %v67 = vrsqrt.pop %v64
  %v68 = vmul.f32 %v47, %v65
  %v69 = vmul.f32 %v48, %v66
  %v70 = vmul.f32 %v49, %v67
  %v71 = vpack.c.bf16 %v69, %v68
  %v72 = vpack.c.bf16 %v70, %v70
  %v73 = vld [vmem:[%s1] sm:$0xff]
  %v74 = vld [vmem:[%s1 + $0x8] sm:$0xff]
  %v75 = vld [vmem:[%s1 + $0x10] sm:$0xff]
  %v76 = vld [vmem:[%s1 + $0x18] sm:$0xff]
  %v77 = vld [vmem:[%s1 + $0x20] sm:$0xff]
  %v78 = vld [vmem:[%s1 + $0x28] sm:$0xff]
  %v79 = vld [vmem:[%s1 + $0x30] sm:$0xff]
  %v80 = vld [vmem:[%s1 + $0x38] sm:$0xff]
  %v81 = vld [vmem:[%s1 + $0x40] sm:$0xff]
  %v82 = vld [vmem:[%s1 + $0x48] sm:$0xff]
  %v83 = vld [vmem:[%s1 + $0x50] sm:$0xff]
  %v84 = vld [vmem:[%s1 + $0x58] sm:$0xff]
  %v85 = vld [vmem:[%s1 + $0x60] sm:$0xff]
  %v86 = vld [vmem:[%s1 + $0x68] sm:$0xff]
  %v87 = vld [vmem:[%s1 + $0x70] sm:$0xff]
  %v88 = vld [vmem:[%s1 + $0x78] sm:$0xff]
  %v89 = vld [vmem:[%s1 + $0x80] sm:$0xff]
  %v90 = vld [vmem:[%s1 + $0x88] sm:$0xff]
  %v91 = vld [vmem:[%s1 + $0x90] sm:$0xff]
  %v92 = vld [vmem:[%s1 + $0x98] sm:$0xff]
  %v93 = vld [vmem:[%s1 + $0xa0] sm:$0xff]
  %v94 = vld [vmem:[%s1 + $0xa8] sm:$0xff]
  %v95 = vld [vmem:[%s1 + $0xb0] sm:$0xff]
  %v96 = vld [vmem:[%s1 + $0xb8] sm:$0xff]
  %v97 = vld [vmem:[%s1 + $0xc0] sm:$0xff]
  %v98 = vld [vmem:[%s1 + $0xc8] sm:$0xff]
  %v99 = vld [vmem:[%s1 + $0xd0] sm:$0xff]
  %v100 = vld [vmem:[%s1 + $0xd8] sm:$0xff]
  %v101 = vld [vmem:[%s1 + $0xe0] sm:$0xff]
  %v102 = vld [vmem:[%s1 + $0xe8] sm:$0xff]
  %v103 = vld [vmem:[%s1 + $0xf0] sm:$0xff]
  %v104 = vld [vmem:[%s1 + $0xf8] sm:$0xff]
  %v105 = vld [vmem:[%s2] sm:$0xf]
  %v107 = vlaneseq
  %v108 = vshrl.u32 %v107, 7
  %v109 = vsub.s32 0, %v108
  %v110 = vrot.slane %v105, %v109
  %v111 = vlaneseq
  %v112 = vshrl.u32 %v111, 7
  %v113 = vsub.s32 1, %v112
  %v114 = vrot.slane %v105, %v113
  %v115 = vlaneseq
  %v116 = vshrl.u32 %v115, 7
  %v117 = vsub.s32 2, %v116
  %v118 = vrot.slane %v105, %v117
  %v119 = vlaneseq
  %v120 = vshrl.u32 %v119, 7
  %v121 = vsub.s32 3, %v120
  %v122 = vrot.slane %v105, %v121
  %v159 = vunpack.c.l.b16 %v73
  %v160 = vunpack.c.h.b16 %v73
  %v161 = vunpack.c.l.b16 %v74
  %v162 = vunpack.c.h.b16 %v74
  %v163 = vunpack.c.l.b16 %v75
  %v164 = vunpack.c.h.b16 %v75
  %v165 = vunpack.c.l.b16 %v76
  %v166 = vunpack.c.h.b16 %v76
  %v167 = vunpack.c.l.b16 %v77
  %v168 = vunpack.c.h.b16 %v77
  %v169 = vunpack.c.l.b16 %v78
  %v170 = vunpack.c.h.b16 %v78
  %v171 = vunpack.c.l.b16 %v79
  %v172 = vunpack.c.h.b16 %v79
  %v173 = vunpack.c.l.b16 %v80
  %v174 = vunpack.c.h.b16 %v80
  %v175 = vunpack.c.l.b16 %v81
  %v176 = vunpack.c.h.b16 %v81
  %v177 = vunpack.c.l.b16 %v82
  %v178 = vunpack.c.h.b16 %v82
  %v179 = vunpack.c.l.b16 %v83
  %v180 = vunpack.c.h.b16 %v83
  %v181 = vunpack.c.l.b16 %v84
  %v182 = vunpack.c.h.b16 %v84
  %v183 = vunpack.c.l.b16 %v85
  %v184 = vunpack.c.h.b16 %v85
  %v185 = vunpack.c.l.b16 %v86
  %v186 = vunpack.c.h.b16 %v86
  %v187 = vunpack.c.l.b16 %v87
  %v188 = vunpack.c.h.b16 %v87
  %v189 = vunpack.c.l.b16 %v88
  %v190 = vunpack.c.h.b16 %v88
  %v191 = vunpack.c.l.b16 %v89
  %v192 = vunpack.c.h.b16 %v89
  %v193 = vunpack.c.l.b16 %v90
  %v194 = vunpack.c.h.b16 %v90
  %v195 = vunpack.c.l.b16 %v91
  %v196 = vunpack.c.h.b16 %v91
  %v197 = vunpack.c.l.b16 %v92
  %v198 = vunpack.c.h.b16 %v92
  %v199 = vunpack.c.l.b16 %v93
  %v200 = vunpack.c.h.b16 %v93
  %v201 = vunpack.c.l.b16 %v94
  %v202 = vunpack.c.h.b16 %v94
  %v203 = vunpack.c.l.b16 %v95
  %v204 = vunpack.c.h.b16 %v95
  %v205 = vunpack.c.l.b16 %v96
  %v206 = vunpack.c.h.b16 %v96
  %v207 = vunpack.c.l.b16 %v97
  %v208 = vunpack.c.h.b16 %v97
  %v209 = vunpack.c.l.b16 %v98
  %v210 = vunpack.c.h.b16 %v98
  %v211 = vunpack.c.l.b16 %v99
  %v212 = vunpack.c.h.b16 %v99
  %v213 = vunpack.c.l.b16 %v100
  %v214 = vunpack.c.h.b16 %v100
  %v215 = vunpack.c.l.b16 %v101
  %v216 = vunpack.c.h.b16 %v101
  %v217 = vunpack.c.l.b16 %v102
  %v218 = vunpack.c.h.b16 %v102
  %v219 = vunpack.c.l.b16 %v103
  %v220 = vunpack.c.h.b16 %v103
  %v221 = vunpack.c.l.b16 %v104
  %v222 = vunpack.c.h.b16 %v104
  %v223 = vpack.c.b16 %v163, %v159
  %v224 = vpack.c.b16 %v164, %v160
  %v225 = vpack.c.b16 %v165, %v161
  %v226 = vpack.c.b16 %v166, %v162
  %v227 = vpack.c.b16 %v171, %v167
  %v228 = vpack.c.b16 %v172, %v168
  %v229 = vpack.c.b16 %v173, %v169
  %v230 = vpack.c.b16 %v174, %v170
  %v231 = vpack.c.b16 %v179, %v175
  %v232 = vpack.c.b16 %v180, %v176
  %v233 = vpack.c.b16 %v181, %v177
  %v234 = vpack.c.b16 %v182, %v178
  %v235 = vpack.c.b16 %v187, %v183
  %v236 = vpack.c.b16 %v188, %v184
  %v237 = vpack.c.b16 %v189, %v185
  %v238 = vpack.c.b16 %v190, %v186
  %v239 = vpack.c.b16 %v195, %v191
  %v240 = vpack.c.b16 %v196, %v192
  %v241 = vpack.c.b16 %v197, %v193
  %v242 = vpack.c.b16 %v198, %v194
  %v243 = vpack.c.b16 %v203, %v199
  %v244 = vpack.c.b16 %v204, %v200
  %v245 = vpack.c.b16 %v205, %v201
  %v246 = vpack.c.b16 %v206, %v202
  %v247 = vpack.c.b16 %v211, %v207
  %v248 = vpack.c.b16 %v212, %v208
  %v249 = vpack.c.b16 %v213, %v209
  %v250 = vpack.c.b16 %v214, %v210
  %v251 = vpack.c.b16 %v219, %v215
  %v252 = vpack.c.b16 %v220, %v216
  %v253 = vpack.c.b16 %v221, %v217
  %v254 = vpack.c.b16 %v222, %v218
  %287 = vmatprep.subr.bf16.mxu0 %v224
  %288 = vmatpush1.bf16.msra.mxu0 %v223
  %289 = vmatprep.subr.bf16.mxu0 %v228
  %290 = vmatpush1.bf16.msra.mxu0 %v227
  %291 = vmatprep.subr.bf16.mxu0 %v232
  %292 = vmatpush1.bf16.msra.mxu0 %v231
  %293 = vmatprep.subr.bf16.mxu0 %v236
  %294 = vmatpush1.bf16.msra.mxu0 %v235
  %295 = vmatprep.subr.bf16.mxu0 %v240
  %296 = vmatpush1.bf16.msra.mxu0 %v239
  %297 = vmatprep.subr.bf16.mxu0 %v244
  %298 = vmatpush1.bf16.msra.mxu0 %v243
  %299 = vmatprep.subr.bf16.mxu0 %v248
  %300 = vmatpush1.bf16.msra.mxu0 %v247
  %301 = vmatprep.subr.bf16.mxu0 %v252
  %302 = vmatpush1.bf16.msra.mxu0 %v251
  %303 = vmatprep.subr.bf16.mxu0 0
  %304 = vmatpush1.bf16.msra.mxu0 0
  %305 = vmatprep.subr.bf16.mxu0 0
  %306 = vmatpush1.bf16.msra.mxu0 0
  %307 = vmatprep.subr.bf16.mxu0 0
  %308 = vmatpush1.bf16.msra.mxu0 0
  %309 = vmatprep.subr.bf16.mxu0 0
  %310 = vmatpush1.bf16.msra.mxu0 0
  %311 = vmatprep.subr.bf16.mxu0 0
  %312 = vmatpush1.bf16.msra.mxu0 0
  %313 = vmatprep.subr.bf16.mxu0 0
  %314 = vmatpush1.bf16.msra.mxu0 0
  %315 = vmatprep.subr.bf16.mxu0 0
  %316 = vmatpush1.bf16.msra.mxu0 0
  %317 = vmatprep.subr.bf16.mxu0 0
  %318 = vmatpush1.bf16.msra.mxu0 0
  %319 = vmatprep.mubr.bf16.mxu0 0
  %320 = vmatmul.mubr.bf16.gmra.mrb[0].mxu0 %v71
  %v321 = vpop.f32.mrb[0].mxu0
  %v322 = vadd.f32 %v110, %v321
  %v323 = vpop.f32.mrb[0].mxu0
  %v324 = vadd.f32 %v114, %v323
  %v325 = vpop.f32.mrb[0].mxu0
  %v326 = vadd.f32 %v110, %v325
  %v327 = vpop.f32.mrb[0].mxu0
  %v328 = vadd.f32 %v114, %v327
  %329 = vmatprep.mubr.bf16.mxu0 0
  %330 = vmatmul.mubr.bf16.gmra.mrb[0].mxu0 %v72
  %v331 = vpop.f32.mrb[0].mxu0
  %v332 = vadd.f32 %v110, %v331
  %v333 = vpop.f32.mrb[0].mxu0
  %v334 = vadd.f32 %v114, %v333
  %v335 = vpop.f32.mrb[0].mxu0
  %v336 = vpop.f32.mrb[0].mxu0
  %337 = vdwg.mxu0
  %338 = vmatprep.subr.bf16.mxu0 %v226
  %339 = vmatpush1.bf16.msra.mxu0 %v225
  %340 = vmatprep.subr.bf16.mxu0 %v230
  %341 = vmatpush1.bf16.msra.mxu0 %v229
  %342 = vmatprep.subr.bf16.mxu0 %v234
  %343 = vmatpush1.bf16.msra.mxu0 %v233
  %344 = vmatprep.subr.bf16.mxu0 %v238
  %345 = vmatpush1.bf16.msra.mxu0 %v237
  %346 = vmatprep.subr.bf16.mxu0 %v242
  %347 = vmatpush1.bf16.msra.mxu0 %v241
  %348 = vmatprep.subr.bf16.mxu0 %v246
  %349 = vmatpush1.bf16.msra.mxu0 %v245
  %350 = vmatprep.subr.bf16.mxu0 %v250
  %351 = vmatpush1.bf16.msra.mxu0 %v249
  %352 = vmatprep.subr.bf16.mxu0 %v254
  %353 = vmatpush1.bf16.msra.mxu0 %v253
  %354 = vmatprep.subr.bf16.mxu0 0
  %355 = vmatpush1.bf16.msra.mxu0 0
  %356 = vmatprep.subr.bf16.mxu0 0
  %357 = vmatpush1.bf16.msra.mxu0 0
  %358 = vmatprep.subr.bf16.mxu0 0
  %359 = vmatpush1.bf16.msra.mxu0 0
  %360 = vmatprep.subr.bf16.mxu0 0
  %361 = vmatpush1.bf16.msra.mxu0 0
  %362 = vmatprep.subr.bf16.mxu0 0
  %363 = vmatpush1.bf16.msra.mxu0 0
  %364 = vmatprep.subr.bf16.mxu0 0
  %365 = vmatpush1.bf16.msra.mxu0 0
  %366 = vmatprep.subr.bf16.mxu0 0
  %367 = vmatpush1.bf16.msra.mxu0 0
  %368 = vmatprep.subr.bf16.mxu0 0
  %369 = vmatpush1.bf16.msra.mxu0 0
  %370 = vmatprep.mubr.bf16.mxu0 0
  %371 = vmatmul.mubr.bf16.gmra.mrb[0].mxu0 %v71
  %v372 = vpop.f32.mrb[0].mxu0
  %v373 = vadd.f32 %v118, %v372
  %v374 = vpop.f32.mrb[0].mxu0
  %v375 = vadd.f32 %v122, %v374
  %v376 = vpop.f32.mrb[0].mxu0
  %v377 = vadd.f32 %v118, %v376
  %v378 = vpop.f32.mrb[0].mxu0
  %v379 = vadd.f32 %v122, %v378
  %380 = vmatprep.mubr.bf16.mxu0 0
  %381 = vmatmul.mubr.bf16.gmra.mrb[0].mxu0 %v72
  %v382 = vpop.f32.mrb[0].mxu0
  %v383 = vadd.f32 %v118, %v382
  %v384 = vpop.f32.mrb[0].mxu0
  %v385 = vadd.f32 %v122, %v384
  %v386 = vpop.f32.mrb[0].mxu0
  %v387 = vpop.f32.mrb[0].mxu0
  %388 = vdwg.mxu0
  %v389 = vmul.f32 %v322, %v322
  %v390 = vmul.f32 %v324, %v324
  %v391 = vmul.f32 %v373, %v373
  %v392 = vmul.f32 %v375, %v375
  %v393 = vmul.f32 %v326, %v326
  %v394 = vmul.f32 %v328, %v328
  %v395 = vmul.f32 %v377, %v377
  %v396 = vmul.f32 %v379, %v379
  %v397 = vmul.f32 %v332, %v332
  %v398 = vmul.f32 %v334, %v334
  %v399 = vmul.f32 %v383, %v383
  %v400 = vmul.f32 %v385, %v385
  %v401 = vmul.f32 %v322, %v389
  %v402 = vmul.f32 %v324, %v390
  %v403 = vmul.f32 %v373, %v391
  %v404 = vmul.f32 %v375, %v392
  %v405 = vmul.f32 %v326, %v393
  %v406 = vmul.f32 %v328, %v394
  %v407 = vmul.f32 %v377, %v395
  %v408 = vmul.f32 %v379, %v396
  %v409 = vmul.f32 %v332, %v397
  %v410 = vmul.f32 %v334, %v398
  %v411 = vmul.f32 %v383, %v399
  %v412 = vmul.f32 %v385, %v400
  %v413 = vmul.f32 %v401, 0.044715
  %v414 = vmul.f32 %v402, 0.044715
  %v415 = vmul.f32 %v403, 0.044715
  %v416 = vmul.f32 %v404, 0.044715
  %v417 = vmul.f32 %v405, 0.044715
  %v418 = vmul.f32 %v406, 0.044715
  %v419 = vmul.f32 %v407, 0.044715
  %v420 = vmul.f32 %v408, 0.044715
  %v421 = vmul.f32 %v409, 0.044715
  %v422 = vmul.f32 %v410, 0.044715
  %v423 = vmul.f32 %v411, 0.044715
  %v424 = vmul.f32 %v412, 0.044715
  %v425 = vadd.f32 %v322, %v413
  %v426 = vadd.f32 %v324, %v414
  %v427 = vadd.f32 %v373, %v415
  %v428 = vadd.f32 %v375, %v416
  %v429 = vadd.f32 %v326, %v417
  %v430 = vadd.f32 %v328, %v418
  %v431 = vadd.f32 %v377, %v419
  %v432 = vadd.f32 %v379, %v420
  %v433 = vadd.f32 %v332, %v421
  %v434 = vadd.f32 %v334, %v422
  %v435 = vadd.f32 %v383, %v423
  %v436 = vadd.f32 %v385, %v424
  %v437 = vmul.f32 %v425, 0.7978846
  %v438 = vmul.f32 %v426, 0.7978846
  %v439 = vmul.f32 %v427, 0.7978846
  %v440 = vmul.f32 %v428, 0.7978846
  %v441 = vmul.f32 %v429, 0.7978846
  %v442 = vmul.f32 %v430, 0.7978846
  %v443 = vmul.f32 %v431, 0.7978846
  %v444 = vmul.f32 %v432, 0.7978846
  %v445 = vmul.f32 %v433, 0.7978846
  %v446 = vmul.f32 %v434, 0.7978846
  %v447 = vmul.f32 %v435, 0.7978846
  %v448 = vmul.f32 %v436, 0.7978846
  %v449 = vtanh.pop %v437
  %v450 = vtanh.pop %v438
  %v451 = vtanh.pop %v439
  %v452 = vtanh.pop %v440
  %v453 = vtanh.pop %v441
  %v454 = vtanh.pop %v442
  %v455 = vtanh.pop %v443
  %v456 = vtanh.pop %v444
  %v457 = vtanh.pop %v445
  %v458 = vtanh.pop %v446
  %v459 = vtanh.pop %v447
  %v460 = vtanh.pop %v448
  %v461 = vadd.f32 %v449, 1.0
  %v462 = vadd.f32 %v450, 1.0
  %v463 = vadd.f32 %v451, 1.0
  %v464 = vadd.f32 %v452, 1.0
  %v465 = vadd.f32 %v453, 1.0
  %v466 = vadd.f32 %v454, 1.0
  %v467 = vadd.f32 %v455, 1.0
  %v468 = vadd.f32 %v456, 1.0
  %v469 = vadd.f32 %v457, 1.0
  %v470 = vadd.f32 %v458, 1.0
  %v471 = vadd.f32 %v459, 1.0
  %v472 = vadd.f32 %v460, 1.0
  %v473 = vmul.f32 %v461, 0.5
  %v474 = vmul.f32 %v462, 0.5
  %v475 = vmul.f32 %v463, 0.5
  %v476 = vmul.f32 %v464, 0.5
  %v477 = vmul.f32 %v465, 0.5
  %v478 = vmul.f32 %v466, 0.5
  %v479 = vmul.f32 %v467, 0.5
  %v480 = vmul.f32 %v468, 0.5
  %v481 = vmul.f32 %v469, 0.5
  %v482 = vmul.f32 %v470, 0.5
  %v483 = vmul.f32 %v471, 0.5
  %v484 = vmul.f32 %v472, 0.5
  %v485 = vmul.f32 %v322, %v473
  %v486 = vmul.f32 %v324, %v474
  %v487 = vmul.f32 %v373, %v475
  %v488 = vmul.f32 %v375, %v476
  %v489 = vmul.f32 %v326, %v477
  %v490 = vmul.f32 %v328, %v478
  %v491 = vmul.f32 %v377, %v479
  %v492 = vmul.f32 %v379, %v480
  %v493 = vmul.f32 %v332, %v481
  %v494 = vmul.f32 %v334, %v482
  %v495 = vmul.f32 %v383, %v483
  %v496 = vmul.f32 %v385, %v484
  %v497 = vpack.c.bf16 %v489, %v485
  %v498 = vpack.c.bf16 %v490, %v486
  %v499 = vpack.c.bf16 %v491, %v487
  %v500 = vpack.c.bf16 %v492, %v488
  %v501 = vpack.c.bf16 %v493, %v493
  %v502 = vpack.c.bf16 %v494, %v494
  %v503 = vpack.c.bf16 %v495, %v495
  %v504 = vpack.c.bf16 %v496, %v496
  %v505 = vld [vmem:[%s3] sm:$0xf]
  %v506 = vld [vmem:[%s3 + $0x4] sm:$0xf]
  %v507 = vld [vmem:[%s3 + $0x8] sm:$0xf]
  %v508 = vld [vmem:[%s3 + $0xc] sm:$0xf]
  %v509 = vld [vmem:[%s3 + $0x10] sm:$0xf]
  %v510 = vld [vmem:[%s3 + $0x14] sm:$0xf]
  %v511 = vld [vmem:[%s3 + $0x18] sm:$0xf]
  %v512 = vld [vmem:[%s3 + $0x1c] sm:$0xf]
  %v513 = vld [vmem:[%s3 + $0x20] sm:$0xf]
  %v514 = vld [vmem:[%s3 + $0x24] sm:$0xf]
  %v515 = vld [vmem:[%s3 + $0x28] sm:$0xf]
  %v516 = vld [vmem:[%s3 + $0x2c] sm:$0xf]
  %v517 = vld [vmem:[%s3 + $0x30] sm:$0xf]
  %v518 = vld [vmem:[%s3 + $0x34] sm:$0xf]
  %v519 = vld [vmem:[%s3 + $0x38] sm:$0xf]
  %v520 = vld [vmem:[%s3 + $0x3c] sm:$0xf]
  %v521 = vld [vmem:[%s3 + $0x40] sm:$0xf]
  %v522 = vld [vmem:[%s3 + $0x44] sm:$0xf]
  %v523 = vld [vmem:[%s3 + $0x48] sm:$0xf]
  %v524 = vld [vmem:[%s3 + $0x4c] sm:$0xf]
  %v525 = vld [vmem:[%s3 + $0x50] sm:$0xf]
  %v526 = vld [vmem:[%s3 + $0x54] sm:$0xf]
  %v527 = vld [vmem:[%s3 + $0x58] sm:$0xf]
  %v528 = vld [vmem:[%s3 + $0x5c] sm:$0xf]
  %v529 = vld [vmem:[%s3 + $0x60] sm:$0xf]
  %v530 = vld [vmem:[%s3 + $0x64] sm:$0xf]
  %v531 = vld [vmem:[%s3 + $0x68] sm:$0xf]
  %v532 = vld [vmem:[%s3 + $0x6c] sm:$0xf]
  %v533 = vld [vmem:[%s3 + $0x70] sm:$0xf]
  %v534 = vld [vmem:[%s3 + $0x74] sm:$0xf]
  %v535 = vld [vmem:[%s3 + $0x78] sm:$0xf]
  %v536 = vld [vmem:[%s3 + $0x7c] sm:$0xf]
  %v537 = vld [vmem:[%s3 + $0x80] sm:$0xf]
  %v538 = vld [vmem:[%s3 + $0x84] sm:$0xf]
  %v539 = vld [vmem:[%s3 + $0x88] sm:$0xf]
  %v540 = vld [vmem:[%s3 + $0x8c] sm:$0xf]
  %v541 = vld [vmem:[%s3 + $0x90] sm:$0xf]
  %v542 = vld [vmem:[%s3 + $0x94] sm:$0xf]
  %v543 = vld [vmem:[%s3 + $0x98] sm:$0xf]
  %v544 = vld [vmem:[%s3 + $0x9c] sm:$0xf]
  %v545 = vld [vmem:[%s3 + $0xa0] sm:$0xf]
  %v546 = vld [vmem:[%s3 + $0xa4] sm:$0xf]
  %v547 = vld [vmem:[%s3 + $0xa8] sm:$0xf]
  %v548 = vld [vmem:[%s3 + $0xac] sm:$0xf]
  %v549 = vld [vmem:[%s3 + $0xb0] sm:$0xf]
  %v550 = vld [vmem:[%s3 + $0xb4] sm:$0xf]
  %v551 = vld [vmem:[%s3 + $0xb8] sm:$0xf]
  %v552 = vld [vmem:[%s3 + $0xbc] sm:$0xf]
  %v553 = vld [vmem:[%s3 + $0xc0] sm:$0xf]
  %v554 = vld [vmem:[%s3 + $0xc4] sm:$0xf]
  %v555 = vld [vmem:[%s3 + $0xc8] sm:$0xf]
  %v556 = vld [vmem:[%s3 + $0xcc] sm:$0xf]
  %v557 = vld [vmem:[%s3 + $0xd0] sm:$0xf]
  %v558 = vld [vmem:[%s3 + $0xd4] sm:$0xf]
  %v559 = vld [vmem:[%s3 + $0xd8] sm:$0xf]
  %v560 = vld [vmem:[%s3 + $0xdc] sm:$0xf]
  %v561 = vld [vmem:[%s3 + $0xe0] sm:$0xf]
  %v562 = vld [vmem:[%s3 + $0xe4] sm:$0xf]
  %v563 = vld [vmem:[%s3 + $0xe8] sm:$0xf]
  %v564 = vld [vmem:[%s3 + $0xec] sm:$0xf]
  %v565 = vld [vmem:[%s3 + $0xf0] sm:$0xf]
  %v566 = vld [vmem:[%s3 + $0xf4] sm:$0xf]
  %v567 = vld [vmem:[%s3 + $0xf8] sm:$0xf]
  %v568 = vld [vmem:[%s3 + $0xfc] sm:$0xf]
  %v569 = vld [vmem:[%s4] sm:$0x1]
  %v571 = vlaneseq
  %v572 = vshrl.u32 %v571, 7
  %v573 = vsub.s32 0, %v572
  %v574 = vrot.slane %v569, %v573
  %v640 = vunpack.c.l.b16 %v505
  %v641 = vunpack.c.l.b16 %v506
  %v642 = vunpack.c.l.b16 %v507
  %v643 = vunpack.c.l.b16 %v508
  %v644 = vunpack.c.l.b16 %v509
  %v645 = vunpack.c.l.b16 %v510
  %v646 = vunpack.c.l.b16 %v511
  %v647 = vunpack.c.l.b16 %v512
  %v648 = vunpack.c.l.b16 %v513
  %v649 = vunpack.c.l.b16 %v514
  %v650 = vunpack.c.l.b16 %v515
  %v651 = vunpack.c.l.b16 %v516
  %v652 = vunpack.c.l.b16 %v517
  %v653 = vunpack.c.l.b16 %v518
  %v654 = vunpack.c.l.b16 %v519
  %v655 = vunpack.c.l.b16 %v520
  %v656 = vunpack.c.l.b16 %v521
  %v657 = vunpack.c.l.b16 %v522
  %v658 = vunpack.c.l.b16 %v523
  %v659 = vunpack.c.l.b16 %v524
  %v660 = vunpack.c.l.b16 %v525
  %v661 = vunpack.c.l.b16 %v526
  %v662 = vunpack.c.l.b16 %v527
  %v663 = vunpack.c.l.b16 %v528
  %v664 = vunpack.c.l.b16 %v529
  %v665 = vunpack.c.l.b16 %v530
  %v666 = vunpack.c.l.b16 %v531
  %v667 = vunpack.c.l.b16 %v532
  %v668 = vunpack.c.l.b16 %v533
  %v669 = vunpack.c.l.b16 %v534
  %v670 = vunpack.c.l.b16 %v535
  %v671 = vunpack.c.l.b16 %v536
  %v672 = vunpack.c.l.b16 %v537
  %v673 = vunpack.c.l.b16 %v538
  %v674 = vunpack.c.l.b16 %v539
  %v675 = vunpack.c.l.b16 %v540
  %v676 = vunpack.c.l.b16 %v541
  %v677 = vunpack.c.l.b16 %v542
  %v678 = vunpack.c.l.b16 %v543
  %v679 = vunpack.c.l.b16 %v544
  %v680 = vunpack.c.l.b16 %v545
  %v681 = vunpack.c.l.b16 %v546
  %v682 = vunpack.c.l.b16 %v547
  %v683 = vunpack.c.l.b16 %v548
  %v684 = vunpack.c.l.b16 %v549
  %v685 = vunpack.c.l.b16 %v550
  %v686 = vunpack.c.l.b16 %v551
  %v687 = vunpack.c.l.b16 %v552
  %v688 = vunpack.c.l.b16 %v553
  %v689 = vunpack.c.l.b16 %v554
  %v690 = vunpack.c.l.b16 %v555
  %v691 = vunpack.c.l.b16 %v556
  %v692 = vunpack.c.l.b16 %v557
  %v693 = vunpack.c.l.b16 %v558
  %v694 = vunpack.c.l.b16 %v559
  %v695 = vunpack.c.l.b16 %v560
  %v696 = vunpack.c.l.b16 %v561
  %v697 = vunpack.c.l.b16 %v562
  %v698 = vunpack.c.l.b16 %v563
  %v699 = vunpack.c.l.b16 %v564
  %v700 = vunpack.c.l.b16 %v565
  %v701 = vunpack.c.l.b16 %v566
  %v702 = vunpack.c.l.b16 %v567
  %v703 = vunpack.c.l.b16 %v568
  %v704 = vpack.c.b16 %v641, %v640
  %v705 = vpack.c.b16 %v643, %v642
  %v706 = vpack.c.b16 %v645, %v644
  %v707 = vpack.c.b16 %v647, %v646
  %v708 = vpack.c.b16 %v649, %v648
  %v709 = vpack.c.b16 %v651, %v650
  %v710 = vpack.c.b16 %v653, %v652
  %v711 = vpack.c.b16 %v655, %v654
  %v712 = vpack.c.b16 %v657, %v656
  %v713 = vpack.c.b16 %v659, %v658
  %v714 = vpack.c.b16 %v661, %v660
  %v715 = vpack.c.b16 %v663, %v662
  %v716 = vpack.c.b16 %v665, %v664
  %v717 = vpack.c.b16 %v667, %v666
  %v718 = vpack.c.b16 %v669, %v668
  %v719 = vpack.c.b16 %v671, %v670
  %v720 = vpack.c.b16 %v673, %v672
  %v721 = vpack.c.b16 %v675, %v674
  %v722 = vpack.c.b16 %v677, %v676
  %v723 = vpack.c.b16 %v679, %v678
  %v724 = vpack.c.b16 %v681, %v680
  %v725 = vpack.c.b16 %v683, %v682
  %v726 = vpack.c.b16 %v685, %v684
  %v727 = vpack.c.b16 %v687, %v686
  %v728 = vpack.c.b16 %v689, %v688
  %v729 = vpack.c.b16 %v691, %v690
  %v730 = vpack.c.b16 %v693, %v692
  %v731 = vpack.c.b16 %v695, %v694
  %v732 = vpack.c.b16 %v697, %v696
  %v733 = vpack.c.b16 %v699, %v698
  %v734 = vpack.c.b16 %v701, %v700
  %v735 = vpack.c.b16 %v703, %v702
  %768 = vmatprep.subr.bf16.mxu0 0
  %769 = vmatpush1.bf16.msra.mxu0 %v704
  %770 = vmatprep.subr.bf16.mxu0 0
  %771 = vmatpush1.bf16.msra.mxu0 %v705
  %772 = vmatprep.subr.bf16.mxu0 0
  %773 = vmatpush1.bf16.msra.mxu0 %v706
  %774 = vmatprep.subr.bf16.mxu0 0
  %775 = vmatpush1.bf16.msra.mxu0 %v707
  %776 = vmatprep.subr.bf16.mxu0 0
  %777 = vmatpush1.bf16.msra.mxu0 %v708
  %778 = vmatprep.subr.bf16.mxu0 0
  %779 = vmatpush1.bf16.msra.mxu0 %v709
  %780 = vmatprep.subr.bf16.mxu0 0
  %781 = vmatpush1.bf16.msra.mxu0 %v710
  %782 = vmatprep.subr.bf16.mxu0 0
  %783 = vmatpush1.bf16.msra.mxu0 %v711
  %784 = vmatprep.subr.bf16.mxu0 0
  %785 = vmatpush1.bf16.msra.mxu0 %v712
  %786 = vmatprep.subr.bf16.mxu0 0
  %787 = vmatpush1.bf16.msra.mxu0 %v713
  %788 = vmatprep.subr.bf16.mxu0 0
  %789 = vmatpush1.bf16.msra.mxu0 %v714
  %790 = vmatprep.subr.bf16.mxu0 0
  %791 = vmatpush1.bf16.msra.mxu0 %v715
  %792 = vmatprep.subr.bf16.mxu0 0
  %793 = vmatpush1.bf16.msra.mxu0 %v716
  %794 = vmatprep.subr.bf16.mxu0 0
  %795 = vmatpush1.bf16.msra.mxu0 %v717
  %796 = vmatprep.subr.bf16.mxu0 0
  %797 = vmatpush1.bf16.msra.mxu0 %v718
  %798 = vmatprep.subr.bf16.mxu0 0
  %799 = vmatpush1.bf16.msra.mxu0 %v719
  %800 = vmatprep.mubr.bf16.mxu0 %v498
  %801 = vmatmul.mubr.bf16.gmra.mrb[0].mxu0 %v497
  %v802 = vpop.f32.mrb[0].mxu0
  %v803 = vadd.f32 %v574, %v802
  %v804 = vpop.f32.mrb[0].mxu0
  %v805 = vpop.f32.mrb[0].mxu0
  %v806 = vadd.f32 %v574, %v805
  %v807 = vpop.f32.mrb[0].mxu0
  %808 = vmatprep.mubr.bf16.mxu0 %v502
  %809 = vmatmul.mubr.bf16.gmra.mrb[0].mxu0 %v501
  %v810 = vpop.f32.mrb[0].mxu0
  %v811 = vadd.f32 %v574, %v810
  %v812 = vpop.f32.mrb[0].mxu0
  %v813 = vpop.f32.mrb[0].mxu0
  %v814 = vpop.f32.mrb[0].mxu0
  %815 = vdwg.mxu0
  %816 = vmatprep.subr.bf16.mxu0 0
  %817 = vmatpush1.bf16.msra.mxu0 %v720
  %818 = vmatprep.subr.bf16.mxu0 0
  %819 = vmatpush1.bf16.msra.mxu0 %v721
  %820 = vmatprep.subr.bf16.mxu0 0
  %821 = vmatpush1.bf16.msra.mxu0 %v722
  %822 = vmatprep.subr.bf16.mxu0 0
  %823 = vmatpush1.bf16.msra.mxu0 %v723
  %824 = vmatprep.subr.bf16.mxu0 0
  %825 = vmatpush1.bf16.msra.mxu0 %v724
  %826 = vmatprep.subr.bf16.mxu0 0
  %827 = vmatpush1.bf16.msra.mxu0 %v725
  %828 = vmatprep.subr.bf16.mxu0 0
  %829 = vmatpush1.bf16.msra.mxu0 %v726
  %830 = vmatprep.subr.bf16.mxu0 0
  %831 = vmatpush1.bf16.msra.mxu0 %v727
  %832 = vmatprep.subr.bf16.mxu0 0
  %833 = vmatpush1.bf16.msra.mxu0 %v728
  %834 = vmatprep.subr.bf16.mxu0 0
  %835 = vmatpush1.bf16.msra.mxu0 %v729
  %836 = vmatprep.subr.bf16.mxu0 0
  %837 = vmatpush1.bf16.msra.mxu0 %v730
  %838 = vmatprep.subr.bf16.mxu0 0
  %839 = vmatpush1.bf16.msra.mxu0 %v731
  %840 = vmatprep.subr.bf16.mxu0 0
  %841 = vmatpush1.bf16.msra.mxu0 %v732
  %842 = vmatprep.subr.bf16.mxu0 0
  %843 = vmatpush1.bf16.msra.mxu0 %v733
  %844 = vmatprep.subr.bf16.mxu0 0
  %845 = vmatpush1.bf16.msra.mxu0 %v734
  %846 = vmatprep.subr.bf16.mxu0 0
  %847 = vmatpush1.bf16.msra.mxu0 %v735
  %848 = vmatprep.mubr.bf16.mxu0 %v500
  %849 = vmatmul.mubr.bf16.gmra.mrb[0].mxu0 %v499
  %v850 = vpop.f32.mrb[0].mxu0
  %v851 = vadd.f32 %v803, %v850
  %v852 = vpop.f32.mrb[0].mxu0
  %v853 = vpop.f32.mrb[0].mxu0
  %v854 = vadd.f32 %v806, %v853
  %v855 = vpop.f32.mrb[0].mxu0
  %856 = vmatprep.mubr.bf16.mxu0 %v504
  %857 = vmatmul.mubr.bf16.gmra.mrb[0].mxu0 %v503
  %v858 = vpop.f32.mrb[0].mxu0
  %v859 = vadd.f32 %v811, %v858
  %v860 = vpop.f32.mrb[0].mxu0
  %v861 = vpop.f32.mrb[0].mxu0
  %v862 = vpop.f32.mrb[0].mxu0
  %863 = vdwg.mxu0
  %v864 = vadd.f32 %v34, %v851
  %v865 = vadd.f32 %v35, %v854
  %v866 = vadd.f32 %v36, %v859
  %867 = vst [vmem:[#allocation2] sm:$0xff] %v864
  %868 = vst [vmem:[#allocation2 + $0x8] sm:$0xff] %v865
  %869 = vst [vmem:[#allocation2 + $0x10] sm:$0xff] %v866
  // Predicated region
  $region26: #{_lambda_.15} parent=0 // pred_check
    %p870 = pneg %p21
  $region27: #{_lambda_.15} parent=0 // pred_check_branch
    %872 = sbr.rel (%p870) target = $region29
  $region28: #{_lambda_.15} parent=0 // pred_region
    %v873 = vpack.c.bf16 %v865, %v864
    %v874 = vpack.c.bf16 %v866, %v866
    %v877 = vunpack.c.l.b16 %v873
    %v878 = vunpack.c.h.b16 %v873
    %v879 = vunpack.c.l.b16 %v874
    %v880 = vpack.c.b16 %v877, %v877
    %v881 = vpack.c.b16 %v878, %v878
    %v882 = vpack.c.b16 %v879, %v879
    %886 = vst [vmem:[%s5] sm:$0xf] %v880
    %887 = vst [vmem:[%s5 + $0x4] sm:$0xf] %v881
    %888 = vst [vmem:[%s5 + $0x8] sm:$0xf] %v882
  $region29: #{_lambda_.15} parent=0 // pred_fallthru
    _
  // Predicated region
  $region30: #{_lambda_.15} parent=0 // pred_check
    _
  $region31: #{_lambda_.15} parent=0 // pred_check_branch
    %890 = sbr.rel (0) target = $region33
  $region32: #{_lambda_.15} parent=0 // pred_region
    _
  $region33: #{_lambda_.15} parent=0 // pred_fallthru
    _
  // Predicated region
  $region34: #{_lambda_.15} parent=0 // pred_check
    _
  $region35: #{_lambda_.15} parent=0 // pred_check_branch
    %892 = sbr.rel (0) target = $region37
  $region36: #{_lambda_.15} parent=0 // pred_region
    _
  $region37: #{_lambda_.15} parent=0 // pred_fallthru
    _

</llo_original>
